<compile_context>
chip_gen: v5e
topology: v5e:2x2
jax: 0.10.0
libtpu: 0.0.40
codegen_flags: <defaults>
</compile_context>

<pallas_src>
import numpy as np
import jax
import jax.numpy as jnp
from jax.experimental import pallas as pl
from jax.experimental.pallas import tpu as pltpu

BN_EPS = 1e-5
_VMEM = pl.BlockSpec(memory_space=pltpu.MemorySpace.VMEM)


# ------------------------- trace-time constant builders ------------------------- #

def _conv_band(weight, W):
    """(Cout,Cin,3,3) torch conv weight -> (3, (W+2)*Cin, W*Cout) banded matrices.

    Band dy maps the lane-folded, guard-padded input row (shifted vertically by dy-1)
    to the lane-folded conv output; the 3 horizontal taps are folded into the band.
    """
    w = np.asarray(weight, np.float32)
    Cout, Cin = w.shape[:2]
    wb = np.zeros((3, (W + 2) * Cin, W * Cout), np.float32)
    for dy in range(3):
        for dx in range(3):
            blk = w[:, :, dy, dx].T                      # (Cin, Cout)
            for x in range(W):
                wb[dy, (x + dx) * Cin:(x + dx + 1) * Cin,
                       x * Cout:(x + 1) * Cout] = blk
    return wb


def _row_shift_sel(B, H):
    """(2, B*H, B*H): [0] picks row r-1 (0 at image top), [1] picks r+1 (0 at bottom)."""
    R = B * H
    s = np.zeros((2, R, R), np.float32)
    for b in range(B):
        for h in range(H):
            r = b * H + h
            if h > 0:
                s[0, r, r - 1] = 1.0
            if h < H - 1:
                s[1, r, r + 1] = 1.0
    return s


def _wpool_sel(W, C, guard):
    """(2, W*C, L): even/odd column-block selectors for the width max-pool.

    If guard, zero guard blocks for the next conv are inserted (L = (W/2+2)*C)."""
    off = C if guard else 0
    L = (W // 2 + 2) * C if guard else (W // 2) * C
    s = np.zeros((2, W * C, L), np.float32)
    for w in range(W):
        j, p = w // 2, w % 2
        for c in range(C):
            s[p, w * C + c, off + j * C + c] = 1.0
    return s


def _hpool_sel(B, H):
    """(2, B*(H/2), B*H): even/odd row selectors for the height max-pool."""
    Hh = H // 2
    s = np.zeros((2, B * Hh, B * H), np.float32)
    for b in range(B):
        for i in range(Hh):
            s[0, b * Hh + i, b * H + 2 * i] = 1.0
            s[1, b * Hh + i, b * H + 2 * i + 1] = 1.0
    return s


def _chan_mats(W, C):
    """T (W*C, C): sum over width blocks; Tt (C, W*C): broadcast channel to all blocks."""
    t = np.zeros((W * C, C), np.float32)
    for w in range(W):
        for c in range(C):
            t[w * C + c, c] = 1.0
    return t, np.ascontiguousarray(t.T)


def _input_sel(B, H, W, Cin):
    """Selectors turning the raw (B*Cin*H, W) NCHW rows into the lane-folded,
    guard-padded (B*H, (W+2)*Cin) activation, entirely in-kernel."""
    sel = np.zeros((Cin, B * H, B * Cin * H), np.float32)
    place = np.zeros((Cin, W, (W + 2) * Cin), np.float32)
    for ci in range(Cin):
        for b in range(B):
            for h in range(H):
                sel[ci, b * H + h, (b * Cin + ci) * H + h] = 1.0
        for w in range(W):
            place[ci, w, (w + 1) * Cin + ci] = 1.0
    return sel, place


def _fc1_gather_sel(B, H):
    """(H, B, B*H): picks row b*H+h of the final pooled map for each h."""
    s = np.zeros((H, B, B * H), np.float32)
    for h in range(H):
        for b in range(B):
            s[h, b, b * H + h] = 1.0
    return s


def _fc1_pack(fc1_w, H=4, W=4, C=32):
    """Permute fc1 rows from torch flatten order (c*16+h*4+w) to our (h, w*C+c) layout."""
    fw = np.asarray(fc1_w, np.float32)                   # (C*H*W, hidden)
    out = np.zeros((H, W * C, fw.shape[1]), np.float32)
    for h in range(H):
        for w in range(W):
            for c in range(C):
                out[h, w * C + c, :] = fw[c * H * W + h * W + w, :]
    return out


# --------------------------------- fused kernel --------------------------------- #

def image_encoder_forward(x_nchw, params):
    """Pallas implementation of ImageEncoder.forward (train-mode BatchNorm)."""
    B = x_nchw.shape[0]
    assert x_nchw.shape[1:] == (3, 32, 32), "fc1 expects 32x32x3 inputs"
    out_dim = params["fc2_w"].shape[1]

    # layer configs: (H, W, Cin, Cout, insert guard columns for next conv)
    cfgs = [(32, 32, 3, 8, True), (16, 16, 8, 16, True), (8, 8, 16, 32, False)]
    n_counts = [float(B * H * W) for (H, W, _, _, _) in cfgs]

    layer_ops = []
    for l, (H, W, Cin, Cout, guard) in enumerate(cfgs):
        wb = _conv_band(params[f"conv{l + 1}_w"], W)
        rs = _row_shift_sel(B, H)
        sw = _wpool_sel(W, Cout, guard)
        sh = _hpool_sel(B, H)
        t, tt = _chan_mats(W, Cout)
        g = np.tile(np.asarray(params[f"bn{l + 1}_g"], np.float32), W)[None, :]
        be = np.tile(np.asarray(params[f"bn{l + 1}_b"], np.float32), W)[None, :]
        layer_ops += [wb, rs, sw, sh, t, tt, g, be]

    insel, inplace = _input_sel(B, 32, 32, 3)
    fsel = _fc1_gather_sel(B, 4)
    fw1 = _fc1_pack(params["fc1_w"])
    fb1 = np.asarray(params["fc1_b"], np.float32)[None, :]
    fw2 = np.asarray(params["fc2_w"], np.float32)
    fb2 = np.asarray(params["fc2_b"], np.float32)[None, :]

    xr = x_nchw.astype(jnp.float32).reshape(B * 3 * 32, 32)   # only outside-kernel op

    operands = [xr, insel, inplace] + layer_ops + [fsel, fw1, fb1, fw2, fb2]
    operands = [jnp.asarray(o, jnp.float32) for o in operands]

    NL = 8  # refs per conv block

    def kernel(*refs):
        xr_ref, insel_ref, inplace_ref = refs[:3]
        lrefs = [refs[3 + NL * l: 3 + NL * (l + 1)] for l in range(3)]
        fsel_ref, fw1_ref, fb1_ref, fw2_ref, fb2_ref, out_ref = refs[3 + 3 * NL:]

        def dot(a, b):
            return jnp.dot(a, b, preferred_element_type=jnp.float32)

        # Gather raw NCHW rows into the lane-folded, guard-padded layout (in VMEM).
        xraw = xr_ref[...]
        x = dot(dot(insel_ref[0], xraw), inplace_ref[0])
        for ci in range(1, 3):
            x = x + dot(dot(insel_ref[ci], xraw), inplace_ref[ci])

        # Three fused conv3x3(same) + BN(train) + ReLU + maxpool2x2 blocks.
        for l in range(3):
            wb, rs, sw, sh, t, tt, g, be = lrefs[l]
            inv_n = 1.0 / n_counts[l]
            # conv: middle vertical tap + two boundary-masked row-shifted taps.
            y = dot(x, wb[1])
            y = y + dot(dot(rs[0], x), wb[0])
            y = y + dot(dot(rs[1], x), wb[2])
            # conv bias omitted: exactly cancelled by train-mode BN mean subtraction.
            tmat = t[...]
            ttmat = tt[...]
            mean_c = dot(jnp.sum(y, axis=0, keepdims=True), tmat) * inv_n
            d = y - dot(mean_c, ttmat)
            var_c = dot(jnp.sum(d * d, axis=0, keepdims=True), tmat) * inv_n
            z = d * dot(jax.lax.rsqrt(var_c + BN_EPS), ttmat) * g[...] + be[...]
            z = jnp.maximum(z, 0.0)
            # 2x2/stride-2 max-pool via even/odd selection matmuls (guards folded in).
            m = jnp.maximum(dot(z, sw[0]), dot(z, sw[1]))
            x = jnp.maximum(dot(sh[0], m), dot(sh[1], m))

        # MLP head; torch-order flatten is folded into the per-row fc1 weight slices.
        h = fb1_ref[...]
        for hh in range(4):
            h = h + dot(dot(fsel_ref[hh], x), fw1_ref[hh])
        h = jnp.maximum(h, 0.0)
        out_ref[...] = jnp.maximum(dot(h, fw2_ref[...]) + fb2_ref[...], 0.0)

    return pl.pallas_call(
        kernel,
        out_shape=jax.ShapeDtypeStruct((B, out_dim), jnp.float32),
        in_specs=[_VMEM] * len(operands),
        out_specs=_VMEM,
    )(*operands)


# ------------------------------ reference (pure JAX) ----------------------------- #

def reference_forward(x_nchw, params):
    x = jnp.transpose(x_nchw, (0, 2, 3, 1)).astype(jnp.float32)

    def block(x, w, b, g, be):
        y = jax.lax.conv_general_dilated(
            x, jnp.transpose(w, (2, 3, 1, 0)), window_strides=(1, 1),
            padding=((1, 1), (1, 1)),
            dimension_numbers=("NHWC", "HWIO", "NHWC"),
            precision=jax.lax.Precision.HIGHEST) + b
        mean = jnp.mean(y, axis=(0, 1, 2), keepdims=True)
        var = jnp.mean(jnp.square(y - mean), axis=(0, 1, 2), keepdims=True)
        y = (y - mean) * jax.lax.rsqrt(var + BN_EPS) * g + be
        y = jnp.maximum(y, 0.0)
        B, H, W, C = y.shape
        return y.reshape(B, H // 2, 2, W // 2, 2, C).max(axis=(2, 4))

    x = block(x, params["conv1_w"], params["conv1_b"], params["bn1_g"], params["bn1_b"])
    x = block(x, params["conv2_w"], params["conv2_b"], params["bn2_g"], params["bn2_b"])
    x = block(x, params["conv3_w"], params["conv3_b"], params["bn3_g"], params["bn3_b"])
    B = x.shape[0]
    flat = jnp.transpose(x, (0, 3, 1, 2)).reshape(B, -1)      # torch flatten order (C,H,W)
    h = jnp.maximum(flat @ params["fc1_w"] + params["fc1_b"], 0.0)
    return jnp.maximum(h @ params["fc2_w"] + params["fc2_b"], 0.0)


# ------------------------------------ params ------------------------------------- #

def init_params(key, output_vector_size=10):
    ks = jax.random.split(key, 16)
    f32 = jnp.float32
    return {
        "conv1_w": 0.1 * jax.random.normal(ks[0], (8, 3, 3, 3), f32),
        "conv1_b": 0.1 * jax.random.normal(ks[1], (8,), f32),
        "bn1_g": 1.0 + 0.1 * jax.random.normal(ks[2], (8,), f32),
        "bn1_b": 0.1 * jax.random.normal(ks[3], (8,), f32),
        "conv2_w": 0.1 * jax.random.normal(ks[4], (16, 8, 3, 3), f32),
        "conv2_b": 0.1 * jax.random.normal(ks[5], (16,), f32),
        "bn2_g": 1.0 + 0.1 * jax.random.normal(ks[6], (16,), f32),
        "bn2_b": 0.1 * jax.random.normal(ks[7], (16,), f32),
        "conv3_w": 0.1 * jax.random.normal(ks[8], (32, 16, 3, 3), f32),
        "conv3_b": 0.1 * jax.random.normal(ks[9], (32,), f32),
        "bn3_g": 1.0 + 0.1 * jax.random.normal(ks[10], (32,), f32),
        "bn3_b": 0.1 * jax.random.normal(ks[11], (32,), f32),
        # fc weights stored already transposed for x @ W (equivalent to torch Linear)
        "fc1_w": 0.05 * jax.random.normal(ks[12], (32 * 4 * 4, 128), f32),
        "fc1_b": 0.01 * jax.random.normal(ks[13], (128,), f32),
        "fc2_w": 0.05 * jax.random.normal(ks[14], (128, output_vector_size), f32),
        "fc2_b": 0.01 * jax.random.normal(ks[15], (output_vector_size,), f32),
    }


# ------------------------------------- main --------------------------------------- #

if __name__ == "__main__":
    key = jax.random.PRNGKey(0)
    k_x, k_p = jax.random.split(key)

    # fc1 expects 32*4*4 features -> spatial must be 32x32 (three 2x pools: 32->16->8->4)
    x = jax.random.normal(k_x, (2, 3, 32, 32), jnp.float32)   # NCHW, like PyTorch
    params = init_params(k_p, output_vector_size=10)

    out = jax.block_until_ready(image_encoder_forward(x, params))
    assert out.shape == (2, 10) and out.dtype == jnp.float32

    ref = jax.block_until_ready(reference_forward(x, params))
    np.testing.assert_allclose(np.asarray(out), np.asarray(ref), rtol=1e-2, atol=1e-2)

    print("KERNEL_OK")
</pallas_src>

<mosaic_0001>
module attributes {stable_mosaic.version = 11 : i64} {
  func.func @kernel(%arg0: memref<192x32xf32, #tpu.memory_space<vmem>>, %arg1: memref<3x64x192xf32, #tpu.memory_space<vmem>>, %arg2: memref<3x32x102xf32, #tpu.memory_space<vmem>>, %arg3: memref<3x102x256xf32, #tpu.memory_space<vmem>>, %arg4: memref<2x64x64xf32, #tpu.memory_space<vmem>>, %arg5: memref<2x256x144xf32, #tpu.memory_space<vmem>>, %arg6: memref<2x32x64xf32, #tpu.memory_space<vmem>>, %arg7: memref<256x8xf32, #tpu.memory_space<vmem>>, %arg8: memref<8x256xf32, #tpu.memory_space<vmem>>, %arg9: memref<1x256xf32, #tpu.memory_space<vmem>>, %arg10: memref<1x256xf32, #tpu.memory_space<vmem>>, %arg11: memref<3x144x256xf32, #tpu.memory_space<vmem>>, %arg12: memref<2x32x32xf32, #tpu.memory_space<vmem>>, %arg13: memref<2x256x160xf32, #tpu.memory_space<vmem>>, %arg14: memref<2x16x32xf32, #tpu.memory_space<vmem>>, %arg15: memref<256x16xf32, #tpu.memory_space<vmem>>, %arg16: memref<16x256xf32, #tpu.memory_space<vmem>>, %arg17: memref<1x256xf32, #tpu.memory_space<vmem>>, %arg18: memref<1x256xf32, #tpu.memory_space<vmem>>, %arg19: memref<3x160x256xf32, #tpu.memory_space<vmem>>, %arg20: memref<2x16x16xf32, #tpu.memory_space<vmem>>, %arg21: memref<2x256x128xf32, #tpu.memory_space<vmem>>, %arg22: memref<2x8x16xf32, #tpu.memory_space<vmem>>, %arg23: memref<256x32xf32, #tpu.memory_space<vmem>>, %arg24: memref<32x256xf32, #tpu.memory_space<vmem>>, %arg25: memref<1x256xf32, #tpu.memory_space<vmem>>, %arg26: memref<1x256xf32, #tpu.memory_space<vmem>>, %arg27: memref<4x2x8xf32, #tpu.memory_space<vmem>>, %arg28: memref<4x128x128xf32, #tpu.memory_space<vmem>>, %arg29: memref<1x128xf32, #tpu.memory_space<vmem>>, %arg30: memref<128x10xf32, #tpu.memory_space<vmem>>, %arg31: memref<1x10xf32, #tpu.memory_space<vmem>>, %arg32: memref<2x10xf32, #tpu.memory_space<vmem>>) attributes {dimension_semantics = [], scalar_prefetch = 0 : i64, scratch_operands = 0 : i64, tpu.core_type = #tpu.core_type<tc>} {
    %c0 = arith.constant 0 : index
    %c0_0 = arith.constant 0 : index
    %0 = vector.load %arg0[%c0, %c0_0] : memref<192x32xf32, #tpu.memory_space<vmem>>, vector<192x32xf32>
    %c0_1 = arith.constant 0 : index
    %c0_2 = arith.constant 0 : index
    %c0_3 = arith.constant 0 : index
    %1 = vector.load %arg1[%c0_1, %c0_2, %c0_3] : memref<3x64x192xf32, #tpu.memory_space<vmem>>, vector<1x64x192xf32>
    %2 = vector.shape_cast %1 : vector<1x64x192xf32> to vector<64x192xf32>
    %cst = arith.constant dense<0.000000e+00> : vector<64x32xf32>
    %3 = tpu.matmul %2, %0, %cst {dimension_numbers = #tpu.dot_dimension_numbers<[1], [0], [0], [1], [0, 0, 1, 1], [], []>} : vector<64x192xf32>, vector<192x32xf32>, vector<64x32xf32> -> vector<64x32xf32>
    %c0_4 = arith.constant 0 : index
    %c0_5 = arith.constant 0 : index
    %c0_6 = arith.constant 0 : index
    %4 = vector.load %arg2[%c0_4, %c0_5, %c0_6] : memref<3x32x102xf32, #tpu.memory_space<vmem>>, vector<1x32x102xf32>
    %5 = vector.shape_cast %4 : vector<1x32x102xf32> to vector<32x102xf32>
    %cst_7 = arith.constant dense<0.000000e+00> : vector<64x102xf32>
    %6 = tpu.matmul %3, %5, %cst_7 {dimension_numbers = #tpu.dot_dimension_numbers<[1], [0], [0], [1], [0, 0, 1, 1], [], []>} : vector<64x32xf32>, vector<32x102xf32>, vector<64x102xf32> -> vector<64x102xf32>
    %c1 = arith.constant 1 : index
    %c0_8 = arith.constant 0 : index
    %c0_9 = arith.constant 0 : index
    %7 = vector.load %arg1[%c1, %c0_8, %c0_9] : memref<3x64x192xf32, #tpu.memory_space<vmem>>, vector<1x64x192xf32>
    %8 = vector.shape_cast %7 : vector<1x64x192xf32> to vector<64x192xf32>
    %cst_10 = arith.constant dense<0.000000e+00> : vector<64x32xf32>
    %9 = tpu.matmul %8, %0, %cst_10 {dimension_numbers = #tpu.dot_dimension_numbers<[1], [0], [0], [1], [0, 0, 1, 1], [], []>} : vector<64x192xf32>, vector<192x32xf32>, vector<64x32xf32> -> vector<64x32xf32>
    %c1_11 = arith.constant 1 : index
    %c0_12 = arith.constant 0 : index
    %c0_13 = arith.constant 0 : index
    %10 = vector.load %arg2[%c1_11, %c0_12, %c0_13] : memref<3x32x102xf32, #tpu.memory_space<vmem>>, vector<1x32x102xf32>
    %11 = vector.shape_cast %10 : vector<1x32x102xf32> to vector<32x102xf32>
    %cst_14 = arith.constant dense<0.000000e+00> : vector<64x102xf32>
    %12 = tpu.matmul %9, %11, %cst_14 {dimension_numbers = #tpu.dot_dimension_numbers<[1], [0], [0], [1], [0, 0, 1, 1], [], []>} : vector<64x32xf32>, vector<32x102xf32>, vector<64x102xf32> -> vector<64x102xf32>
    %13 = arith.addf %6, %12 : vector<64x102xf32>
    %c2 = arith.constant 2 : index
    %c0_15 = arith.constant 0 : index
    %c0_16 = arith.constant 0 : index
    %14 = vector.load %arg1[%c2, %c0_15, %c0_16] : memref<3x64x192xf32, #tpu.memory_space<vmem>>, vector<1x64x192xf32>
    %15 = vector.shape_cast %14 : vector<1x64x192xf32> to vector<64x192xf32>
    %cst_17 = arith.constant dense<0.000000e+00> : vector<64x32xf32>
    %16 = tpu.matmul %15, %0, %cst_17 {dimension_numbers = #tpu.dot_dimension_numbers<[1], [0], [0], [1], [0, 0, 1, 1], [], []>} : vector<64x192xf32>, vector<192x32xf32>, vector<64x32xf32> -> vector<64x32xf32>
    %c2_18 = arith.constant 2 : index
    %c0_19 = arith.constant 0 : index
    %c0_20 = arith.constant 0 : index
    %17 = vector.load %arg2[%c2_18, %c0_19, %c0_20] : memref<3x32x102xf32, #tpu.memory_space<vmem>>, vector<1x32x102xf32>
    %18 = vector.shape_cast %17 : vector<1x32x102xf32> to vector<32x102xf32>
    %cst_21 = arith.constant dense<0.000000e+00> : vector<64x102xf32>
    %19 = tpu.matmul %16, %18, %cst_21 {dimension_numbers = #tpu.dot_dimension_numbers<[1], [0], [0], [1], [0, 0, 1, 1], [], []>} : vector<64x32xf32>, vector<32x102xf32>, vector<64x102xf32> -> vector<64x102xf32>
    %20 = arith.addf %13, %19 : vector<64x102xf32>
    %c1_22 = arith.constant 1 : index
    %c0_23 = arith.constant 0 : index
    %c0_24 = arith.constant 0 : index
    %21 = vector.load %arg3[%c1_22, %c0_23, %c0_24] : memref<3x102x256xf32, #tpu.memory_space<vmem>>, vector<1x102x256xf32>
    %22 = vector.shape_cast %21 : vector<1x102x256xf32> to vector<102x256xf32>
    %cst_25 = arith.constant dense<0.000000e+00> : vector<64x256xf32>
    %23 = tpu.matmul %20, %22, %cst_25 {dimension_numbers = #tpu.dot_dimension_numbers<[1], [0], [0], [1], [0, 0, 1, 1], [], []>} : vector<64x102xf32>, vector<102x256xf32>, vector<64x256xf32> -> vector<64x256xf32>
    %c0_26 = arith.constant 0 : index
    %c0_27 = arith.constant 0 : index
    %c0_28 = arith.constant 0 : index
    %24 = vector.load %arg4[%c0_26, %c0_27, %c0_28] : memref<2x64x64xf32, #tpu.memory_space<vmem>>, vector<1x64x64xf32>
    %25 = vector.shape_cast %24 : vector<1x64x64xf32> to vector<64x64xf32>
    %cst_29 = arith.constant dense<0.000000e+00> : vector<64x102xf32>
    %26 = tpu.matmul %25, %20, %cst_29 {dimension_numbers = #tpu.dot_dimension_numbers<[1], [0], [0], [1], [0, 0, 1, 1], [], []>} : vector<64x64xf32>, vector<64x102xf32>, vector<64x102xf32> -> vector<64x102xf32>
    %c0_30 = arith.constant 0 : index
    %c0_31 = arith.constant 0 : index
    %c0_32 = arith.constant 0 : index
    %27 = vector.load %arg3[%c0_30, %c0_31, %c0_32] : memref<3x102x256xf32, #tpu.memory_space<vmem>>, vector<1x102x256xf32>
    %28 = vector.shape_cast %27 : vector<1x102x256xf32> to vector<102x256xf32>
    %cst_33 = arith.constant dense<0.000000e+00> : vector<64x256xf32>
    %29 = tpu.matmul %26, %28, %cst_33 {dimension_numbers = #tpu.dot_dimension_numbers<[1], [0], [0], [1], [0, 0, 1, 1], [], []>} : vector<64x102xf32>, vector<102x256xf32>, vector<64x256xf32> -> vector<64x256xf32>
    %30 = arith.addf %23, %29 : vector<64x256xf32>
    %c1_34 = arith.constant 1 : index
    %c0_35 = arith.constant 0 : index
    %c0_36 = arith.constant 0 : index
    %31 = vector.load %arg4[%c1_34, %c0_35, %c0_36] : memref<2x64x64xf32, #tpu.memory_space<vmem>>, vector<1x64x64xf32>
    %32 = vector.shape_cast %31 : vector<1x64x64xf32> to vector<64x64xf32>
    %cst_37 = arith.constant dense<0.000000e+00> : vector<64x102xf32>
    %33 = tpu.matmul %32, %20, %cst_37 {dimension_numbers = #tpu.dot_dimension_numbers<[1], [0], [0], [1], [0, 0, 1, 1], [], []>} : vector<64x64xf32>, vector<64x102xf32>, vector<64x102xf32> -> vector<64x102xf32>
    %c2_38 = arith.constant 2 : index
    %c0_39 = arith.constant 0 : index
    %c0_40 = arith.constant 0 : index
    %34 = vector.load %arg3[%c2_38, %c0_39, %c0_40] : memref<3x102x256xf32, #tpu.memory_space<vmem>>, vector<1x102x256xf32>
    %35 = vector.shape_cast %34 : vector<1x102x256xf32> to vector<102x256xf32>
    %cst_41 = arith.constant dense<0.000000e+00> : vector<64x256xf32>
    %36 = tpu.matmul %33, %35, %cst_41 {dimension_numbers = #tpu.dot_dimension_numbers<[1], [0], [0], [1], [0, 0, 1, 1], [], []>} : vector<64x102xf32>, vector<102x256xf32>, vector<64x256xf32> -> vector<64x256xf32>
    %37 = arith.addf %30, %36 : vector<64x256xf32>
    %c0_42 = arith.constant 0 : index
    %c0_43 = arith.constant 0 : index
    %38 = vector.load %arg7[%c0_42, %c0_43] : memref<256x8xf32, #tpu.memory_space<vmem>>, vector<256x8xf32>
    %c0_44 = arith.constant 0 : index
    %c0_45 = arith.constant 0 : index
    %39 = vector.load %arg8[%c0_44, %c0_45] : memref<8x256xf32, #tpu.memory_space<vmem>>, vector<8x256xf32>
    %cst_46 = arith.constant dense<0.000000e+00> : vector<256xf32>
    %40 = vector.multi_reduction <add>, %37, %cst_46 [0] : vector<64x256xf32> to vector<256xf32>
    %41 = vector.shape_cast %40 : vector<256xf32> to vector<1x256xf32>
    %cst_47 = arith.constant dense<0.000000e+00> : vector<1x8xf32>
    %42 = tpu.matmul %41, %38, %cst_47 {dimension_numbers = #tpu.dot_dimension_numbers<[1], [0], [0], [1], [0, 0, 1, 1], [], []>} : vector<1x256xf32>, vector<256x8xf32>, vector<1x8xf32> -> vector<1x8xf32>
    %cst_48 = arith.constant 4.8828125E-4 : f32
    %43 = vector.broadcast %cst_48 : f32 to vector<1x8xf32>
    %44 = arith.mulf %42, %43 : vector<1x8xf32>
    %cst_49 = arith.constant dense<0.000000e+00> : vector<1x256xf32>
    %45 = tpu.matmul %44, %39, %cst_49 {dimension_numbers = #tpu.dot_dimension_numbers<[1], [0], [0], [1], [0, 0, 1, 1], [], []>} : vector<1x8xf32>, vector<8x256xf32>, vector<1x256xf32> -> vector<1x256xf32>
    %46 = vector.broadcast %45 : vector<1x256xf32> to vector<64x256xf32>
    %47 = arith.subf %37, %46 : vector<64x256xf32>
    %48 = arith.mulf %47, %47 : vector<64x256xf32>
    %cst_50 = arith.constant dense<0.000000e+00> : vector<256xf32>
    %49 = vector.multi_reduction <add>, %48, %cst_50 [0] : vector<64x256xf32> to vector<256xf32>
    %50 = vector.shape_cast %49 : vector<256xf32> to vector<1x256xf32>
    %cst_51 = arith.constant dense<0.000000e+00> : vector<1x8xf32>
    %51 = tpu.matmul %50, %38, %cst_51 {dimension_numbers = #tpu.dot_dimension_numbers<[1], [0], [0], [1], [0, 0, 1, 1], [], []>} : vector<1x256xf32>, vector<256x8xf32>, vector<1x8xf32> -> vector<1x8xf32>
    %cst_52 = arith.constant 4.8828125E-4 : f32
    %52 = vector.broadcast %cst_52 : f32 to vector<1x8xf32>
    %53 = arith.mulf %51, %52 : vector<1x8xf32>
    %cst_53 = arith.constant 9.99999974E-6 : f32
    %54 = vector.broadcast %cst_53 : f32 to vector<1x8xf32>
    %55 = arith.addf %53, %54 : vector<1x8xf32>
    %56 = math.rsqrt %55 : vector<1x8xf32>
    %cst_54 = arith.constant dense<0.000000e+00> : vector<1x256xf32>
    %57 = tpu.matmul %56, %39, %cst_54 {dimension_numbers = #tpu.dot_dimension_numbers<[1], [0], [0], [1], [0, 0, 1, 1], [], []>} : vector<1x8xf32>, vector<8x256xf32>, vector<1x256xf32> -> vector<1x256xf32>
    %58 = vector.broadcast %57 : vector<1x256xf32> to vector<64x256xf32>
    %59 = arith.mulf %47, %58 : vector<64x256xf32>
    %c0_55 = arith.constant 0 : index
    %c0_56 = arith.constant 0 : index
    %60 = vector.load %arg9[%c0_55, %c0_56] : memref<1x256xf32, #tpu.memory_space<vmem>>, vector<1x256xf32>
    %61 = vector.broadcast %60 : vector<1x256xf32> to vector<64x256xf32>
    %62 = arith.mulf %59, %61 : vector<64x256xf32>
    %c0_57 = arith.constant 0 : index
    %c0_58 = arith.constant 0 : index
    %63 = vector.load %arg10[%c0_57, %c0_58] : memref<1x256xf32, #tpu.memory_space<vmem>>, vector<1x256xf32>
    %64 = vector.broadcast %63 : vector<1x256xf32> to vector<64x256xf32>
    %65 = arith.addf %62, %64 : vector<64x256xf32>
    %cst_59 = arith.constant 0.000000e+00 : f32
    %66 = vector.broadcast %cst_59 : f32 to vector<64x256xf32>
    %67 = arith.maximumf %65, %66 : vector<64x256xf32>
    %c0_60 = arith.constant 0 : index
    %c0_61 = arith.constant 0 : index
    %c0_62 = arith.constant 0 : index
    %68 = vector.load %arg5[%c0_60, %c0_61, %c0_62] : memref<2x256x144xf32, #tpu.memory_space<vmem>>, vector<1x256x144xf32>
    %69 = vector.shape_cast %68 : vector<1x256x144xf32> to vector<256x144xf32>
    %cst_63 = arith.constant dense<0.000000e+00> : vector<64x144xf32>
    %70 = tpu.matmul %67, %69, %cst_63 {dimension_numbers = #tpu.dot_dimension_numbers<[1], [0], [0], [1], [0, 0, 1, 1], [], []>} : vector<64x256xf32>, vector<256x144xf32>, vector<64x144xf32> -> vector<64x144xf32>
    %c1_64 = arith.constant 1 : index
    %c0_65 = arith.constant 0 : index
    %c0_66 = arith.constant 0 : index
    %71 = vector.load %arg5[%c1_64, %c0_65, %c0_66] : memref<2x256x144xf32, #tpu.memory_space<vmem>>, vector<1x256x144xf32>
    %72 = vector.shape_cast %71 : vector<1x256x144xf32> to vector<256x144xf32>
    %cst_67 = arith.constant dense<0.000000e+00> : vector<64x144xf32>
    %73 = tpu.matmul %67, %72, %cst_67 {dimension_numbers = #tpu.dot_dimension_numbers<[1], [0], [0], [1], [0, 0, 1, 1], [], []>} : vector<64x256xf32>, vector<256x144xf32>, vector<64x144xf32> -> vector<64x144xf32>
    %74 = arith.maximumf %70, %73 : vector<64x144xf32>
    %c0_68 = arith.constant 0 : index
    %c0_69 = arith.constant 0 : index
    %c0_70 = arith.constant 0 : index
    %75 = vector.load %arg6[%c0_68, %c0_69, %c0_70] : memref<2x32x64xf32, #tpu.memory_space<vmem>>, vector<1x32x64xf32>
    %76 = vector.shape_cast %75 : vector<1x32x64xf32> to vector<32x64xf32>
    %cst_71 = arith.constant dense<0.000000e+00> : vector<32x144xf32>
    %77 = tpu.matmul %76, %74, %cst_71 {dimension_numbers = #tpu.dot_dimension_numbers<[1], [0], [0], [1], [0, 0, 1, 1], [], []>} : vector<32x64xf32>, vector<64x144xf32>, vector<32x144xf32> -> vector<32x144xf32>
    %c1_72 = arith.constant 1 : index
    %c0_73 = arith.constant 0 : index
    %c0_74 = arith.constant 0 : index
    %78 = vector.load %arg6[%c1_72, %c0_73, %c0_74] : memref<2x32x64xf32, #tpu.memory_space<vmem>>, vector<1x32x64xf32>
    %79 = vector.shape_cast %78 : vector<1x32x64xf32> to vector<32x64xf32>
    %cst_75 = arith.constant dense<0.000000e+00> : vector<32x144xf32>
    %80 = tpu.matmul %79, %74, %cst_75 {dimension_numbers = #tpu.dot_dimension_numbers<[1], [0], [0], [1], [0, 0, 1, 1], [], []>} : vector<32x64xf32>, vector<64x144xf32>, vector<32x144xf32> -> vector<32x144xf32>
    %81 = arith.maximumf %77, %80 : vector<32x144xf32>
    %c1_76 = arith.constant 1 : index
    %c0_77 = arith.constant 0 : index
    %c0_78 = arith.constant 0 : index
    %82 = vector.load %arg11[%c1_76, %c0_77, %c0_78] : memref<3x144x256xf32, #tpu.memory_space<vmem>>, vector<1x144x256xf32>
    %83 = vector.shape_cast %82 : vector<1x144x256xf32> to vector<144x256xf32>
    %cst_79 = arith.constant dense<0.000000e+00> : vector<32x256xf32>
    %84 = tpu.matmul %81, %83, %cst_79 {dimension_numbers = #tpu.dot_dimension_numbers<[1], [0], [0], [1], [0, 0, 1, 1], [], []>} : vector<32x144xf32>, vector<144x256xf32>, vector<32x256xf32> -> vector<32x256xf32>
    %c0_80 = arith.constant 0 : index
    %c0_81 = arith.constant 0 : index
    %c0_82 = arith.constant 0 : index
    %85 = vector.load %arg12[%c0_80, %c0_81, %c0_82] : memref<2x32x32xf32, #tpu.memory_space<vmem>>, vector<1x32x32xf32>
    %86 = vector.shape_cast %85 : vector<1x32x32xf32> to vector<32x32xf32>
    %cst_83 = arith.constant dense<0.000000e+00> : vector<32x144xf32>
    %87 = tpu.matmul %86, %81, %cst_83 {dimension_numbers = #tpu.dot_dimension_numbers<[1], [0], [0], [1], [0, 0, 1, 1], [], []>} : vector<32x32xf32>, vector<32x144xf32>, vector<32x144xf32> -> vector<32x144xf32>
    %c0_84 = arith.constant 0 : index
    %c0_85 = arith.constant 0 : index
    %c0_86 = arith.constant 0 : index
    %88 = vector.load %arg11[%c0_84, %c0_85, %c0_86] : memref<3x144x256xf32, #tpu.memory_space<vmem>>, vector<1x144x256xf32>
    %89 = vector.shape_cast %88 : vector<1x144x256xf32> to vector<144x256xf32>
    %cst_87 = arith.constant dense<0.000000e+00> : vector<32x256xf32>
    %90 = tpu.matmul %87, %89, %cst_87 {dimension_numbers = #tpu.dot_dimension_numbers<[1], [0], [0], [1], [0, 0, 1, 1], [], []>} : vector<32x144xf32>, vector<144x256xf32>, vector<32x256xf32> -> vector<32x256xf32>
    %91 = arith.addf %84, %90 : vector<32x256xf32>
    %c1_88 = arith.constant 1 : index
    %c0_89 = arith.constant 0 : index
    %c0_90 = arith.constant 0 : index
    %92 = vector.load %arg12[%c1_88, %c0_89, %c0_90] : memref<2x32x32xf32, #tpu.memory_space<vmem>>, vector<1x32x32xf32>
    %93 = vector.shape_cast %92 : vector<1x32x32xf32> to vector<32x32xf32>
    %cst_91 = arith.constant dense<0.000000e+00> : vector<32x144xf32>
    %94 = tpu.matmul %93, %81, %cst_91 {dimension_numbers = #tpu.dot_dimension_numbers<[1], [0], [0], [1], [0, 0, 1, 1], [], []>} : vector<32x32xf32>, vector<32x144xf32>, vector<32x144xf32> -> vector<32x144xf32>
    %c2_92 = arith.constant 2 : index
    %c0_93 = arith.constant 0 : index
    %c0_94 = arith.constant 0 : index
    %95 = vector.load %arg11[%c2_92, %c0_93, %c0_94] : memref<3x144x256xf32, #tpu.memory_space<vmem>>, vector<1x144x256xf32>
    %96 = vector.shape_cast %95 : vector<1x144x256xf32> to vector<144x256xf32>
    %cst_95 = arith.constant dense<0.000000e+00> : vector<32x256xf32>
    %97 = tpu.matmul %94, %96, %cst_95 {dimension_numbers = #tpu.dot_dimension_numbers<[1], [0], [0], [1], [0, 0, 1, 1], [], []>} : vector<32x144xf32>, vector<144x256xf32>, vector<32x256xf32> -> vector<32x256xf32>
    %98 = arith.addf %91, %97 : vector<32x256xf32>
    %c0_96 = arith.constant 0 : index
    %c0_97 = arith.constant 0 : index
    %99 = vector.load %arg15[%c0_96, %c0_97] : memref<256x16xf32, #tpu.memory_space<vmem>>, vector<256x16xf32>
    %c0_98 = arith.constant 0 : index
    %c0_99 = arith.constant 0 : index
    %100 = vector.load %arg16[%c0_98, %c0_99] : memref<16x256xf32, #tpu.memory_space<vmem>>, vector<16x256xf32>
    %cst_100 = arith.constant dense<0.000000e+00> : vector<256xf32>
    %101 = vector.multi_reduction <add>, %98, %cst_100 [0] : vector<32x256xf32> to vector<256xf32>
    %102 = vector.shape_cast %101 : vector<256xf32> to vector<1x256xf32>
    %cst_101 = arith.constant dense<0.000000e+00> : vector<1x16xf32>
    %103 = tpu.matmul %102, %99, %cst_101 {dimension_numbers = #tpu.dot_dimension_numbers<[1], [0], [0], [1], [0, 0, 1, 1], [], []>} : vector<1x256xf32>, vector<256x16xf32>, vector<1x16xf32> -> vector<1x16xf32>
    %cst_102 = arith.constant 0.001953125 : f32
    %104 = vector.broadcast %cst_102 : f32 to vector<1x16xf32>
    %105 = arith.mulf %103, %104 : vector<1x16xf32>
    %cst_103 = arith.constant dense<0.000000e+00> : vector<1x256xf32>
    %106 = tpu.matmul %105, %100, %cst_103 {dimension_numbers = #tpu.dot_dimension_numbers<[1], [0], [0], [1], [0, 0, 1, 1], [], []>} : vector<1x16xf32>, vector<16x256xf32>, vector<1x256xf32> -> vector<1x256xf32>
    %107 = vector.broadcast %106 : vector<1x256xf32> to vector<32x256xf32>
    %108 = arith.subf %98, %107 : vector<32x256xf32>
    %109 = arith.mulf %108, %108 : vector<32x256xf32>
    %cst_104 = arith.constant dense<0.000000e+00> : vector<256xf32>
    %110 = vector.multi_reduction <add>, %109, %cst_104 [0] : vector<32x256xf32> to vector<256xf32>
    %111 = vector.shape_cast %110 : vector<256xf32> to vector<1x256xf32>
    %cst_105 = arith.constant dense<0.000000e+00> : vector<1x16xf32>
    %112 = tpu.matmul %111, %99, %cst_105 {dimension_numbers = #tpu.dot_dimension_numbers<[1], [0], [0], [1], [0, 0, 1, 1], [], []>} : vector<1x256xf32>, vector<256x16xf32>, vector<1x16xf32> -> vector<1x16xf32>
    %cst_106 = arith.constant 0.001953125 : f32
    %113 = vector.broadcast %cst_106 : f32 to vector<1x16xf32>
    %114 = arith.mulf %112, %113 : vector<1x16xf32>
    %cst_107 = arith.constant 9.99999974E-6 : f32
    %115 = vector.broadcast %cst_107 : f32 to vector<1x16xf32>
    %116 = arith.addf %114, %115 : vector<1x16xf32>
    %117 = math.rsqrt %116 : vector<1x16xf32>
    %cst_108 = arith.constant dense<0.000000e+00> : vector<1x256xf32>
    %118 = tpu.matmul %117, %100, %cst_108 {dimension_numbers = #tpu.dot_dimension_numbers<[1], [0], [0], [1], [0, 0, 1, 1], [], []>} : vector<1x16xf32>, vector<16x256xf32>, vector<1x256xf32> -> vector<1x256xf32>
    %119 = vector.broadcast %118 : vector<1x256xf32> to vector<32x256xf32>
    %120 = arith.mulf %108, %119 : vector<32x256xf32>
    %c0_109 = arith.constant 0 : index
    %c0_110 = arith.constant 0 : index
    %121 = vector.load %arg17[%c0_109, %c0_110] : memref<1x256xf32, #tpu.memory_space<vmem>>, vector<1x256xf32>
    %122 = vector.broadcast %121 : vector<1x256xf32> to vector<32x256xf32>
    %123 = arith.mulf %120, %122 : vector<32x256xf32>
    %c0_111 = arith.constant 0 : index
    %c0_112 = arith.constant 0 : index
    %124 = vector.load %arg18[%c0_111, %c0_112] : memref<1x256xf32, #tpu.memory_space<vmem>>, vector<1x256xf32>
    %125 = vector.broadcast %124 : vector<1x256xf32> to vector<32x256xf32>
    %126 = arith.addf %123, %125 : vector<32x256xf32>
    %cst_113 = arith.constant 0.000000e+00 : f32
    %127 = vector.broadcast %cst_113 : f32 to vector<32x256xf32>
    %128 = arith.maximumf %126, %127 : vector<32x256xf32>
    %c0_114 = arith.constant 0 : index
    %c0_115 = arith.constant 0 : index
    %c0_116 = arith.constant 0 : index
    %129 = vector.load %arg13[%c0_114, %c0_115, %c0_116] : memref<2x256x160xf32, #tpu.memory_space<vmem>>, vector<1x256x160xf32>
    %130 = vector.shape_cast %129 : vector<1x256x160xf32> to vector<256x160xf32>
    %cst_117 = arith.constant dense<0.000000e+00> : vector<32x160xf32>
    %131 = tpu.matmul %128, %130, %cst_117 {dimension_numbers = #tpu.dot_dimension_numbers<[1], [0], [0], [1], [0, 0, 1, 1], [], []>} : vector<32x256xf32>, vector<256x160xf32>, vector<32x160xf32> -> vector<32x160xf32>
    %c1_118 = arith.constant 1 : index
    %c0_119 = arith.constant 0 : index
    %c0_120 = arith.constant 0 : index
    %132 = vector.load %arg13[%c1_118, %c0_119, %c0_120] : memref<2x256x160xf32, #tpu.memory_space<vmem>>, vector<1x256x160xf32>
    %133 = vector.shape_cast %132 : vector<1x256x160xf32> to vector<256x160xf32>
    %cst_121 = arith.constant dense<0.000000e+00> : vector<32x160xf32>
    %134 = tpu.matmul %128, %133, %cst_121 {dimension_numbers = #tpu.dot_dimension_numbers<[1], [0], [0], [1], [0, 0, 1, 1], [], []>} : vector<32x256xf32>, vector<256x160xf32>, vector<32x160xf32> -> vector<32x160xf32>
    %135 = arith.maximumf %131, %134 : vector<32x160xf32>
    %c0_122 = arith.constant 0 : index
    %c0_123 = arith.constant 0 : index
    %c0_124 = arith.constant 0 : index
    %136 = vector.load %arg14[%c0_122, %c0_123, %c0_124] : memref<2x16x32xf32, #tpu.memory_space<vmem>>, vector<1x16x32xf32>
    %137 = vector.shape_cast %136 : vector<1x16x32xf32> to vector<16x32xf32>
    %cst_125 = arith.constant dense<0.000000e+00> : vector<16x160xf32>
    %138 = tpu.matmul %137, %135, %cst_125 {dimension_numbers = #tpu.dot_dimension_numbers<[1], [0], [0], [1], [0, 0, 1, 1], [], []>} : vector<16x32xf32>, vector<32x160xf32>, vector<16x160xf32> -> vector<16x160xf32>
    %c1_126 = arith.constant 1 : index
    %c0_127 = arith.constant 0 : index
    %c0_128 = arith.constant 0 : index
    %139 = vector.load %arg14[%c1_126, %c0_127, %c0_128] : memref<2x16x32xf32, #tpu.memory_space<vmem>>, vector<1x16x32xf32>
    %140 = vector.shape_cast %139 : vector<1x16x32xf32> to vector<16x32xf32>
    %cst_129 = arith.constant dense<0.000000e+00> : vector<16x160xf32>
    %141 = tpu.matmul %140, %135, %cst_129 {dimension_numbers = #tpu.dot_dimension_numbers<[1], [0], [0], [1], [0, 0, 1, 1], [], []>} : vector<16x32xf32>, vector<32x160xf32>, vector<16x160xf32> -> vector<16x160xf32>
    %142 = arith.maximumf %138, %141 : vector<16x160xf32>
    %c1_130 = arith.constant 1 : index
    %c0_131 = arith.constant 0 : index
    %c0_132 = arith.constant 0 : index
    %143 = vector.load %arg19[%c1_130, %c0_131, %c0_132] : memref<3x160x256xf32, #tpu.memory_space<vmem>>, vector<1x160x256xf32>
    %144 = vector.shape_cast %143 : vector<1x160x256xf32> to vector<160x256xf32>
    %cst_133 = arith.constant dense<0.000000e+00> : vector<16x256xf32>
    %145 = tpu.matmul %142, %144, %cst_133 {dimension_numbers = #tpu.dot_dimension_numbers<[1], [0], [0], [1], [0, 0, 1, 1], [], []>} : vector<16x160xf32>, vector<160x256xf32>, vector<16x256xf32> -> vector<16x256xf32>
    %c0_134 = arith.constant 0 : index
    %c0_135 = arith.constant 0 : index
    %c0_136 = arith.constant 0 : index
    %146 = vector.load %arg20[%c0_134, %c0_135, %c0_136] : memref<2x16x16xf32, #tpu.memory_space<vmem>>, vector<1x16x16xf32>
    %147 = vector.shape_cast %146 : vector<1x16x16xf32> to vector<16x16xf32>
    %cst_137 = arith.constant dense<0.000000e+00> : vector<16x160xf32>
    %148 = tpu.matmul %147, %142, %cst_137 {dimension_numbers = #tpu.dot_dimension_numbers<[1], [0], [0], [1], [0, 0, 1, 1], [], []>} : vector<16x16xf32>, vector<16x160xf32>, vector<16x160xf32> -> vector<16x160xf32>
    %c0_138 = arith.constant 0 : index
    %c0_139 = arith.constant 0 : index
    %c0_140 = arith.constant 0 : index
    %149 = vector.load %arg19[%c0_138, %c0_139, %c0_140] : memref<3x160x256xf32, #tpu.memory_space<vmem>>, vector<1x160x256xf32>
    %150 = vector.shape_cast %149 : vector<1x160x256xf32> to vector<160x256xf32>
    %cst_141 = arith.constant dense<0.000000e+00> : vector<16x256xf32>
    %151 = tpu.matmul %148, %150, %cst_141 {dimension_numbers = #tpu.dot_dimension_numbers<[1], [0], [0], [1], [0, 0, 1, 1], [], []>} : vector<16x160xf32>, vector<160x256xf32>, vector<16x256xf32> -> vector<16x256xf32>
    %152 = arith.addf %145, %151 : vector<16x256xf32>
    %c1_142 = arith.constant 1 : index
    %c0_143 = arith.constant 0 : index
    %c0_144 = arith.constant 0 : index
    %153 = vector.load %arg20[%c1_142, %c0_143, %c0_144] : memref<2x16x16xf32, #tpu.memory_space<vmem>>, vector<1x16x16xf32>
    %154 = vector.shape_cast %153 : vector<1x16x16xf32> to vector<16x16xf32>
    %cst_145 = arith.constant dense<0.000000e+00> : vector<16x160xf32>
    %155 = tpu.matmul %154, %142, %cst_145 {dimension_numbers = #tpu.dot_dimension_numbers<[1], [0], [0], [1], [0, 0, 1, 1], [], []>} : vector<16x16xf32>, vector<16x160xf32>, vector<16x160xf32> -> vector<16x160xf32>
    %c2_146 = arith.constant 2 : index
    %c0_147 = arith.constant 0 : index
    %c0_148 = arith.constant 0 : index
    %156 = vector.load %arg19[%c2_146, %c0_147, %c0_148] : memref<3x160x256xf32, #tpu.memory_space<vmem>>, vector<1x160x256xf32>
    %157 = vector.shape_cast %156 : vector<1x160x256xf32> to vector<160x256xf32>
    %cst_149 = arith.constant dense<0.000000e+00> : vector<16x256xf32>
    %158 = tpu.matmul %155, %157, %cst_149 {dimension_numbers = #tpu.dot_dimension_numbers<[1], [0], [0], [1], [0, 0, 1, 1], [], []>} : vector<16x160xf32>, vector<160x256xf32>, vector<16x256xf32> -> vector<16x256xf32>
    %159 = arith.addf %152, %158 : vector<16x256xf32>
    %c0_150 = arith.constant 0 : index
    %c0_151 = arith.constant 0 : index
    %160 = vector.load %arg23[%c0_150, %c0_151] : memref<256x32xf32, #tpu.memory_space<vmem>>, vector<256x32xf32>
    %c0_152 = arith.constant 0 : index
    %c0_153 = arith.constant 0 : index
    %161 = vector.load %arg24[%c0_152, %c0_153] : memref<32x256xf32, #tpu.memory_space<vmem>>, vector<32x256xf32>
    %cst_154 = arith.constant dense<0.000000e+00> : vector<256xf32>
    %162 = vector.multi_reduction <add>, %159, %cst_154 [0] : vector<16x256xf32> to vector<256xf32>
    %163 = vector.shape_cast %162 : vector<256xf32> to vector<1x256xf32>
    %cst_155 = arith.constant dense<0.000000e+00> : vector<1x32xf32>
    %164 = tpu.matmul %163, %160, %cst_155 {dimension_numbers = #tpu.dot_dimension_numbers<[1], [0], [0], [1], [0, 0, 1, 1], [], []>} : vector<1x256xf32>, vector<256x32xf32>, vector<1x32xf32> -> vector<1x32xf32>
    %cst_156 = arith.constant 7.812500e-03 : f32
    %165 = vector.broadcast %cst_156 : f32 to vector<1x32xf32>
    %166 = arith.mulf %164, %165 : vector<1x32xf32>
    %cst_157 = arith.constant dense<0.000000e+00> : vector<1x256xf32>
    %167 = tpu.matmul %166, %161, %cst_157 {dimension_numbers = #tpu.dot_dimension_numbers<[1], [0], [0], [1], [0, 0, 1, 1], [], []>} : vector<1x32xf32>, vector<32x256xf32>, vector<1x256xf32> -> vector<1x256xf32>
    %168 = vector.broadcast %167 : vector<1x256xf32> to vector<16x256xf32>
    %169 = arith.subf %159, %168 : vector<16x256xf32>
    %170 = arith.mulf %169, %169 : vector<16x256xf32>
    %cst_158 = arith.constant dense<0.000000e+00> : vector<256xf32>
    %171 = vector.multi_reduction <add>, %170, %cst_158 [0] : vector<16x256xf32> to vector<256xf32>
    %172 = vector.shape_cast %171 : vector<256xf32> to vector<1x256xf32>
    %cst_159 = arith.constant dense<0.000000e+00> : vector<1x32xf32>
    %173 = tpu.matmul %172, %160, %cst_159 {dimension_numbers = #tpu.dot_dimension_numbers<[1], [0], [0], [1], [0, 0, 1, 1], [], []>} : vector<1x256xf32>, vector<256x32xf32>, vector<1x32xf32> -> vector<1x32xf32>
    %cst_160 = arith.constant 7.812500e-03 : f32
    %174 = vector.broadcast %cst_160 : f32 to vector<1x32xf32>
    %175 = arith.mulf %173, %174 : vector<1x32xf32>
    %cst_161 = arith.constant 9.99999974E-6 : f32
    %176 = vector.broadcast %cst_161 : f32 to vector<1x32xf32>
    %177 = arith.addf %175, %176 : vector<1x32xf32>
    %178 = math.rsqrt %177 : vector<1x32xf32>
    %cst_162 = arith.constant dense<0.000000e+00> : vector<1x256xf32>
    %179 = tpu.matmul %178, %161, %cst_162 {dimension_numbers = #tpu.dot_dimension_numbers<[1], [0], [0], [1], [0, 0, 1, 1], [], []>} : vector<1x32xf32>, vector<32x256xf32>, vector<1x256xf32> -> vector<1x256xf32>
    %180 = vector.broadcast %179 : vector<1x256xf32> to vector<16x256xf32>
    %181 = arith.mulf %169, %180 : vector<16x256xf32>
    %c0_163 = arith.constant 0 : index
    %c0_164 = arith.constant 0 : index
    %182 = vector.load %arg25[%c0_163, %c0_164] : memref<1x256xf32, #tpu.memory_space<vmem>>, vector<1x256xf32>
    %183 = vector.broadcast %182 : vector<1x256xf32> to vector<16x256xf32>
    %184 = arith.mulf %181, %183 : vector<16x256xf32>
    %c0_165 = arith.constant 0 : index
    %c0_166 = arith.constant 0 : index
    %185 = vector.load %arg26[%c0_165, %c0_166] : memref<1x256xf32, #tpu.memory_space<vmem>>, vector<1x256xf32>
    %186 = vector.broadcast %185 : vector<1x256xf32> to vector<16x256xf32>
    %187 = arith.addf %184, %186 : vector<16x256xf32>
    %cst_167 = arith.constant 0.000000e+00 : f32
    %188 = vector.broadcast %cst_167 : f32 to vector<16x256xf32>
    %189 = arith.maximumf %187, %188 : vector<16x256xf32>
    %c0_168 = arith.constant 0 : index
    %c0_169 = arith.constant 0 : index
    %c0_170 = arith.constant 0 : index
    %190 = vector.load %arg21[%c0_168, %c0_169, %c0_170] : memref<2x256x128xf32, #tpu.memory_space<vmem>>, vector<1x256x128xf32>
    %191 = vector.shape_cast %190 : vector<1x256x128xf32> to vector<256x128xf32>
    %cst_171 = arith.constant dense<0.000000e+00> : vector<16x128xf32>
    %192 = tpu.matmul %189, %191, %cst_171 {dimension_numbers = #tpu.dot_dimension_numbers<[1], [0], [0], [1], [0, 0, 1, 1], [], []>} : vector<16x256xf32>, vector<256x128xf32>, vector<16x128xf32> -> vector<16x128xf32>
    %c1_172 = arith.constant 1 : index
    %c0_173 = arith.constant 0 : index
    %c0_174 = arith.constant 0 : index
    %193 = vector.load %arg21[%c1_172, %c0_173, %c0_174] : memref<2x256x128xf32, #tpu.memory_space<vmem>>, vector<1x256x128xf32>
    %194 = vector.shape_cast %193 : vector<1x256x128xf32> to vector<256x128xf32>
    %cst_175 = arith.constant dense<0.000000e+00> : vector<16x128xf32>
    %195 = tpu.matmul %189, %194, %cst_175 {dimension_numbers = #tpu.dot_dimension_numbers<[1], [0], [0], [1], [0, 0, 1, 1], [], []>} : vector<16x256xf32>, vector<256x128xf32>, vector<16x128xf32> -> vector<16x128xf32>
    %196 = arith.maximumf %192, %195 : vector<16x128xf32>
    %c0_176 = arith.constant 0 : index
    %c0_177 = arith.constant 0 : index
    %c0_178 = arith.constant 0 : index
    %197 = vector.load %arg22[%c0_176, %c0_177, %c0_178] : memref<2x8x16xf32, #tpu.memory_space<vmem>>, vector<1x8x16xf32>
    %198 = vector.shape_cast %197 : vector<1x8x16xf32> to vector<8x16xf32>
    %cst_179 = arith.constant dense<0.000000e+00> : vector<8x128xf32>
    %199 = tpu.matmul %198, %196, %cst_179 {dimension_numbers = #tpu.dot_dimension_numbers<[1], [0], [0], [1], [0, 0, 1, 1], [], []>} : vector<8x16xf32>, vector<16x128xf32>, vector<8x128xf32> -> vector<8x128xf32>
    %c1_180 = arith.constant 1 : index
    %c0_181 = arith.constant 0 : index
    %c0_182 = arith.constant 0 : index
    %200 = vector.load %arg22[%c1_180, %c0_181, %c0_182] : memref<2x8x16xf32, #tpu.memory_space<vmem>>, vector<1x8x16xf32>
    %201 = vector.shape_cast %200 : vector<1x8x16xf32> to vector<8x16xf32>
    %cst_183 = arith.constant dense<0.000000e+00> : vector<8x128xf32>
    %202 = tpu.matmul %201, %196, %cst_183 {dimension_numbers = #tpu.dot_dimension_numbers<[1], [0], [0], [1], [0, 0, 1, 1], [], []>} : vector<8x16xf32>, vector<16x128xf32>, vector<8x128xf32> -> vector<8x128xf32>
    %203 = arith.maximumf %199, %202 : vector<8x128xf32>
    %c0_184 = arith.constant 0 : index
    %c0_185 = arith.constant 0 : index
    %204 = vector.load %arg29[%c0_184, %c0_185] : memref<1x128xf32, #tpu.memory_space<vmem>>, vector<1x128xf32>
    %c0_186 = arith.constant 0 : index
    %c0_187 = arith.constant 0 : index
    %c0_188 = arith.constant 0 : index
    %205 = vector.load %arg27[%c0_186, %c0_187, %c0_188] : memref<4x2x8xf32, #tpu.memory_space<vmem>>, vector<1x2x8xf32>
    %206 = vector.shape_cast %205 : vector<1x2x8xf32> to vector<2x8xf32>
    %cst_189 = arith.constant dense<0.000000e+00> : vector<2x128xf32>
    %207 = tpu.matmul %206, %203, %cst_189 {dimension_numbers = #tpu.dot_dimension_numbers<[1], [0], [0], [1], [0, 0, 1, 1], [], []>} : vector<2x8xf32>, vector<8x128xf32>, vector<2x128xf32> -> vector<2x128xf32>
    %c0_190 = arith.constant 0 : index
    %c0_191 = arith.constant 0 : index
    %c0_192 = arith.constant 0 : index
    %208 = vector.load %arg28[%c0_190, %c0_191, %c0_192] : memref<4x128x128xf32, #tpu.memory_space<vmem>>, vector<1x128x128xf32>
    %209 = vector.shape_cast %208 : vector<1x128x128xf32> to vector<128x128xf32>
    %cst_193 = arith.constant dense<0.000000e+00> : vector<2x128xf32>
    %210 = tpu.matmul %207, %209, %cst_193 {dimension_numbers = #tpu.dot_dimension_numbers<[1], [0], [0], [1], [0, 0, 1, 1], [], []>} : vector<2x128xf32>, vector<128x128xf32>, vector<2x128xf32> -> vector<2x128xf32>
    %211 = vector.broadcast %204 : vector<1x128xf32> to vector<2x128xf32>
    %212 = arith.addf %211, %210 : vector<2x128xf32>
    %c1_194 = arith.constant 1 : index
    %c0_195 = arith.constant 0 : index
    %c0_196 = arith.constant 0 : index
    %213 = vector.load %arg27[%c1_194, %c0_195, %c0_196] : memref<4x2x8xf32, #tpu.memory_space<vmem>>, vector<1x2x8xf32>
    %214 = vector.shape_cast %213 : vector<1x2x8xf32> to vector<2x8xf32>
    %cst_197 = arith.constant dense<0.000000e+00> : vector<2x128xf32>
    %215 = tpu.matmul %214, %203, %cst_197 {dimension_numbers = #tpu.dot_dimension_numbers<[1], [0], [0], [1], [0, 0, 1, 1], [], []>} : vector<2x8xf32>, vector<8x128xf32>, vector<2x128xf32> -> vector<2x128xf32>
    %c1_198 = arith.constant 1 : index
    %c0_199 = arith.constant 0 : index
    %c0_200 = arith.constant 0 : index
    %216 = vector.load %arg28[%c1_198, %c0_199, %c0_200] : memref<4x128x128xf32, #tpu.memory_space<vmem>>, vector<1x128x128xf32>
    %217 = vector.shape_cast %216 : vector<1x128x128xf32> to vector<128x128xf32>
    %cst_201 = arith.constant dense<0.000000e+00> : vector<2x128xf32>
    %218 = tpu.matmul %215, %217, %cst_201 {dimension_numbers = #tpu.dot_dimension_numbers<[1], [0], [0], [1], [0, 0, 1, 1], [], []>} : vector<2x128xf32>, vector<128x128xf32>, vector<2x128xf32> -> vector<2x128xf32>
    %219 = arith.addf %212, %218 : vector<2x128xf32>
    %c2_202 = arith.constant 2 : index
    %c0_203 = arith.constant 0 : index
    %c0_204 = arith.constant 0 : index
    %220 = vector.load %arg27[%c2_202, %c0_203, %c0_204] : memref<4x2x8xf32, #tpu.memory_space<vmem>>, vector<1x2x8xf32>
    %221 = vector.shape_cast %220 : vector<1x2x8xf32> to vector<2x8xf32>
    %cst_205 = arith.constant dense<0.000000e+00> : vector<2x128xf32>
    %222 = tpu.matmul %221, %203, %cst_205 {dimension_numbers = #tpu.dot_dimension_numbers<[1], [0], [0], [1], [0, 0, 1, 1], [], []>} : vector<2x8xf32>, vector<8x128xf32>, vector<2x128xf32> -> vector<2x128xf32>
    %c2_206 = arith.constant 2 : index
    %c0_207 = arith.constant 0 : index
    %c0_208 = arith.constant 0 : index
    %223 = vector.load %arg28[%c2_206, %c0_207, %c0_208] : memref<4x128x128xf32, #tpu.memory_space<vmem>>, vector<1x128x128xf32>
    %224 = vector.shape_cast %223 : vector<1x128x128xf32> to vector<128x128xf32>
    %cst_209 = arith.constant dense<0.000000e+00> : vector<2x128xf32>
    %225 = tpu.matmul %222, %224, %cst_209 {dimension_numbers = #tpu.dot_dimension_numbers<[1], [0], [0], [1], [0, 0, 1, 1], [], []>} : vector<2x128xf32>, vector<128x128xf32>, vector<2x128xf32> -> vector<2x128xf32>
    %226 = arith.addf %219, %225 : vector<2x128xf32>
    %c3 = arith.constant 3 : index
    %c0_210 = arith.constant 0 : index
    %c0_211 = arith.constant 0 : index
    %227 = vector.load %arg27[%c3, %c0_210, %c0_211] : memref<4x2x8xf32, #tpu.memory_space<vmem>>, vector<1x2x8xf32>
    %228 = vector.shape_cast %227 : vector<1x2x8xf32> to vector<2x8xf32>
    %cst_212 = arith.constant dense<0.000000e+00> : vector<2x128xf32>
    %229 = tpu.matmul %228, %203, %cst_212 {dimension_numbers = #tpu.dot_dimension_numbers<[1], [0], [0], [1], [0, 0, 1, 1], [], []>} : vector<2x8xf32>, vector<8x128xf32>, vector<2x128xf32> -> vector<2x128xf32>
    %c3_213 = arith.constant 3 : index
    %c0_214 = arith.constant 0 : index
    %c0_215 = arith.constant 0 : index
    %230 = vector.load %arg28[%c3_213, %c0_214, %c0_215] : memref<4x128x128xf32, #tpu.memory_space<vmem>>, vector<1x128x128xf32>
    %231 = vector.shape_cast %230 : vector<1x128x128xf32> to vector<128x128xf32>
    %cst_216 = arith.constant dense<0.000000e+00> : vector<2x128xf32>
    %232 = tpu.matmul %229, %231, %cst_216 {dimension_numbers = #tpu.dot_dimension_numbers<[1], [0], [0], [1], [0, 0, 1, 1], [], []>} : vector<2x128xf32>, vector<128x128xf32>, vector<2x128xf32> -> vector<2x128xf32>
    %233 = arith.addf %226, %232 : vector<2x128xf32>
    %cst_217 = arith.constant 0.000000e+00 : f32
    %234 = vector.broadcast %cst_217 : f32 to vector<2x128xf32>
    %235 = arith.maximumf %233, %234 : vector<2x128xf32>
    %c0_218 = arith.constant 0 : index
    %c0_219 = arith.constant 0 : index
    %236 = vector.load %arg30[%c0_218, %c0_219] : memref<128x10xf32, #tpu.memory_space<vmem>>, vector<128x10xf32>
    %cst_220 = arith.constant dense<0.000000e+00> : vector<2x10xf32>
    %237 = tpu.matmul %235, %236, %cst_220 {dimension_numbers = #tpu.dot_dimension_numbers<[1], [0], [0], [1], [0, 0, 1, 1], [], []>} : vector<2x128xf32>, vector<128x10xf32>, vector<2x10xf32> -> vector<2x10xf32>
    %c0_221 = arith.constant 0 : index
    %c0_222 = arith.constant 0 : index
    %238 = vector.load %arg31[%c0_221, %c0_222] : memref<1x10xf32, #tpu.memory_space<vmem>>, vector<1x10xf32>
    %239 = vector.broadcast %238 : vector<1x10xf32> to vector<2x10xf32>
    %240 = arith.addf %237, %239 : vector<2x10xf32>
    %cst_223 = arith.constant 0.000000e+00 : f32
    %241 = vector.broadcast %cst_223 : f32 to vector<2x10xf32>
    %242 = arith.maximumf %240, %241 : vector<2x10xf32>
    %c0_224 = arith.constant 0 : index
    %c0_225 = arith.constant 0 : index
    %243 = vector.load %arg32[%c0_224, %c0_225] : memref<2x10xf32, #tpu.memory_space<vmem>>, vector<2x10xf32>
    tpu.vector_store %arg32[%c0_224, %c0_225], %242 {strides = array<i32>} : memref<2x10xf32, #tpu.memory_space<vmem>>, vector<2x10xf32>,
    return
  }
}

</mosaic_0001>

<llo_original>
// kernel: tpu_custom_call.1
$region0: #{tpu_custom_call.1}
  #allocation0 [shape = 'u32[]', space=smem, size = 0x4, offset = 0x4, fixed_abs, tag = 'smem constant byte address 0x4 - core index']
  #allocation1 [shape = 'u32[72,128]{1,0:T(1,128)}', space=vmem, size = 0x9000, scoped, tag = 'internal scratch']
  %s0 = inlined_call_operand.smem [shape: u32[33], index: -1, kind: input, shape index: {}]
  %s1 = sld [smem:[%s0]]
  %s2 = scalar_lea.smem %s0, 1
  %s3 = sld [smem:[%s2]]
  %s4 = scalar_lea.smem %s0, 2
  %s5 = sld [smem:[%s4]]
  %s6 = scalar_lea.smem %s0, 3
  %s7 = sld [smem:[%s6]]
  %s8 = scalar_lea.smem %s0, 4
  %s9 = sld [smem:[%s8]]
  %s10 = scalar_lea.smem %s0, 5
  %s11 = sld [smem:[%s10]]
  %s12 = scalar_lea.smem %s0, 6
  %s13 = sld [smem:[%s12]]
  %s14 = scalar_lea.smem %s0, 7
  %s15 = sld [smem:[%s14]]
  %s16 = scalar_lea.smem %s0, 8
  %s17 = sld [smem:[%s16]]
  %s18 = scalar_lea.smem %s0, 9
  %s19 = sld [smem:[%s18]]
  %s20 = scalar_lea.smem %s0, 10
  %s21 = sld [smem:[%s20]]
  %s22 = scalar_lea.smem %s0, 11
  %s23 = sld [smem:[%s22]]
  %s24 = scalar_lea.smem %s0, 12
  %s25 = sld [smem:[%s24]]
  %s26 = scalar_lea.smem %s0, 13
  %s27 = sld [smem:[%s26]]
  %s28 = scalar_lea.smem %s0, 14
  %s29 = sld [smem:[%s28]]
  %s30 = scalar_lea.smem %s0, 15
  %s31 = sld [smem:[%s30]]
  %s32 = scalar_lea.smem %s0, 16
  %s33 = sld [smem:[%s32]]
  %s34 = scalar_lea.smem %s0, 17
  %s35 = sld [smem:[%s34]]
  %s36 = scalar_lea.smem %s0, 18
  %s37 = sld [smem:[%s36]]
  %s38 = scalar_lea.smem %s0, 19
  %s39 = sld [smem:[%s38]]
  %s40 = scalar_lea.smem %s0, 20
  %s41 = sld [smem:[%s40]]
  %s42 = scalar_lea.smem %s0, 21
  %s43 = sld [smem:[%s42]]
  %s44 = scalar_lea.smem %s0, 22
  %s45 = sld [smem:[%s44]]
  %s46 = scalar_lea.smem %s0, 23
  %s47 = sld [smem:[%s46]]
  %s48 = scalar_lea.smem %s0, 24
  %s49 = sld [smem:[%s48]]
  %s50 = scalar_lea.smem %s0, 25
  %s51 = sld [smem:[%s50]]
  %s52 = scalar_lea.smem %s0, 26
  %s53 = sld [smem:[%s52]]
  %s54 = scalar_lea.smem %s0, 27
  %s55 = sld [smem:[%s54]]
  %s56 = scalar_lea.smem %s0, 28
  %s57 = sld [smem:[%s56]]
  %s58 = scalar_lea.smem %s0, 29
  %s59 = sld [smem:[%s58]]
  %s60 = scalar_lea.smem %s0, 30
  %s61 = sld [smem:[%s60]]
  %s62 = scalar_lea.smem %s0, 31
  %s63 = sld [smem:[%s62]]
  %s64 = scalar_lea.smem %s0, 32
  %s65 = sld [smem:[%s64]]
  %s66 = sld [smem:[#allocation0]]
  $region214: #{tpu_custom_call.1} parent=0
    _
  %s68 = ssub.s32 1, %s66
  %s69 = scalar_select 0, %s68, %s66
  $region1: #{tpu_custom_call.1} parent=0
    #allocation2 [shape = 'u8[196608]{0}', space=vmem, size = 0x30000, scoped, tag = 'input window, operand 1, single buffered']
    #allocation3 [shape = 's32[1]{0}', space=sflag, size = 0x4, scoped, tag = 'scoped memory for tpu_custom_call.1']
    #allocation4 [shape = 's32[1]{0}', space=sflag, size = 0x4, scoped, tag = 'scoped memory for tpu_custom_call.1']
    #allocation5 [shape = 'u8[49152]{0}', space=vmem, size = 0xc000, scoped, tag = 'input window, operand 2, single buffered']
    #allocation6 [shape = 's32[1]{0}', space=sflag, size = 0x4, scoped, tag = 'scoped memory for tpu_custom_call.1']
    #allocation7 [shape = 'u8[8192]{0}', space=vmem, size = 0x2000, scoped, tag = 'input window, operand 8, single buffered']
    #allocation8 [shape = 'u8[1024]{0}', space=vmem, size = 0x400, scoped, tag = 'input window, operand 9, single buffered']
    #allocation9 [shape = 's32[1]{0}', space=sflag, size = 0x4, scoped, tag = 'scoped memory for tpu_custom_call.1']
    #allocation10 [shape = 'u8[1024]{0}', space=vmem, size = 0x400, scoped, tag = 'input window, operand 10, single buffered']
    #allocation11 [shape = 'u8[32768]{0}', space=vmem, size = 0x8000, scoped, tag = 'input window, operand 12, single buffered']
    #allocation12 [shape = 's32[1]{0}', space=sflag, size = 0x4, scoped, tag = 'scoped memory for tpu_custom_call.1']
    #allocation13 [shape = 'u8[16384]{0}', space=vmem, size = 0x4000, scoped, tag = 'input window, operand 14, single buffered']
    #allocation14 [shape = 'u8[16384]{0}', space=vmem, size = 0x4000, scoped, tag = 'input window, operand 16, single buffered']
    #allocation15 [shape = 's32[1]{0}', space=sflag, size = 0x4, scoped, tag = 'scoped memory for tpu_custom_call.1']
    #allocation16 [shape = 'u8[1024]{0}', space=vmem, size = 0x400, scoped, tag = 'input window, operand 17, single buffered']
    #allocation17 [shape = 'u8[1024]{0}', space=vmem, size = 0x400, scoped, tag = 'input window, operand 18, single buffered']
    #allocation18 [shape = 's32[1]{0}', space=sflag, size = 0x4, scoped, tag = 'scoped memory for tpu_custom_call.1']
    #allocation19 [shape = 'u8[16384]{0}', space=vmem, size = 0x4000, scoped, tag = 'input window, operand 20, single buffered']
    #allocation20 [shape = 'u8[8192]{0}', space=vmem, size = 0x2000, scoped, tag = 'input window, operand 22, single buffered']
    #allocation21 [shape = 's32[1]{0}', space=sflag, size = 0x4, scoped, tag = 'scoped memory for tpu_custom_call.1']
    #allocation22 [shape = 'u8[32768]{0}', space=vmem, size = 0x8000, scoped, tag = 'input window, operand 24, single buffered']
    #allocation23 [shape = 'u8[1024]{0}', space=vmem, size = 0x400, scoped, tag = 'input window, operand 25, single buffered']
    #allocation24 [shape = 's32[1]{0}', space=sflag, size = 0x4, scoped, tag = 'scoped memory for tpu_custom_call.1']
    #allocation25 [shape = 'u8[1024]{0}', space=vmem, size = 0x400, scoped, tag = 'input window, operand 26, single buffered']
    #allocation26 [shape = 'u8[4096]{0}', space=vmem, size = 0x1000, scoped, tag = 'input window, operand 27, single buffered']
    #allocation27 [shape = 's32[1]{0}', space=sflag, size = 0x4, scoped, tag = 'scoped memory for tpu_custom_call.1']
    #allocation28 [shape = 'u8[262144]{0}', space=vmem, size = 0x40000, scoped, tag = 'input window, operand 28, single buffered']
    #allocation29 [shape = 'u8[512]{0}', space=vmem, size = 0x400, scoped, tag = 'input window, operand 29, single buffered']
    #allocation30 [shape = 's32[1]{0}', space=sflag, size = 0x4, scoped, tag = 'scoped memory for tpu_custom_call.1']
    #allocation31 [shape = 'u8[512]{0}', space=vmem, size = 0x400, scoped, tag = 'input window, operand 31, single buffered']
    #allocation32 [shape = 'u8[1024]{0}', space=vmem, size = 0x400, scoped, tag = 'output window, operand 0, single buffered']
    %70 = vsyncpa [#allocation3], 0
    %71 = vsyncpa [#allocation6], 0
    %72 = vsyncpa [#allocation9], 0
    %73 = vsyncpa [#allocation12], 0
    %74 = vsyncpa [#allocation15], 0
    %75 = vsyncpa [#allocation18], 0
    %76 = vsyncpa [#allocation21], 0
    %77 = vsyncpa [#allocation24], 0
    %78 = vsyncpa [#allocation27], 0
    %79 = vsyncpa [#allocation30], 0
    %80 = vsyncpa [#allocation4], 0
    // Predicated region
    $region2: #{tpu_custom_call.1} parent=1 // pred_check
      _
    $region3: #{tpu_custom_call.1} parent=1 // pred_check_branch
      %82 = sbr.rel (0) target = $region5
    $region4: #{tpu_custom_call.1} parent=1 // pred_region
      _
    $region5: #{tpu_custom_call.1} parent=1 // pred_fallthru
      _
    // Predicated region
    $region6: #{tpu_custom_call.1} parent=1 // pred_check
      _
    $region7: #{tpu_custom_call.1} parent=1 // pred_check_branch
      %84 = sbr.rel (0) target = $region9
    $region8: #{tpu_custom_call.1} parent=1 // pred_region
      %86 = vsyncadd [#allocation3], 0
      %s87 = sshll.u32 %s3, 4
      %s88 = int_to_ptr.hbm [resolvable:$true] %s87
      %s89 = sshll.u32 [#allocation2], 4
      %s90 = int_to_ptr.vmem [resolvable:$true] %s89
      %95 = dma.hbm_to_vmem [thread:$0]  %s88, 6144, %s90, [#allocation3], 256, 256, 16
    $region9: #{tpu_custom_call.1} parent=1 // pred_fallthru
      _
    // Predicated region
    $region10: #{tpu_custom_call.1} parent=1 // pred_check
      _
    $region11: #{tpu_custom_call.1} parent=1 // pred_check_branch
      %97 = sbr.rel (0) target = $region13
    $region12: #{tpu_custom_call.1} parent=1 // pred_region
      %99 = vsyncadd [#allocation6], 0
      %s100 = sshll.u32 %s5, 4
      %s101 = int_to_ptr.hbm [resolvable:$true] %s100
      %s102 = sshll.u32 [#allocation5], 4
      %s103 = int_to_ptr.vmem [resolvable:$true] %s102
      %108 = dma.hbm_to_vmem [thread:$0]  %s101, 1536, %s103, [#allocation6], 128, 128, 8
    $region13: #{tpu_custom_call.1} parent=1 // pred_fallthru
      _
    // Predicated region
    $region14: #{tpu_custom_call.1} parent=1 // pred_check
      _
    $region15: #{tpu_custom_call.1} parent=1 // pred_check_branch
      %110 = sbr.rel (0) target = $region17
    $region16: #{tpu_custom_call.1} parent=1 // pred_region
      _
    $region17: #{tpu_custom_call.1} parent=1 // pred_fallthru
      _
    // Predicated region
    $region18: #{tpu_custom_call.1} parent=1 // pred_check
      _
    $region19: #{tpu_custom_call.1} parent=1 // pred_check_branch
      %112 = sbr.rel (0) target = $region21
    $region20: #{tpu_custom_call.1} parent=1 // pred_region
      _
    $region21: #{tpu_custom_call.1} parent=1 // pred_fallthru
      _
    // Predicated region
    $region22: #{tpu_custom_call.1} parent=1 // pred_check
      _
    $region23: #{tpu_custom_call.1} parent=1 // pred_check_branch
      %114 = sbr.rel (0) target = $region25
    $region24: #{tpu_custom_call.1} parent=1 // pred_region
      _
    $region25: #{tpu_custom_call.1} parent=1 // pred_fallthru
      _
    // Predicated region
    $region26: #{tpu_custom_call.1} parent=1 // pred_check
      _
    $region27: #{tpu_custom_call.1} parent=1 // pred_check_branch
      %116 = sbr.rel (0) target = $region29
    $region28: #{tpu_custom_call.1} parent=1 // pred_region
      _
    $region29: #{tpu_custom_call.1} parent=1 // pred_fallthru
      _
    // Predicated region
    $region30: #{tpu_custom_call.1} parent=1 // pred_check
      _
    $region31: #{tpu_custom_call.1} parent=1 // pred_check_branch
      %118 = sbr.rel (0) target = $region33
    $region32: #{tpu_custom_call.1} parent=1 // pred_region
      _
    $region33: #{tpu_custom_call.1} parent=1 // pred_fallthru
      _
    // Predicated region
    $region34: #{tpu_custom_call.1} parent=1 // pred_check
      _
    $region35: #{tpu_custom_call.1} parent=1 // pred_check_branch
      %120 = sbr.rel (0) target = $region37
    $region36: #{tpu_custom_call.1} parent=1 // pred_region
      %122 = vsyncadd [#allocation6], 0
      %s124 = sshll.u32 %s17, 4
      %s125 = int_to_ptr.hbm [resolvable:$true] %s124
      %s126 = sshll.u32 [#allocation7], 4
      %s127 = int_to_ptr.vmem [resolvable:$true] %s126
      %129 = dma.hbm_to_vmem [thread:$0]  %s125, 256, %s127, [#allocation6]
    $region37: #{tpu_custom_call.1} parent=1 // pred_fallthru
      _
    // Predicated region
    $region38: #{tpu_custom_call.1} parent=1 // pred_check
      _
    $region39: #{tpu_custom_call.1} parent=1 // pred_check_branch
      %131 = sbr.rel (0) target = $region41
    $region40: #{tpu_custom_call.1} parent=1 // pred_region
      %133 = vsyncadd [#allocation9], 0
      %s135 = sshll.u32 %s19, 4
      %s136 = int_to_ptr.hbm [resolvable:$true] %s135
      %s137 = sshll.u32 [#allocation8], 4
      %s138 = int_to_ptr.vmem [resolvable:$true] %s137
      %140 = dma.hbm_to_vmem [thread:$0]  %s136, 32, %s138, [#allocation9]
    $region41: #{tpu_custom_call.1} parent=1 // pred_fallthru
      _
    // Predicated region
    $region42: #{tpu_custom_call.1} parent=1 // pred_check
      _
    $region43: #{tpu_custom_call.1} parent=1 // pred_check_branch
      %142 = sbr.rel (0) target = $region45
    $region44: #{tpu_custom_call.1} parent=1 // pred_region
      %144 = vsyncadd [#allocation9], 0
      %s146 = sshll.u32 %s21, 4
      %s147 = int_to_ptr.hbm [resolvable:$true] %s146
      %s148 = sshll.u32 [#allocation10], 4
      %s149 = int_to_ptr.vmem [resolvable:$true] %s148
      %151 = dma.hbm_to_vmem [thread:$0]  %s147, 32, %s149, [#allocation9]
    $region45: #{tpu_custom_call.1} parent=1 // pred_fallthru
      _
    // Predicated region
    $region46: #{tpu_custom_call.1} parent=1 // pred_check
      _
    $region47: #{tpu_custom_call.1} parent=1 // pred_check_branch
      %153 = sbr.rel (0) target = $region49
    $region48: #{tpu_custom_call.1} parent=1 // pred_region
      _
    $region49: #{tpu_custom_call.1} parent=1 // pred_fallthru
      _
    // Predicated region
    $region50: #{tpu_custom_call.1} parent=1 // pred_check
      _
    $region51: #{tpu_custom_call.1} parent=1 // pred_check_branch
      %155 = sbr.rel (0) target = $region53
    $region52: #{tpu_custom_call.1} parent=1 // pred_region
      %157 = vsyncadd [#allocation12], 0
      %s158 = sshll.u32 %s25, 4
      %s159 = int_to_ptr.hbm [resolvable:$true] %s158
      %s160 = sshll.u32 [#allocation11], 4
      %s161 = int_to_ptr.vmem [resolvable:$true] %s160
      %166 = dma.hbm_to_vmem [thread:$0]  %s159, 1024, %s161, [#allocation12], 128, 128, 8
    $region53: #{tpu_custom_call.1} parent=1 // pred_fallthru
      _
    // Predicated region
    $region54: #{tpu_custom_call.1} parent=1 // pred_check
      _
    $region55: #{tpu_custom_call.1} parent=1 // pred_check_branch
      %168 = sbr.rel (0) target = $region57
    $region56: #{tpu_custom_call.1} parent=1 // pred_region
      _
    $region57: #{tpu_custom_call.1} parent=1 // pred_fallthru
      _
    // Predicated region
    $region58: #{tpu_custom_call.1} parent=1 // pred_check
      _
    $region59: #{tpu_custom_call.1} parent=1 // pred_check_branch
      %170 = sbr.rel (0) target = $region61
    $region60: #{tpu_custom_call.1} parent=1 // pred_region
      %172 = vsyncadd [#allocation12], 0
      %s173 = sshll.u32 %s29, 4
      %s174 = int_to_ptr.hbm [resolvable:$true] %s173
      %s175 = sshll.u32 [#allocation13], 4
      %s176 = int_to_ptr.vmem [resolvable:$true] %s175
      %181 = dma.hbm_to_vmem [thread:$0]  %s174, 512, %s176, [#allocation12], 128, 128, 8
    $region61: #{tpu_custom_call.1} parent=1 // pred_fallthru
      _
    // Predicated region
    $region62: #{tpu_custom_call.1} parent=1 // pred_check
      _
    $region63: #{tpu_custom_call.1} parent=1 // pred_check_branch
      %183 = sbr.rel (0) target = $region65
    $region64: #{tpu_custom_call.1} parent=1 // pred_region
      _
    $region65: #{tpu_custom_call.1} parent=1 // pred_fallthru
      _
    // Predicated region
    $region66: #{tpu_custom_call.1} parent=1 // pred_check
      _
    $region67: #{tpu_custom_call.1} parent=1 // pred_check_branch
      %185 = sbr.rel (0) target = $region69
    $region68: #{tpu_custom_call.1} parent=1 // pred_region
      %187 = vsyncadd [#allocation15], 0
      %s188 = sshll.u32 %s33, 4
      %s189 = int_to_ptr.hbm [resolvable:$true] %s188
      %s190 = sshll.u32 [#allocation14], 4
      %s191 = int_to_ptr.vmem [resolvable:$true] %s190
      %196 = dma.hbm_to_vmem [thread:$0]  %s189, 512, %s191, [#allocation15], 256, 256, 16
    $region69: #{tpu_custom_call.1} parent=1 // pred_fallthru
      _
    // Predicated region
    $region70: #{tpu_custom_call.1} parent=1 // pred_check
      _
    $region71: #{tpu_custom_call.1} parent=1 // pred_check_branch
      %198 = sbr.rel (0) target = $region73
    $region72: #{tpu_custom_call.1} parent=1 // pred_region
      %200 = vsyncadd [#allocation15], 0
      %s202 = sshll.u32 %s35, 4
      %s203 = int_to_ptr.hbm [resolvable:$true] %s202
      %s204 = sshll.u32 [#allocation16], 4
      %s205 = int_to_ptr.vmem [resolvable:$true] %s204
      %207 = dma.hbm_to_vmem [thread:$0]  %s203, 32, %s205, [#allocation15]
    $region73: #{tpu_custom_call.1} parent=1 // pred_fallthru
      _
    // Predicated region
    $region74: #{tpu_custom_call.1} parent=1 // pred_check
      _
    $region75: #{tpu_custom_call.1} parent=1 // pred_check_branch
      %209 = sbr.rel (0) target = $region77
    $region76: #{tpu_custom_call.1} parent=1 // pred_region
      %211 = vsyncadd [#allocation18], 0
      %s213 = sshll.u32 %s37, 4
      %s214 = int_to_ptr.hbm [resolvable:$true] %s213
      %s215 = sshll.u32 [#allocation17], 4
      %s216 = int_to_ptr.vmem [resolvable:$true] %s215
      %218 = dma.hbm_to_vmem [thread:$0]  %s214, 32, %s216, [#allocation18]
    $region77: #{tpu_custom_call.1} parent=1 // pred_fallthru
      _
    // Predicated region
    $region78: #{tpu_custom_call.1} parent=1 // pred_check
      _
    $region79: #{tpu_custom_call.1} parent=1 // pred_check_branch
      %220 = sbr.rel (0) target = $region81
    $region80: #{tpu_custom_call.1} parent=1 // pred_region
      _
    $region81: #{tpu_custom_call.1} parent=1 // pred_fallthru
      _
    // Predicated region
    $region82: #{tpu_custom_call.1} parent=1 // pred_check
      _
    $region83: #{tpu_custom_call.1} parent=1 // pred_check_branch
      %222 = sbr.rel (0) target = $region85
    $region84: #{tpu_custom_call.1} parent=1 // pred_region
      %224 = vsyncadd [#allocation18], 0
      %s225 = sshll.u32 %s41, 4
      %s226 = int_to_ptr.hbm [resolvable:$true] %s225
      %s227 = sshll.u32 [#allocation19], 4
      %s228 = int_to_ptr.vmem [resolvable:$true] %s227
      %233 = dma.hbm_to_vmem [thread:$0]  %s226, 512, %s228, [#allocation18], 128, 128, 8
    $region85: #{tpu_custom_call.1} parent=1 // pred_fallthru
      _
    // Predicated region
    $region86: #{tpu_custom_call.1} parent=1 // pred_check
      _
    $region87: #{tpu_custom_call.1} parent=1 // pred_check_branch
      %235 = sbr.rel (0) target = $region89
    $region88: #{tpu_custom_call.1} parent=1 // pred_region
      _
    $region89: #{tpu_custom_call.1} parent=1 // pred_fallthru
      _
    // Predicated region
    $region90: #{tpu_custom_call.1} parent=1 // pred_check
      _
    $region91: #{tpu_custom_call.1} parent=1 // pred_check_branch
      %237 = sbr.rel (0) target = $region93
    $region92: #{tpu_custom_call.1} parent=1 // pred_region
      %239 = vsyncadd [#allocation21], 0
      %s240 = sshll.u32 %s45, 4
      %s241 = int_to_ptr.hbm [resolvable:$true] %s240
      %s242 = sshll.u32 [#allocation20], 4
      %s243 = int_to_ptr.vmem [resolvable:$true] %s242
      %248 = dma.hbm_to_vmem [thread:$0]  %s241, 256, %s243, [#allocation21], 128, 128, 8
    $region93: #{tpu_custom_call.1} parent=1 // pred_fallthru
      _
    // Predicated region
    $region94: #{tpu_custom_call.1} parent=1 // pred_check
      _
    $region95: #{tpu_custom_call.1} parent=1 // pred_check_branch
      %250 = sbr.rel (0) target = $region97
    $region96: #{tpu_custom_call.1} parent=1 // pred_region
      _
    $region97: #{tpu_custom_call.1} parent=1 // pred_fallthru
      _
    // Predicated region
    $region98: #{tpu_custom_call.1} parent=1 // pred_check
      _
    $region99: #{tpu_custom_call.1} parent=1 // pred_check_branch
      %252 = sbr.rel (0) target = $region101
    $region100: #{tpu_custom_call.1} parent=1 // pred_region
      %254 = vsyncadd [#allocation21], 0
      %s255 = sshll.u32 %s49, 4
      %s256 = int_to_ptr.hbm [resolvable:$true] %s255
      %s257 = sshll.u32 [#allocation22], 4
      %s258 = int_to_ptr.vmem [resolvable:$true] %s257
      %263 = dma.hbm_to_vmem [thread:$0]  %s256, 1024, %s258, [#allocation21], 256, 256, 16
    $region101: #{tpu_custom_call.1} parent=1 // pred_fallthru
      _
    // Predicated region
    $region102: #{tpu_custom_call.1} parent=1 // pred_check
      _
    $region103: #{tpu_custom_call.1} parent=1 // pred_check_branch
      %265 = sbr.rel (0) target = $region105
    $region104: #{tpu_custom_call.1} parent=1 // pred_region
      %267 = vsyncadd [#allocation24], 0
      %s269 = sshll.u32 %s51, 4
      %s270 = int_to_ptr.hbm [resolvable:$true] %s269
      %s271 = sshll.u32 [#allocation23], 4
      %s272 = int_to_ptr.vmem [resolvable:$true] %s271
      %274 = dma.hbm_to_vmem [thread:$0]  %s270, 32, %s272, [#allocation24]
    $region105: #{tpu_custom_call.1} parent=1 // pred_fallthru
      _
    // Predicated region
    $region106: #{tpu_custom_call.1} parent=1 // pred_check
      _
    $region107: #{tpu_custom_call.1} parent=1 // pred_check_branch
      %276 = sbr.rel (0) target = $region109
    $region108: #{tpu_custom_call.1} parent=1 // pred_region
      %278 = vsyncadd [#allocation24], 0
      %s280 = sshll.u32 %s53, 4
      %s281 = int_to_ptr.hbm [resolvable:$true] %s280
      %s282 = sshll.u32 [#allocation25], 4
      %s283 = int_to_ptr.vmem [resolvable:$true] %s282
      %285 = dma.hbm_to_vmem [thread:$0]  %s281, 32, %s283, [#allocation24]
    $region109: #{tpu_custom_call.1} parent=1 // pred_fallthru
      _
    // Predicated region
    $region110: #{tpu_custom_call.1} parent=1 // pred_check
      _
    $region111: #{tpu_custom_call.1} parent=1 // pred_check_branch
      %287 = sbr.rel (0) target = $region113
    $region112: #{tpu_custom_call.1} parent=1 // pred_region
      %289 = vsyncadd [#allocation27], 0
      %s290 = sshll.u32 %s55, 4
      %s291 = int_to_ptr.hbm [resolvable:$true] %s290
      %s292 = sshll.u32 [#allocation26], 4
      %s293 = int_to_ptr.vmem [resolvable:$true] %s292
      %298 = dma.hbm_to_vmem [thread:$0]  %s291, 128, %s293, [#allocation27], 32, 32, 2
    $region113: #{tpu_custom_call.1} parent=1 // pred_fallthru
      _
    // Predicated region
    $region114: #{tpu_custom_call.1} parent=1 // pred_check
      _
    $region115: #{tpu_custom_call.1} parent=1 // pred_check_branch
      %300 = sbr.rel (0) target = $region117
    $region116: #{tpu_custom_call.1} parent=1 // pred_region
      %302 = vsyncadd [#allocation27], 0
      %s303 = sshll.u32 %s57, 4
      %s304 = int_to_ptr.hbm [resolvable:$true] %s303
      %s305 = sshll.u32 [#allocation28], 4
      %s306 = int_to_ptr.vmem [resolvable:$true] %s305
      %311 = dma.hbm_to_vmem [thread:$0]  %s304, 8192, %s306, [#allocation27], 128, 128, 8
    $region117: #{tpu_custom_call.1} parent=1 // pred_fallthru
      _
    // Predicated region
    $region118: #{tpu_custom_call.1} parent=1 // pred_check
      _
    $region119: #{tpu_custom_call.1} parent=1 // pred_check_branch
      %313 = sbr.rel (0) target = $region121
    $region120: #{tpu_custom_call.1} parent=1 // pred_region
      %315 = vsyncadd [#allocation30], 0
      %s317 = sshll.u32 %s59, 4
      %s318 = int_to_ptr.hbm [resolvable:$true] %s317
      %s319 = sshll.u32 [#allocation29], 4
      %s320 = int_to_ptr.vmem [resolvable:$true] %s319
      %322 = dma.hbm_to_vmem [thread:$0]  %s318, 16, %s320, [#allocation30]
    $region121: #{tpu_custom_call.1} parent=1 // pred_fallthru
      _
    // Predicated region
    $region122: #{tpu_custom_call.1} parent=1 // pred_check
      _
    $region123: #{tpu_custom_call.1} parent=1 // pred_check_branch
      %324 = sbr.rel (0) target = $region125
    $region124: #{tpu_custom_call.1} parent=1 // pred_region
      _
    $region125: #{tpu_custom_call.1} parent=1 // pred_fallthru
      _
    // Predicated region
    $region126: #{tpu_custom_call.1} parent=1 // pred_check
      _
    $region127: #{tpu_custom_call.1} parent=1 // pred_check_branch
      %326 = sbr.rel (0) target = $region129
    $region128: #{tpu_custom_call.1} parent=1 // pred_region
      %328 = vsyncadd [#allocation30], 0
      %s330 = sshll.u32 %s63, 4
      %s331 = int_to_ptr.hbm [resolvable:$true] %s330
      %s332 = sshll.u32 [#allocation31], 4
      %s333 = int_to_ptr.vmem [resolvable:$true] %s332
      %335 = dma.hbm_to_vmem [thread:$0]  %s331, 16, %s333, [#allocation30]
    $region129: #{tpu_custom_call.1} parent=1 // pred_fallthru
      _
    // Predicated region
    $region130: #{tpu_custom_call.1} parent=1 // pred_check
      _
    $region131: #{tpu_custom_call.1} parent=1 // pred_check_branch
      %337 = sbr.rel (0) target = $region133
    $region132: #{tpu_custom_call.1} parent=1 // pred_region
      %339 = dma.done [#allocation3], 6144
    $region133: #{tpu_custom_call.1} parent=1 // pred_fallthru
      _
    // Predicated region
    $region134: #{tpu_custom_call.1} parent=1 // pred_check
      _
    $region135: #{tpu_custom_call.1} parent=1 // pred_check_branch
      %341 = sbr.rel (0) target = $region137
    $region136: #{tpu_custom_call.1} parent=1 // pred_region
      %343 = dma.done [#allocation6], 1536
    $region137: #{tpu_custom_call.1} parent=1 // pred_fallthru
      _
    // Predicated region
    $region138: #{tpu_custom_call.1} parent=1 // pred_check
      _
    $region139: #{tpu_custom_call.1} parent=1 // pred_check_branch
      %345 = sbr.rel (0) target = $region141
    $region140: #{tpu_custom_call.1} parent=1 // pred_region
      %347 = dma.done [#allocation6], 256
    $region141: #{tpu_custom_call.1} parent=1 // pred_fallthru
      _
    // Predicated region
    $region142: #{tpu_custom_call.1} parent=1 // pred_check
      _
    $region143: #{tpu_custom_call.1} parent=1 // pred_check_branch
      %349 = sbr.rel (0) target = $region145
    $region144: #{tpu_custom_call.1} parent=1 // pred_region
      %351 = dma.done [#allocation9], 32
    $region145: #{tpu_custom_call.1} parent=1 // pred_fallthru
      _
    // Predicated region
    $region146: #{tpu_custom_call.1} parent=1 // pred_check
      _
    $region147: #{tpu_custom_call.1} parent=1 // pred_check_branch
      %353 = sbr.rel (0) target = $region149
    $region148: #{tpu_custom_call.1} parent=1 // pred_region
      %355 = dma.done [#allocation9], 32
    $region149: #{tpu_custom_call.1} parent=1 // pred_fallthru
      _
    // Predicated region
    $region150: #{tpu_custom_call.1} parent=1 // pred_check
      _
    $region151: #{tpu_custom_call.1} parent=1 // pred_check_branch
      %357 = sbr.rel (0) target = $region153
    $region152: #{tpu_custom_call.1} parent=1 // pred_region
      %359 = dma.done [#allocation12], 1024
    $region153: #{tpu_custom_call.1} parent=1 // pred_fallthru
      _
    // Predicated region
    $region154: #{tpu_custom_call.1} parent=1 // pred_check
      _
    $region155: #{tpu_custom_call.1} parent=1 // pred_check_branch
      %361 = sbr.rel (0) target = $region157
    $region156: #{tpu_custom_call.1} parent=1 // pred_region
      %363 = dma.done [#allocation12], 512
    $region157: #{tpu_custom_call.1} parent=1 // pred_fallthru
      _
    // Predicated region
    $region158: #{tpu_custom_call.1} parent=1 // pred_check
      _
    $region159: #{tpu_custom_call.1} parent=1 // pred_check_branch
      %365 = sbr.rel (0) target = $region161
    $region160: #{tpu_custom_call.1} parent=1 // pred_region
      %367 = dma.done [#allocation15], 512
    $region161: #{tpu_custom_call.1} parent=1 // pred_fallthru
      _
    // Predicated region
    $region162: #{tpu_custom_call.1} parent=1 // pred_check
      _
    $region163: #{tpu_custom_call.1} parent=1 // pred_check_branch
      %369 = sbr.rel (0) target = $region165
    $region164: #{tpu_custom_call.1} parent=1 // pred_region
      %371 = dma.done [#allocation15], 32
    $region165: #{tpu_custom_call.1} parent=1 // pred_fallthru
      _
    // Predicated region
    $region166: #{tpu_custom_call.1} parent=1 // pred_check
      _
    $region167: #{tpu_custom_call.1} parent=1 // pred_check_branch
      %373 = sbr.rel (0) target = $region169
    $region168: #{tpu_custom_call.1} parent=1 // pred_region
      %375 = dma.done [#allocation18], 32
    $region169: #{tpu_custom_call.1} parent=1 // pred_fallthru
      _
    // Predicated region
    $region170: #{tpu_custom_call.1} parent=1 // pred_check
      _
    $region171: #{tpu_custom_call.1} parent=1 // pred_check_branch
      %377 = sbr.rel (0) target = $region173
    $region172: #{tpu_custom_call.1} parent=1 // pred_region
      %379 = dma.done [#allocation18], 512
    $region173: #{tpu_custom_call.1} parent=1 // pred_fallthru
      _
    // Predicated region
    $region174: #{tpu_custom_call.1} parent=1 // pred_check
      _
    $region175: #{tpu_custom_call.1} parent=1 // pred_check_branch
      %381 = sbr.rel (0) target = $region177
    $region176: #{tpu_custom_call.1} parent=1 // pred_region
      %383 = dma.done [#allocation21], 256
    $region177: #{tpu_custom_call.1} parent=1 // pred_fallthru
      _
    // Predicated region
    $region178: #{tpu_custom_call.1} parent=1 // pred_check
      _
    $region179: #{tpu_custom_call.1} parent=1 // pred_check_branch
      %385 = sbr.rel (0) target = $region181
    $region180: #{tpu_custom_call.1} parent=1 // pred_region
      %387 = dma.done [#allocation21], 1024
    $region181: #{tpu_custom_call.1} parent=1 // pred_fallthru
      _
    // Predicated region
    $region182: #{tpu_custom_call.1} parent=1 // pred_check
      _
    $region183: #{tpu_custom_call.1} parent=1 // pred_check_branch
      %389 = sbr.rel (0) target = $region185
    $region184: #{tpu_custom_call.1} parent=1 // pred_region
      %391 = dma.done [#allocation24], 32
    $region185: #{tpu_custom_call.1} parent=1 // pred_fallthru
      _
    // Predicated region
    $region186: #{tpu_custom_call.1} parent=1 // pred_check
      _
    $region187: #{tpu_custom_call.1} parent=1 // pred_check_branch
      %393 = sbr.rel (0) target = $region189
    $region188: #{tpu_custom_call.1} parent=1 // pred_region
      %395 = dma.done [#allocation24], 32
    $region189: #{tpu_custom_call.1} parent=1 // pred_fallthru
      _
    // Predicated region
    $region190: #{tpu_custom_call.1} parent=1 // pred_check
      _
    $region191: #{tpu_custom_call.1} parent=1 // pred_check_branch
      %397 = sbr.rel (0) target = $region193
    $region192: #{tpu_custom_call.1} parent=1 // pred_region
      %399 = dma.done [#allocation27], 128
    $region193: #{tpu_custom_call.1} parent=1 // pred_fallthru
      _
    // Predicated region
    $region194: #{tpu_custom_call.1} parent=1 // pred_check
      _
    $region195: #{tpu_custom_call.1} parent=1 // pred_check_branch
      %401 = sbr.rel (0) target = $region197
    $region196: #{tpu_custom_call.1} parent=1 // pred_region
      %403 = dma.done [#allocation27], 8192
    $region197: #{tpu_custom_call.1} parent=1 // pred_fallthru
      _
    // Predicated region
    $region198: #{tpu_custom_call.1} parent=1 // pred_check
      _
    $region199: #{tpu_custom_call.1} parent=1 // pred_check_branch
      %405 = sbr.rel (0) target = $region201
    $region200: #{tpu_custom_call.1} parent=1 // pred_region
      %407 = dma.done [#allocation30], 16
    $region201: #{tpu_custom_call.1} parent=1 // pred_fallthru
      _
    // Predicated region
    $region202: #{tpu_custom_call.1} parent=1 // pred_check
      _
    $region203: #{tpu_custom_call.1} parent=1 // pred_check_branch
      %409 = sbr.rel (0) target = $region205
    $region204: #{tpu_custom_call.1} parent=1 // pred_region
      %411 = dma.done [#allocation30], 16
    $region205: #{tpu_custom_call.1} parent=1 // pred_fallthru
      _
    %v412 = vld [vmem:[%s1] sm:$0xff]
    %v413 = vld [vmem:[%s1 + $0x8] sm:$0xff]
    %v414 = vld [vmem:[%s1 + $0x10] sm:$0xff]
    %v415 = vld [vmem:[%s1 + $0x18] sm:$0xff]
    %v416 = vld [vmem:[%s1 + $0x20] sm:$0xff]
    %v417 = vld [vmem:[%s1 + $0x28] sm:$0xff]
    %v418 = vld [vmem:[%s1 + $0x30] sm:$0xff]
    %v419 = vld [vmem:[%s1 + $0x38] sm:$0xff]
    %v420 = vld [vmem:[%s1 + $0x40] sm:$0xff]
    %v421 = vld [vmem:[%s1 + $0x48] sm:$0xff]
    %v422 = vld [vmem:[%s1 + $0x50] sm:$0xff]
    %v423 = vld [vmem:[%s1 + $0x58] sm:$0xff]
    %v424 = vld [vmem:[%s1 + $0x60] sm:$0xff]
    %v425 = vld [vmem:[%s1 + $0x68] sm:$0xff]
    %v426 = vld [vmem:[%s1 + $0x70] sm:$0xff]
    %v427 = vld [vmem:[%s1 + $0x78] sm:$0xff]
    %v428 = vld [vmem:[%s1 + $0x80] sm:$0xff]
    %v429 = vld [vmem:[%s1 + $0x88] sm:$0xff]
    %v430 = vld [vmem:[%s1 + $0x90] sm:$0xff]
    %v431 = vld [vmem:[%s1 + $0x98] sm:$0xff]
    %v432 = vld [vmem:[%s1 + $0xa0] sm:$0xff]
    %v433 = vld [vmem:[%s1 + $0xa8] sm:$0xff]
    %v434 = vld [vmem:[%s1 + $0xb0] sm:$0xff]
    %v435 = vld [vmem:[%s1 + $0xb8] sm:$0xff]
    %v436 = vld [vmem:[#allocation2] sm:$0xff]
    %v437 = vld [vmem:[#allocation2 + $0x8] sm:$0xff]
    %v438 = vld [vmem:[#allocation2 + $0x10] sm:$0xff]
    %v439 = vld [vmem:[#allocation2 + $0x18] sm:$0xff]
    %v440 = vld [vmem:[#allocation2 + $0x20] sm:$0xff]
    %v441 = vld [vmem:[#allocation2 + $0x28] sm:$0xff]
    %v442 = vld [vmem:[#allocation2 + $0x30] sm:$0xff]
    %v443 = vld [vmem:[#allocation2 + $0x38] sm:$0xff]
    %v444 = vld [vmem:[#allocation2 + $0x40] sm:$0xff]
    %v445 = vld [vmem:[#allocation2 + $0x48] sm:$0xff]
    %v446 = vld [vmem:[#allocation2 + $0x50] sm:$0xff]
    %v447 = vld [vmem:[#allocation2 + $0x58] sm:$0xff]
    %v448 = vld [vmem:[#allocation2 + $0x60] sm:$0xff]
    %v449 = vld [vmem:[#allocation2 + $0x68] sm:$0xff]
    %v450 = vld [vmem:[#allocation2 + $0x70] sm:$0xff]
    %v451 = vld [vmem:[#allocation2 + $0x78] sm:$0xff]
    %vm452 = vcmask 523264
    %v454 = vsel %vm452, %v437, 0
    %v457 = vsel %vm452, %v439, 0
    %v460 = vsel %vm452, %v441, 0
    %v463 = vsel %vm452, %v443, 0
    %v466 = vsel %vm452, %v445, 0
    %v469 = vsel %vm452, %v447, 0
    %v472 = vsel %vm452, %v449, 0
    %v475 = vsel %vm452, %v451, 0
    %477 = vmatpush.msra.mxu0 %v427
    %478 = vmatpush.msra.mxu0 %v426
    %479 = vmatpush.msra.mxu0 %v425
    %480 = vmatpush.msra.mxu0 %v424
    %481 = vmatpush.msra.mxu0 %v423
    %482 = vmatpush.msra.mxu0 %v422
    %483 = vmatpush.msra.mxu0 %v421
    %484 = vmatpush.msra.mxu0 %v420
    %485 = vmatpush.msra.mxu0 %v419
    %486 = vmatpush.msra.mxu0 %v418
    %487 = vmatpush.msra.mxu0 %v417
    %488 = vmatpush.msra.mxu0 %v416
    %489 = vmatpush.msra.mxu0 %v415
    %490 = vmatpush.msra.mxu0 %v414
    %491 = vmatpush.msra.mxu0 %v413
    %492 = vmatpush.msra.mxu0 %v412
    %493 = vmatmul.f32.gmra.mxu0 %v436
    %v494 = vpop.f32.mrf.mxu0
    %v495 = vadd.f32 0.0, %v494
    %496 = vmatmul.f32.gmra.mxu0 %v438
    %v497 = vpop.f32.mrf.mxu0
    %v498 = vadd.f32 0.0, %v497
    %499 = vmatmul.f32.gmra.mxu0 %v440
    %v500 = vpop.f32.mrf.mxu0
    %v501 = vadd.f32 0.0, %v500
    %502 = vmatmul.f32.gmra.mxu0 %v442
    %v503 = vpop.f32.mrf.mxu0
    %v504 = vadd.f32 0.0, %v503
    %505 = vmatmul.f32.gmra.mxu0 %v444
    %v506 = vpop.f32.mrf.mxu0
    %v507 = vadd.f32 0.0, %v506
    %508 = vmatmul.f32.gmra.mxu0 %v446
    %v509 = vpop.f32.mrf.mxu0
    %v510 = vadd.f32 0.0, %v509
    %511 = vmatmul.f32.gmra.mxu0 %v448
    %v512 = vpop.f32.mrf.mxu0
    %v513 = vadd.f32 0.0, %v512
    %514 = vmatmul.f32.gmra.mxu0 %v450
    %v515 = vpop.f32.mrf.mxu0
    %v516 = vadd.f32 0.0, %v515
    %517 = vdwg.mxu0
    %518 = vmatpush.msra.mxu0 0.0
    %519 = vmatpush.msra.mxu0 0.0
    %520 = vmatpush.msra.mxu0 0.0
    %521 = vmatpush.msra.mxu0 0.0
    %522 = vmatpush.msra.mxu0 0.0
    %523 = vmatpush.msra.mxu0 0.0
    %524 = vmatpush.msra.mxu0 0.0
    %525 = vmatpush.msra.mxu0 0.0
    %526 = vmatpush.msra.mxu0 %v435
    %527 = vmatpush.msra.mxu0 %v434
    %528 = vmatpush.msra.mxu0 %v433
    %529 = vmatpush.msra.mxu0 %v432
    %530 = vmatpush.msra.mxu0 %v431
    %531 = vmatpush.msra.mxu0 %v430
    %532 = vmatpush.msra.mxu0 %v429
    %533 = vmatpush.msra.mxu0 %v428
    %534 = vmatmul.f32.gmra.mxu0 %v454
    %v535 = vpop.f32.mrf.mxu0
    %v536 = vadd.f32 %v495, %v535
    %537 = vmatmul.f32.gmra.mxu0 %v457
    %v538 = vpop.f32.mrf.mxu0
    %v539 = vadd.f32 %v498, %v538
    %540 = vmatmul.f32.gmra.mxu0 %v460
    %v541 = vpop.f32.mrf.mxu0
    %v542 = vadd.f32 %v501, %v541
    %543 = vmatmul.f32.gmra.mxu0 %v463
    %v544 = vpop.f32.mrf.mxu0
    %v545 = vadd.f32 %v504, %v544
    %546 = vmatmul.f32.gmra.mxu0 %v466
    %v547 = vpop.f32.mrf.mxu0
    %v548 = vadd.f32 %v507, %v547
    %549 = vmatmul.f32.gmra.mxu0 %v469
    %v550 = vpop.f32.mrf.mxu0
    %v551 = vadd.f32 %v510, %v550
    %552 = vmatmul.f32.gmra.mxu0 %v472
    %v553 = vpop.f32.mrf.mxu0
    %v554 = vadd.f32 %v513, %v553
    %555 = vmatmul.f32.gmra.mxu0 %v475
    %v556 = vpop.f32.mrf.mxu0
    %v557 = vadd.f32 %v516, %v556
    %558 = vdwg.mxu0
    %v559 = vld [vmem:[#allocation5] sm:$0xff]
    %v560 = vld [vmem:[#allocation5 + $0x8] sm:$0xff]
    %v561 = vld [vmem:[#allocation5 + $0x10] sm:$0xff]
    %v562 = vld [vmem:[#allocation5 + $0x18] sm:$0xff]
    %s563 = scalar_lea.vmem [#allocation2], 128
    %v564 = vld [vmem:[%s563] sm:$0xff]
    %v565 = vld [vmem:[%s563 + $0x8] sm:$0xff]
    %v566 = vld [vmem:[%s563 + $0x10] sm:$0xff]
    %v567 = vld [vmem:[%s563 + $0x18] sm:$0xff]
    %v568 = vld [vmem:[%s563 + $0x20] sm:$0xff]
    %v569 = vld [vmem:[%s563 + $0x28] sm:$0xff]
    %v570 = vld [vmem:[%s563 + $0x30] sm:$0xff]
    %v571 = vld [vmem:[%s563 + $0x38] sm:$0xff]
    %v572 = vld [vmem:[%s563 + $0x40] sm:$0xff]
    %v573 = vld [vmem:[%s563 + $0x48] sm:$0xff]
    %v574 = vld [vmem:[%s563 + $0x50] sm:$0xff]
    %v575 = vld [vmem:[%s563 + $0x58] sm:$0xff]
    %v576 = vld [vmem:[%s563 + $0x60] sm:$0xff]
    %v577 = vld [vmem:[%s563 + $0x68] sm:$0xff]
    %v578 = vld [vmem:[%s563 + $0x70] sm:$0xff]
    %v579 = vld [vmem:[%s563 + $0x78] sm:$0xff]
    %v581 = vsel %vm452, %v565, 0
    %v584 = vsel %vm452, %v567, 0
    %v587 = vsel %vm452, %v569, 0
    %v590 = vsel %vm452, %v571, 0
    %v593 = vsel %vm452, %v573, 0
    %v596 = vsel %vm452, %v575, 0
    %v599 = vsel %vm452, %v577, 0
    %v602 = vsel %vm452, %v579, 0
    %604 = vmatpush.msra.mxu0 %v427
    %605 = vmatpush.msra.mxu0 %v426
    %606 = vmatpush.msra.mxu0 %v425
    %607 = vmatpush.msra.mxu0 %v424
    %608 = vmatpush.msra.mxu0 %v423
    %609 = vmatpush.msra.mxu0 %v422
    %610 = vmatpush.msra.mxu0 %v421
    %611 = vmatpush.msra.mxu0 %v420
    %612 = vmatpush.msra.mxu0 %v419
    %613 = vmatpush.msra.mxu0 %v418
    %614 = vmatpush.msra.mxu0 %v417
    %615 = vmatpush.msra.mxu0 %v416
    %616 = vmatpush.msra.mxu0 %v415
    %617 = vmatpush.msra.mxu0 %v414
    %618 = vmatpush.msra.mxu0 %v413
    %619 = vmatpush.msra.mxu0 %v412
    %620 = vmatmul.f32.gmra.mxu0 %v564
    %v621 = vpop.f32.mrf.mxu0
    %v622 = vadd.f32 0.0, %v621
    %623 = vmatmul.f32.gmra.mxu0 %v566
    %v624 = vpop.f32.mrf.mxu0
    %v625 = vadd.f32 0.0, %v624
    %626 = vmatmul.f32.gmra.mxu0 %v568
    %v627 = vpop.f32.mrf.mxu0
    %v628 = vadd.f32 0.0, %v627
    %629 = vmatmul.f32.gmra.mxu0 %v570
    %v630 = vpop.f32.mrf.mxu0
    %v631 = vadd.f32 0.0, %v630
    %632 = vmatmul.f32.gmra.mxu0 %v572
    %v633 = vpop.f32.mrf.mxu0
    %v634 = vadd.f32 0.0, %v633
    %635 = vmatmul.f32.gmra.mxu0 %v574
    %v636 = vpop.f32.mrf.mxu0
    %v637 = vadd.f32 0.0, %v636
    %638 = vmatmul.f32.gmra.mxu0 %v576
    %v639 = vpop.f32.mrf.mxu0
    %v640 = vadd.f32 0.0, %v639
    %641 = vmatmul.f32.gmra.mxu0 %v578
    %v642 = vpop.f32.mrf.mxu0
    %v643 = vadd.f32 0.0, %v642
    %644 = vdwg.mxu0
    %645 = vmatpush.msra.mxu0 0.0
    %646 = vmatpush.msra.mxu0 0.0
    %647 = vmatpush.msra.mxu0 0.0
    %648 = vmatpush.msra.mxu0 0.0
    %649 = vmatpush.msra.mxu0 0.0
    %650 = vmatpush.msra.mxu0 0.0
    %651 = vmatpush.msra.mxu0 0.0
    %652 = vmatpush.msra.mxu0 0.0
    %653 = vmatpush.msra.mxu0 %v435
    %654 = vmatpush.msra.mxu0 %v434
    %655 = vmatpush.msra.mxu0 %v433
    %656 = vmatpush.msra.mxu0 %v432
    %657 = vmatpush.msra.mxu0 %v431
    %658 = vmatpush.msra.mxu0 %v430
    %659 = vmatpush.msra.mxu0 %v429
    %660 = vmatpush.msra.mxu0 %v428
    %661 = vmatmul.f32.gmra.mxu0 %v581
    %v662 = vpop.f32.mrf.mxu0
    %v663 = vadd.f32 %v622, %v662
    %664 = vmatmul.f32.gmra.mxu0 %v584
    %v665 = vpop.f32.mrf.mxu0
    %v666 = vadd.f32 %v625, %v665
    %667 = vmatmul.f32.gmra.mxu0 %v587
    %v668 = vpop.f32.mrf.mxu0
    %v669 = vadd.f32 %v628, %v668
    %670 = vmatmul.f32.gmra.mxu0 %v590
    %v671 = vpop.f32.mrf.mxu0
    %v672 = vadd.f32 %v631, %v671
    %673 = vmatmul.f32.gmra.mxu0 %v593
    %v674 = vpop.f32.mrf.mxu0
    %v675 = vadd.f32 %v634, %v674
    %676 = vmatmul.f32.gmra.mxu0 %v596
    %v677 = vpop.f32.mrf.mxu0
    %v678 = vadd.f32 %v637, %v677
    %679 = vmatmul.f32.gmra.mxu0 %v599
    %v680 = vpop.f32.mrf.mxu0
    %v681 = vadd.f32 %v640, %v680
    %682 = vmatmul.f32.gmra.mxu0 %v602
    %v683 = vpop.f32.mrf.mxu0
    %v684 = vadd.f32 %v643, %v683
    %685 = vdwg.mxu0
    %s686 = scalar_lea.vmem [#allocation5], 32
    %v687 = vld [vmem:[%s686] sm:$0xff]
    %v688 = vld [vmem:[%s686 + $0x8] sm:$0xff]
    %v689 = vld [vmem:[%s686 + $0x10] sm:$0xff]
    %v690 = vld [vmem:[%s686 + $0x18] sm:$0xff]
    %vm691 = vcmask 261120
    %v693 = vsel %vm691, %v663, 0
    %v696 = vsel %vm691, %v666, 0
    %v699 = vsel %vm691, %v669, 0
    %v702 = vsel %vm691, %v672, 0
    %v705 = vsel %vm691, %v675, 0
    %v708 = vsel %vm691, %v678, 0
    %v711 = vsel %vm691, %v681, 0
    %v714 = vsel %vm691, %v684, 0
    %716 = vmatpush.msra.mxu0 0.0
    %717 = vmatpush.msra.mxu0 0.0
    %718 = vmatpush.msra.mxu0 0.0
    %719 = vmatpush.msra.mxu0 0.0
    %720 = vmatpush.msra.mxu0 0.0
    %721 = vmatpush.msra.mxu0 0.0
    %722 = vmatpush.msra.mxu0 0.0
    %723 = vmatpush.msra.mxu0 0.0
    %724 = vmatpush.msra.mxu0 0.0
    %725 = vmatpush.msra.mxu0 0.0
    %726 = vmatpush.msra.mxu0 0.0
    %727 = vmatpush.msra.mxu0 0.0
    %728 = vmatpush.msra.mxu0 %v690
    %729 = vmatpush.msra.mxu0 %v689
    %730 = vmatpush.msra.mxu0 %v688
    %731 = vmatpush.msra.mxu0 %v687
    %732 = vmatmul.f32.gmra.mxu0 %v693
    %v733 = vpop.f32.mrf.mxu0
    %v734 = vadd.f32 0.0, %v733
    %735 = vmatmul.f32.gmra.mxu0 %v696
    %v736 = vpop.f32.mrf.mxu0
    %v737 = vadd.f32 0.0, %v736
    %738 = vmatmul.f32.gmra.mxu0 %v699
    %v739 = vpop.f32.mrf.mxu0
    %v740 = vadd.f32 0.0, %v739
    %741 = vmatmul.f32.gmra.mxu0 %v702
    %v742 = vpop.f32.mrf.mxu0
    %v743 = vadd.f32 0.0, %v742
    %744 = vmatmul.f32.gmra.mxu0 %v705
    %v745 = vpop.f32.mrf.mxu0
    %v746 = vadd.f32 0.0, %v745
    %747 = vmatmul.f32.gmra.mxu0 %v708
    %v748 = vpop.f32.mrf.mxu0
    %v749 = vadd.f32 0.0, %v748
    %750 = vmatmul.f32.gmra.mxu0 %v711
    %v751 = vpop.f32.mrf.mxu0
    %v752 = vadd.f32 0.0, %v751
    %753 = vmatmul.f32.gmra.mxu0 %v714
    %v754 = vpop.f32.mrf.mxu0
    %v755 = vadd.f32 0.0, %v754
    %756 = vdwg.mxu0
    %v758 = vsel %vm691, %v536, 0
    %v761 = vsel %vm691, %v539, 0
    %v764 = vsel %vm691, %v542, 0
    %v767 = vsel %vm691, %v545, 0
    %v770 = vsel %vm691, %v548, 0
    %v773 = vsel %vm691, %v551, 0
    %v776 = vsel %vm691, %v554, 0
    %v779 = vsel %vm691, %v557, 0
    %781 = vmatpush.msra.mxu0 0.0
    %782 = vmatpush.msra.mxu0 0.0
    %783 = vmatpush.msra.mxu0 0.0
    %784 = vmatpush.msra.mxu0 0.0
    %785 = vmatpush.msra.mxu0 0.0
    %786 = vmatpush.msra.mxu0 0.0
    %787 = vmatpush.msra.mxu0 0.0
    %788 = vmatpush.msra.mxu0 0.0
    %789 = vmatpush.msra.mxu0 0.0
    %790 = vmatpush.msra.mxu0 0.0
    %791 = vmatpush.msra.mxu0 0.0
    %792 = vmatpush.msra.mxu0 0.0
    %793 = vmatpush.msra.mxu0 %v562
    %794 = vmatpush.msra.mxu0 %v561
    %795 = vmatpush.msra.mxu0 %v560
    %796 = vmatpush.msra.mxu0 %v559
    %797 = vmatmul.f32.gmra.mxu0 %v758
    %v798 = vpop.f32.mrf.mxu0
    %v799 = vadd.f32 %v734, %v798
    %800 = vmatmul.f32.gmra.mxu0 %v761
    %v801 = vpop.f32.mrf.mxu0
    %v802 = vadd.f32 %v737, %v801
    %803 = vmatmul.f32.gmra.mxu0 %v764
    %v804 = vpop.f32.mrf.mxu0
    %v805 = vadd.f32 %v740, %v804
    %806 = vmatmul.f32.gmra.mxu0 %v767
    %v807 = vpop.f32.mrf.mxu0
    %v808 = vadd.f32 %v743, %v807
    %809 = vmatmul.f32.gmra.mxu0 %v770
    %v810 = vpop.f32.mrf.mxu0
    %v811 = vadd.f32 %v746, %v810
    %812 = vmatmul.f32.gmra.mxu0 %v773
    %v813 = vpop.f32.mrf.mxu0
    %v814 = vadd.f32 %v749, %v813
    %815 = vmatmul.f32.gmra.mxu0 %v776
    %v816 = vpop.f32.mrf.mxu0
    %v817 = vadd.f32 %v752, %v816
    %818 = vmatmul.f32.gmra.mxu0 %v779
    %v819 = vpop.f32.mrf.mxu0
    %v820 = vadd.f32 %v755, %v819
    %821 = vdwg.mxu0
    %s822 = scalar_lea.vmem [#allocation2], 256
    %v823 = vld [vmem:[%s822] sm:$0xff]
    %v824 = vld [vmem:[%s822 + $0x8] sm:$0xff]
    %v825 = vld [vmem:[%s822 + $0x10] sm:$0xff]
    %v826 = vld [vmem:[%s822 + $0x18] sm:$0xff]
    %v827 = vld [vmem:[%s822 + $0x20] sm:$0xff]
    %v828 = vld [vmem:[%s822 + $0x28] sm:$0xff]
    %v829 = vld [vmem:[%s822 + $0x30] sm:$0xff]
    %v830 = vld [vmem:[%s822 + $0x38] sm:$0xff]
    %v831 = vld [vmem:[%s822 + $0x40] sm:$0xff]
    %v832 = vld [vmem:[%s822 + $0x48] sm:$0xff]
    %v833 = vld [vmem:[%s822 + $0x50] sm:$0xff]
    %v834 = vld [vmem:[%s822 + $0x58] sm:$0xff]
    %v835 = vld [vmem:[%s822 + $0x60] sm:$0xff]
    %v836 = vld [vmem:[%s822 + $0x68] sm:$0xff]
    %v837 = vld [vmem:[%s822 + $0x70] sm:$0xff]
    %v838 = vld [vmem:[%s822 + $0x78] sm:$0xff]
    %v840 = vsel %vm452, %v824, 0
    %v843 = vsel %vm452, %v826, 0
    %v846 = vsel %vm452, %v828, 0
    %v849 = vsel %vm452, %v830, 0
    %v852 = vsel %vm452, %v832, 0
    %v855 = vsel %vm452, %v834, 0
    %v858 = vsel %vm452, %v836, 0
    %v861 = vsel %vm452, %v838, 0
    %863 = vmatpush.msra.mxu0 %v427
    %864 = vmatpush.msra.mxu0 %v426
    %865 = vmatpush.msra.mxu0 %v425
    %866 = vmatpush.msra.mxu0 %v424
    %867 = vmatpush.msra.mxu0 %v423
    %868 = vmatpush.msra.mxu0 %v422
    %869 = vmatpush.msra.mxu0 %v421
    %870 = vmatpush.msra.mxu0 %v420
    %871 = vmatpush.msra.mxu0 %v419
    %872 = vmatpush.msra.mxu0 %v418
    %873 = vmatpush.msra.mxu0 %v417
    %874 = vmatpush.msra.mxu0 %v416
    %875 = vmatpush.msra.mxu0 %v415
    %876 = vmatpush.msra.mxu0 %v414
    %877 = vmatpush.msra.mxu0 %v413
    %878 = vmatpush.msra.mxu0 %v412
    %879 = vmatmul.f32.gmra.mxu0 %v823
    %v880 = vpop.f32.mrf.mxu0
    %v881 = vadd.f32 0.0, %v880
    %882 = vmatmul.f32.gmra.mxu0 %v825
    %v883 = vpop.f32.mrf.mxu0
    %v884 = vadd.f32 0.0, %v883
    %885 = vmatmul.f32.gmra.mxu0 %v827
    %v886 = vpop.f32.mrf.mxu0
    %v887 = vadd.f32 0.0, %v886
    %888 = vmatmul.f32.gmra.mxu0 %v829
    %v889 = vpop.f32.mrf.mxu0
    %v890 = vadd.f32 0.0, %v889
    %891 = vmatmul.f32.gmra.mxu0 %v831
    %v892 = vpop.f32.mrf.mxu0
    %v893 = vadd.f32 0.0, %v892
    %894 = vmatmul.f32.gmra.mxu0 %v833
    %v895 = vpop.f32.mrf.mxu0
    %v896 = vadd.f32 0.0, %v895
    %897 = vmatmul.f32.gmra.mxu0 %v835
    %v898 = vpop.f32.mrf.mxu0
    %v899 = vadd.f32 0.0, %v898
    %900 = vmatmul.f32.gmra.mxu0 %v837
    %v901 = vpop.f32.mrf.mxu0
    %v902 = vadd.f32 0.0, %v901
    %903 = vdwg.mxu0
    %904 = vmatpush.msra.mxu0 0.0
    %905 = vmatpush.msra.mxu0 0.0
    %906 = vmatpush.msra.mxu0 0.0
    %907 = vmatpush.msra.mxu0 0.0
    %908 = vmatpush.msra.mxu0 0.0
    %909 = vmatpush.msra.mxu0 0.0
    %910 = vmatpush.msra.mxu0 0.0
    %911 = vmatpush.msra.mxu0 0.0
    %912 = vmatpush.msra.mxu0 %v435
    %913 = vmatpush.msra.mxu0 %v434
    %914 = vmatpush.msra.mxu0 %v433
    %915 = vmatpush.msra.mxu0 %v432
    %916 = vmatpush.msra.mxu0 %v431
    %917 = vmatpush.msra.mxu0 %v430
    %918 = vmatpush.msra.mxu0 %v429
    %919 = vmatpush.msra.mxu0 %v428
    %920 = vmatmul.f32.gmra.mxu0 %v840
    %v921 = vpop.f32.mrf.mxu0
    %v922 = vadd.f32 %v881, %v921
    %923 = vmatmul.f32.gmra.mxu0 %v843
    %v924 = vpop.f32.mrf.mxu0
    %v925 = vadd.f32 %v884, %v924
    %926 = vmatmul.f32.gmra.mxu0 %v846
    %v927 = vpop.f32.mrf.mxu0
    %v928 = vadd.f32 %v887, %v927
    %929 = vmatmul.f32.gmra.mxu0 %v849
    %v930 = vpop.f32.mrf.mxu0
    %v931 = vadd.f32 %v890, %v930
    %932 = vmatmul.f32.gmra.mxu0 %v852
    %v933 = vpop.f32.mrf.mxu0
    %v934 = vadd.f32 %v893, %v933
    %935 = vmatmul.f32.gmra.mxu0 %v855
    %v936 = vpop.f32.mrf.mxu0
    %v937 = vadd.f32 %v896, %v936
    %938 = vmatmul.f32.gmra.mxu0 %v858
    %v939 = vpop.f32.mrf.mxu0
    %v940 = vadd.f32 %v899, %v939
    %941 = vmatmul.f32.gmra.mxu0 %v861
    %v942 = vpop.f32.mrf.mxu0
    %v943 = vadd.f32 %v902, %v942
    %944 = vdwg.mxu0
    %s945 = scalar_lea.vmem [#allocation5], 64
    %v946 = vld [vmem:[%s945] sm:$0xff]
    %v947 = vld [vmem:[%s945 + $0x8] sm:$0xff]
    %v948 = vld [vmem:[%s945 + $0x10] sm:$0xff]
    %v949 = vld [vmem:[%s945 + $0x18] sm:$0xff]
    %v951 = vsel %vm691, %v922, 0
    %v954 = vsel %vm691, %v925, 0
    %v957 = vsel %vm691, %v928, 0
    %v960 = vsel %vm691, %v931, 0
    %v963 = vsel %vm691, %v934, 0
    %v966 = vsel %vm691, %v937, 0
    %v969 = vsel %vm691, %v940, 0
    %v972 = vsel %vm691, %v943, 0
    %974 = vmatpush.msra.mxu0 0.0
    %975 = vmatpush.msra.mxu0 0.0
    %976 = vmatpush.msra.mxu0 0.0
    %977 = vmatpush.msra.mxu0 0.0
    %978 = vmatpush.msra.mxu0 0.0
    %979 = vmatpush.msra.mxu0 0.0
    %980 = vmatpush.msra.mxu0 0.0
    %981 = vmatpush.msra.mxu0 0.0
    %982 = vmatpush.msra.mxu0 0.0
    %983 = vmatpush.msra.mxu0 0.0
    %984 = vmatpush.msra.mxu0 0.0
    %985 = vmatpush.msra.mxu0 0.0
    %986 = vmatpush.msra.mxu0 %v949
    %987 = vmatpush.msra.mxu0 %v948
    %988 = vmatpush.msra.mxu0 %v947
    %989 = vmatpush.msra.mxu0 %v946
    %990 = vmatmul.f32.gmra.mxu0 %v951
    %v991 = vpop.f32.mrf.mxu0
    %v992 = vadd.f32 0.0, %v991
    %993 = vmatmul.f32.gmra.mxu0 %v954
    %v994 = vpop.f32.mrf.mxu0
    %v995 = vadd.f32 0.0, %v994
    %996 = vmatmul.f32.gmra.mxu0 %v957
    %v997 = vpop.f32.mrf.mxu0
    %v998 = vadd.f32 0.0, %v997
    %999 = vmatmul.f32.gmra.mxu0 %v960
    %v1000 = vpop.f32.mrf.mxu0
    %v1001 = vadd.f32 0.0, %v1000
    %1002 = vmatmul.f32.gmra.mxu0 %v963
    %v1003 = vpop.f32.mrf.mxu0
    %v1004 = vadd.f32 0.0, %v1003
    %1005 = vmatmul.f32.gmra.mxu0 %v966
    %v1006 = vpop.f32.mrf.mxu0
    %v1007 = vadd.f32 0.0, %v1006
    %1008 = vmatmul.f32.gmra.mxu0 %v969
    %v1009 = vpop.f32.mrf.mxu0
    %v1010 = vadd.f32 0.0, %v1009
    %1011 = vmatmul.f32.gmra.mxu0 %v972
    %v1012 = vpop.f32.mrf.mxu0
    %v1013 = vadd.f32 0.0, %v1012
    %1014 = vdwg.mxu0
    %v1015 = vadd.f32 %v799, %v992
    %v1016 = vadd.f32 %v802, %v995
    %v1017 = vadd.f32 %v805, %v998
    %v1018 = vadd.f32 %v808, %v1001
    %v1019 = vadd.f32 %v811, %v1004
    %v1020 = vadd.f32 %v814, %v1007
    %v1021 = vadd.f32 %v817, %v1010
    %v1022 = vadd.f32 %v820, %v1013
    %s1023 = scalar_lea.vmem %s7, 208
    %v1024 = vld [vmem:[%s1023] sm:$0xff]
    %v1025 = vld [vmem:[%s1023 + $0x8] sm:$0xff]
    %v1026 = vld [vmem:[%s1023 + $0x10] sm:$0xff]
    %v1027 = vld [vmem:[%s1023 + $0x18] sm:$0xff]
    %v1028 = vld [vmem:[%s1023 + $0x20] sm:$0xff]
    %v1029 = vld [vmem:[%s1023 + $0x28] sm:$0xff]
    %v1030 = vld [vmem:[%s1023 + $0x30] sm:$0xff]
    %v1031 = vld [vmem:[%s1023 + $0x38] sm:$0xff]
    %v1032 = vld [vmem:[%s1023 + $0x40] sm:$0xff]
    %v1033 = vld [vmem:[%s1023 + $0x48] sm:$0xff]
    %v1034 = vld [vmem:[%s1023 + $0x50] sm:$0xff]
    %v1035 = vld [vmem:[%s1023 + $0x58] sm:$0xff]
    %v1036 = vld [vmem:[%s1023 + $0x60] sm:$0xff]
    %v1037 = vld [vmem:[%s1023 + $0x68] sm:$0xff]
    %v1038 = vld [vmem:[%s1023 + $0x70] sm:$0xff]
    %v1039 = vld [vmem:[%s1023 + $0x78] sm:$0xff]
    %v1040 = vld [vmem:[%s1023 + $0x80] sm:$0xff]
    %v1041 = vld [vmem:[%s1023 + $0x88] sm:$0xff]
    %v1042 = vld [vmem:[%s1023 + $0x90] sm:$0xff]
    %v1043 = vld [vmem:[%s1023 + $0x98] sm:$0xff]
    %v1044 = vld [vmem:[%s1023 + $0xa0] sm:$0xff]
    %v1045 = vld [vmem:[%s1023 + $0xa8] sm:$0xff]
    %v1046 = vld [vmem:[%s1023 + $0xb0] sm:$0xff]
    %v1047 = vld [vmem:[%s1023 + $0xb8] sm:$0xff]
    %v1048 = vld [vmem:[%s1023 + $0xc0] sm:$0x3f]
    %v1049 = vld [vmem:[%s1023 + $0xc8] sm:$0x3f]
    %v1050 = vld [vmem:[%s9] sm:$0xff]
    %v1051 = vld [vmem:[%s9 + $0x8] sm:$0xff]
    %v1052 = vld [vmem:[%s9 + $0x10] sm:$0xff]
    %v1053 = vld [vmem:[%s9 + $0x18] sm:$0xff]
    %v1054 = vld [vmem:[%s9 + $0x20] sm:$0xff]
    %v1055 = vld [vmem:[%s9 + $0x28] sm:$0xff]
    %v1056 = vld [vmem:[%s9 + $0x30] sm:$0xff]
    %v1057 = vld [vmem:[%s9 + $0x38] sm:$0xff]
    %v1059 = vsel %vm452, %v1050, 0
    %v1062 = vsel %vm452, %v1051, 0
    %v1065 = vsel %vm452, %v1052, 0
    %v1068 = vsel %vm452, %v1053, 0
    %v1071 = vsel %vm452, %v1054, 0
    %v1074 = vsel %vm452, %v1055, 0
    %v1077 = vsel %vm452, %v1056, 0
    %v1080 = vsel %vm452, %v1057, 0
    %1082 = vmatpush.msra.mxu0 0.0
    %1083 = vmatpush.msra.mxu0 0.0
    %1084 = vmatpush.msra.mxu0 0.0
    %1085 = vmatpush.msra.mxu0 0.0
    %1086 = vmatpush.msra.mxu0 0.0
    %1087 = vmatpush.msra.mxu0 0.0
    %1088 = vmatpush.msra.mxu0 0.0
    %1089 = vmatpush.msra.mxu0 0.0
    %1090 = vmatpush.msra.mxu0 %v1022
    %1091 = vmatpush.msra.mxu0 %v1021
    %1092 = vmatpush.msra.mxu0 %v1020
    %1093 = vmatpush.msra.mxu0 %v1019
    %1094 = vmatpush.msra.mxu0 %v1018
    %1095 = vmatpush.msra.mxu0 %v1017
    %1096 = vmatpush.msra.mxu0 %v1016
    %1097 = vmatpush.msra.mxu0 %v1015
    %1098 = vmatmul.f32.gmra.mxu0 %v1059
    %v1099 = vpop.f32.mrf.mxu0
    %v1100 = vadd.f32 0.0, %v1099
    %1101 = vmatmul.f32.gmra.mxu0 %v1062
    %v1102 = vpop.f32.mrf.mxu0
    %v1103 = vadd.f32 0.0, %v1102
    %1104 = vmatmul.f32.gmra.mxu0 %v1065
    %v1105 = vpop.f32.mrf.mxu0
    %v1106 = vadd.f32 0.0, %v1105
    %1107 = vmatmul.f32.gmra.mxu0 %v1068
    %v1108 = vpop.f32.mrf.mxu0
    %v1109 = vadd.f32 0.0, %v1108
    %1110 = vmatmul.f32.gmra.mxu0 %v1071
    %v1111 = vpop.f32.mrf.mxu0
    %v1112 = vadd.f32 0.0, %v1111
    %1113 = vmatmul.f32.gmra.mxu0 %v1074
    %v1114 = vpop.f32.mrf.mxu0
    %v1115 = vadd.f32 0.0, %v1114
    %1116 = vmatmul.f32.gmra.mxu0 %v1077
    %v1117 = vpop.f32.mrf.mxu0
    %v1118 = vadd.f32 0.0, %v1117
    %1119 = vmatmul.f32.gmra.mxu0 %v1080
    %v1120 = vpop.f32.mrf.mxu0
    %v1121 = vadd.f32 0.0, %v1120
    %1122 = vdwg.mxu0
    %v1123 = vld [vmem:[%s7] sm:$0xff]
    %v1124 = vld [vmem:[%s7 + $0x8] sm:$0xff]
    %v1125 = vld [vmem:[%s7 + $0x10] sm:$0xff]
    %v1126 = vld [vmem:[%s7 + $0x18] sm:$0xff]
    %v1127 = vld [vmem:[%s7 + $0x20] sm:$0xff]
    %v1128 = vld [vmem:[%s7 + $0x28] sm:$0xff]
    %v1129 = vld [vmem:[%s7 + $0x30] sm:$0xff]
    %v1130 = vld [vmem:[%s7 + $0x38] sm:$0xff]
    %v1131 = vld [vmem:[%s7 + $0x40] sm:$0xff]
    %v1132 = vld [vmem:[%s7 + $0x48] sm:$0xff]
    %v1133 = vld [vmem:[%s7 + $0x50] sm:$0xff]
    %v1134 = vld [vmem:[%s7 + $0x58] sm:$0xff]
    %v1135 = vld [vmem:[%s7 + $0x60] sm:$0xff]
    %v1136 = vld [vmem:[%s7 + $0x68] sm:$0xff]
    %v1137 = vld [vmem:[%s7 + $0x70] sm:$0xff]
    %v1138 = vld [vmem:[%s7 + $0x78] sm:$0xff]
    %v1139 = vld [vmem:[%s7 + $0x80] sm:$0xff]
    %v1140 = vld [vmem:[%s7 + $0x88] sm:$0xff]
    %v1141 = vld [vmem:[%s7 + $0x90] sm:$0xff]
    %v1142 = vld [vmem:[%s7 + $0x98] sm:$0xff]
    %v1143 = vld [vmem:[%s7 + $0xa0] sm:$0xff]
    %v1144 = vld [vmem:[%s7 + $0xa8] sm:$0xff]
    %v1145 = vld [vmem:[%s7 + $0xb0] sm:$0xff]
    %v1146 = vld [vmem:[%s7 + $0xb8] sm:$0xff]
    %v1147 = vld [vmem:[%s7 + $0xc0] sm:$0x3f]
    %v1148 = vld [vmem:[%s7 + $0xc8] sm:$0x3f]
    %vm1149 = vcmask 834560
    %v1151 = vsel %vm1149, %v1100, 0
    %v1154 = vsel %vm1149, %v1103, 0
    %v1157 = vsel %vm1149, %v1106, 0
    %v1160 = vsel %vm1149, %v1109, 0
    %v1163 = vsel %vm1149, %v1112, 0
    %v1166 = vsel %vm1149, %v1115, 0
    %v1169 = vsel %vm1149, %v1118, 0
    %v1172 = vsel %vm1149, %v1121, 0
    %vm1174 = vcmask 1045504
    %v1176 = vsel %vm1174, %v1147, 0
    %v1179 = vsel %vm1174, %v1148, 0
    %1181 = vmatpush.msra.mxu0 0.0
    %1182 = vmatpush.msra.mxu0 0.0
    %1183 = vmatpush.msra.mxu0 0.0
    %1184 = vmatpush.msra.mxu0 %v1176
    %1185 = vmatpush.msra.mxu0 %v1145
    %1186 = vmatpush.msra.mxu0 %v1143
    %1187 = vmatpush.msra.mxu0 %v1141
    %1188 = vmatpush.msra.mxu0 %v1139
    %1189 = vmatpush.msra.mxu0 %v1137
    %1190 = vmatpush.msra.mxu0 %v1135
    %1191 = vmatpush.msra.mxu0 %v1133
    %1192 = vmatpush.msra.mxu0 %v1131
    %1193 = vmatpush.msra.mxu0 %v1129
    %1194 = vmatpush.msra.mxu0 %v1127
    %1195 = vmatpush.msra.mxu0 %v1125
    %1196 = vmatpush.msra.mxu0 %v1123
    %1197 = vmatmul.f32.gmra.mxu0 %v1151
    %v1198 = vpop.f32.mrf.mxu0
    %v1199 = vadd.f32 0.0, %v1198
    %1200 = vmatmul.f32.gmra.mxu0 %v1154
    %v1201 = vpop.f32.mrf.mxu0
    %v1202 = vadd.f32 0.0, %v1201
    %1203 = vmatmul.f32.gmra.mxu0 %v1157
    %v1204 = vpop.f32.mrf.mxu0
    %v1205 = vadd.f32 0.0, %v1204
    %1206 = vmatmul.f32.gmra.mxu0 %v1160
    %v1207 = vpop.f32.mrf.mxu0
    %v1208 = vadd.f32 0.0, %v1207
    %1209 = vmatmul.f32.gmra.mxu0 %v1163
    %v1210 = vpop.f32.mrf.mxu0
    %v1211 = vadd.f32 0.0, %v1210
    %1212 = vmatmul.f32.gmra.mxu0 %v1166
    %v1213 = vpop.f32.mrf.mxu0
    %v1214 = vadd.f32 0.0, %v1213
    %1215 = vmatmul.f32.gmra.mxu0 %v1169
    %v1216 = vpop.f32.mrf.mxu0
    %v1217 = vadd.f32 0.0, %v1216
    %1218 = vmatmul.f32.gmra.mxu0 %v1172
    %v1219 = vpop.f32.mrf.mxu0
    %v1220 = vadd.f32 0.0, %v1219
    %1221 = vdwg.mxu0
    %1222 = vmatpush.msra.mxu0 0.0
    %1223 = vmatpush.msra.mxu0 0.0
    %1224 = vmatpush.msra.mxu0 0.0
    %1225 = vmatpush.msra.mxu0 %v1179
    %1226 = vmatpush.msra.mxu0 %v1146
    %1227 = vmatpush.msra.mxu0 %v1144
    %1228 = vmatpush.msra.mxu0 %v1142
    %1229 = vmatpush.msra.mxu0 %v1140
    %1230 = vmatpush.msra.mxu0 %v1138
    %1231 = vmatpush.msra.mxu0 %v1136
    %1232 = vmatpush.msra.mxu0 %v1134
    %1233 = vmatpush.msra.mxu0 %v1132
    %1234 = vmatpush.msra.mxu0 %v1130
    %1235 = vmatpush.msra.mxu0 %v1128
    %1236 = vmatpush.msra.mxu0 %v1126
    %1237 = vmatpush.msra.mxu0 %v1124
    %1238 = vmatmul.f32.gmra.mxu0 %v1151
    %v1239 = vpop.f32.mrf.mxu0
    %v1240 = vadd.f32 0.0, %v1239
    %1241 = vmatmul.f32.gmra.mxu0 %v1154
    %v1242 = vpop.f32.mrf.mxu0
    %v1243 = vadd.f32 0.0, %v1242
    %1244 = vmatmul.f32.gmra.mxu0 %v1157
    %v1245 = vpop.f32.mrf.mxu0
    %v1246 = vadd.f32 0.0, %v1245
    %1247 = vmatmul.f32.gmra.mxu0 %v1160
    %v1248 = vpop.f32.mrf.mxu0
    %v1249 = vadd.f32 0.0, %v1248
    %1250 = vmatmul.f32.gmra.mxu0 %v1163
    %v1251 = vpop.f32.mrf.mxu0
    %v1252 = vadd.f32 0.0, %v1251
    %1253 = vmatmul.f32.gmra.mxu0 %v1166
    %v1254 = vpop.f32.mrf.mxu0
    %v1255 = vadd.f32 0.0, %v1254
    %1256 = vmatmul.f32.gmra.mxu0 %v1169
    %v1257 = vpop.f32.mrf.mxu0
    %v1258 = vadd.f32 0.0, %v1257
    %1259 = vmatmul.f32.gmra.mxu0 %v1172
    %v1260 = vpop.f32.mrf.mxu0
    %v1261 = vadd.f32 0.0, %v1260
    %1262 = vdwg.mxu0
    %v1264 = vsel %vm1149, %v1015, 0
    %v1267 = vsel %vm1149, %v1016, 0
    %v1270 = vsel %vm1149, %v1017, 0
    %v1273 = vsel %vm1149, %v1018, 0
    %v1276 = vsel %vm1149, %v1019, 0
    %v1279 = vsel %vm1149, %v1020, 0
    %v1282 = vsel %vm1149, %v1021, 0
    %v1285 = vsel %vm1149, %v1022, 0
    %v1288 = vsel %vm1174, %v1048, 0
    %v1291 = vsel %vm1174, %v1049, 0
    %1293 = vmatpush.msra.mxu0 0.0
    %1294 = vmatpush.msra.mxu0 0.0
    %1295 = vmatpush.msra.mxu0 0.0
    %1296 = vmatpush.msra.mxu0 %v1288
    %1297 = vmatpush.msra.mxu0 %v1046
    %1298 = vmatpush.msra.mxu0 %v1044
    %1299 = vmatpush.msra.mxu0 %v1042
    %1300 = vmatpush.msra.mxu0 %v1040
    %1301 = vmatpush.msra.mxu0 %v1038
    %1302 = vmatpush.msra.mxu0 %v1036
    %1303 = vmatpush.msra.mxu0 %v1034
    %1304 = vmatpush.msra.mxu0 %v1032
    %1305 = vmatpush.msra.mxu0 %v1030
    %1306 = vmatpush.msra.mxu0 %v1028
    %1307 = vmatpush.msra.mxu0 %v1026
    %1308 = vmatpush.msra.mxu0 %v1024
    %1309 = vmatmul.f32.gmra.mxu0 %v1264
    %v1310 = vpop.f32.mrf.mxu0
    %v1311 = vadd.f32 %v1199, %v1310
    %1312 = vmatmul.f32.gmra.mxu0 %v1267
    %v1313 = vpop.f32.mrf.mxu0
    %v1314 = vadd.f32 %v1202, %v1313
    %1315 = vmatmul.f32.gmra.mxu0 %v1270
    %v1316 = vpop.f32.mrf.mxu0
    %v1317 = vadd.f32 %v1205, %v1316
    %1318 = vmatmul.f32.gmra.mxu0 %v1273
    %v1319 = vpop.f32.mrf.mxu0
    %v1320 = vadd.f32 %v1208, %v1319
    %1321 = vmatmul.f32.gmra.mxu0 %v1276
    %v1322 = vpop.f32.mrf.mxu0
    %v1323 = vadd.f32 %v1211, %v1322
    %1324 = vmatmul.f32.gmra.mxu0 %v1279
    %v1325 = vpop.f32.mrf.mxu0
    %v1326 = vadd.f32 %v1214, %v1325
    %1327 = vmatmul.f32.gmra.mxu0 %v1282
    %v1328 = vpop.f32.mrf.mxu0
    %v1329 = vadd.f32 %v1217, %v1328
    %1330 = vmatmul.f32.gmra.mxu0 %v1285
    %v1331 = vpop.f32.mrf.mxu0
    %v1332 = vadd.f32 %v1220, %v1331
    %1333 = vdwg.mxu0
    %1334 = vmatpush.msra.mxu0 0.0
    %1335 = vmatpush.msra.mxu0 0.0
    %1336 = vmatpush.msra.mxu0 0.0
    %1337 = vmatpush.msra.mxu0 %v1291
    %1338 = vmatpush.msra.mxu0 %v1047
    %1339 = vmatpush.msra.mxu0 %v1045
    %1340 = vmatpush.msra.mxu0 %v1043
    %1341 = vmatpush.msra.mxu0 %v1041
    %1342 = vmatpush.msra.mxu0 %v1039
    %1343 = vmatpush.msra.mxu0 %v1037
    %1344 = vmatpush.msra.mxu0 %v1035
    %1345 = vmatpush.msra.mxu0 %v1033
    %1346 = vmatpush.msra.mxu0 %v1031
    %1347 = vmatpush.msra.mxu0 %v1029
    %1348 = vmatpush.msra.mxu0 %v1027
    %1349 = vmatpush.msra.mxu0 %v1025
    %1350 = vmatmul.f32.gmra.mxu0 %v1264
    %v1351 = vpop.f32.mrf.mxu0
    %v1352 = vadd.f32 %v1240, %v1351
    %1353 = vmatmul.f32.gmra.mxu0 %v1267
    %v1354 = vpop.f32.mrf.mxu0
    %v1355 = vadd.f32 %v1243, %v1354
    %1356 = vmatmul.f32.gmra.mxu0 %v1270
    %v1357 = vpop.f32.mrf.mxu0
    %v1358 = vadd.f32 %v1246, %v1357
    %1359 = vmatmul.f32.gmra.mxu0 %v1273
    %v1360 = vpop.f32.mrf.mxu0
    %v1361 = vadd.f32 %v1249, %v1360
    %1362 = vmatmul.f32.gmra.mxu0 %v1276
    %v1363 = vpop.f32.mrf.mxu0
    %v1364 = vadd.f32 %v1252, %v1363
    %1365 = vmatmul.f32.gmra.mxu0 %v1279
    %v1366 = vpop.f32.mrf.mxu0
    %v1367 = vadd.f32 %v1255, %v1366
    %1368 = vmatmul.f32.gmra.mxu0 %v1282
    %v1369 = vpop.f32.mrf.mxu0
    %v1370 = vadd.f32 %v1258, %v1369
    %1371 = vmatmul.f32.gmra.mxu0 %v1285
    %v1372 = vpop.f32.mrf.mxu0
    %v1373 = vadd.f32 %v1261, %v1372
    %1374 = vdwg.mxu0
    %s1375 = scalar_lea.vmem %s9, 64
    %v1376 = vld [vmem:[%s1375] sm:$0xff]
    %v1377 = vld [vmem:[%s1375 + $0x8] sm:$0xff]
    %v1378 = vld [vmem:[%s1375 + $0x10] sm:$0xff]
    %v1379 = vld [vmem:[%s1375 + $0x18] sm:$0xff]
    %v1380 = vld [vmem:[%s1375 + $0x20] sm:$0xff]
    %v1381 = vld [vmem:[%s1375 + $0x28] sm:$0xff]
    %v1382 = vld [vmem:[%s1375 + $0x30] sm:$0xff]
    %v1383 = vld [vmem:[%s1375 + $0x38] sm:$0xff]
    %v1385 = vsel %vm452, %v1376, 0
    %v1388 = vsel %vm452, %v1377, 0
    %v1391 = vsel %vm452, %v1378, 0
    %v1394 = vsel %vm452, %v1379, 0
    %v1397 = vsel %vm452, %v1380, 0
    %v1400 = vsel %vm452, %v1381, 0
    %v1403 = vsel %vm452, %v1382, 0
    %v1406 = vsel %vm452, %v1383, 0
    %1408 = vmatpush.msra.mxu0 0.0
    %1409 = vmatpush.msra.mxu0 0.0
    %1410 = vmatpush.msra.mxu0 0.0
    %1411 = vmatpush.msra.mxu0 0.0
    %1412 = vmatpush.msra.mxu0 0.0
    %1413 = vmatpush.msra.mxu0 0.0
    %1414 = vmatpush.msra.mxu0 0.0
    %1415 = vmatpush.msra.mxu0 0.0
    %1416 = vmatpush.msra.mxu0 %v1022
    %1417 = vmatpush.msra.mxu0 %v1021
    %1418 = vmatpush.msra.mxu0 %v1020
    %1419 = vmatpush.msra.mxu0 %v1019
    %1420 = vmatpush.msra.mxu0 %v1018
    %1421 = vmatpush.msra.mxu0 %v1017
    %1422 = vmatpush.msra.mxu0 %v1016
    %1423 = vmatpush.msra.mxu0 %v1015
    %1424 = vmatmul.f32.gmra.mxu0 %v1385
    %v1425 = vpop.f32.mrf.mxu0
    %v1426 = vadd.f32 0.0, %v1425
    %1427 = vmatmul.f32.gmra.mxu0 %v1388
    %v1428 = vpop.f32.mrf.mxu0
    %v1429 = vadd.f32 0.0, %v1428
    %1430 = vmatmul.f32.gmra.mxu0 %v1391
    %v1431 = vpop.f32.mrf.mxu0
    %v1432 = vadd.f32 0.0, %v1431
    %1433 = vmatmul.f32.gmra.mxu0 %v1394
    %v1434 = vpop.f32.mrf.mxu0
    %v1435 = vadd.f32 0.0, %v1434
    %1436 = vmatmul.f32.gmra.mxu0 %v1397
    %v1437 = vpop.f32.mrf.mxu0
    %v1438 = vadd.f32 0.0, %v1437
    %1439 = vmatmul.f32.gmra.mxu0 %v1400
    %v1440 = vpop.f32.mrf.mxu0
    %v1441 = vadd.f32 0.0, %v1440
    %1442 = vmatmul.f32.gmra.mxu0 %v1403
    %v1443 = vpop.f32.mrf.mxu0
    %v1444 = vadd.f32 0.0, %v1443
    %1445 = vmatmul.f32.gmra.mxu0 %v1406
    %v1446 = vpop.f32.mrf.mxu0
    %v1447 = vadd.f32 0.0, %v1446
    %1448 = vdwg.mxu0
    %s1449 = scalar_lea.vmem %s7, 416
    %v1450 = vld [vmem:[%s1449] sm:$0xff]
    %v1451 = vld [vmem:[%s1449 + $0x8] sm:$0xff]
    %v1452 = vld [vmem:[%s1449 + $0x10] sm:$0xff]
    %v1453 = vld [vmem:[%s1449 + $0x18] sm:$0xff]
    %v1454 = vld [vmem:[%s1449 + $0x20] sm:$0xff]
    %v1455 = vld [vmem:[%s1449 + $0x28] sm:$0xff]
    %v1456 = vld [vmem:[%s1449 + $0x30] sm:$0xff]
    %v1457 = vld [vmem:[%s1449 + $0x38] sm:$0xff]
    %v1458 = vld [vmem:[%s1449 + $0x40] sm:$0xff]
    %v1459 = vld [vmem:[%s1449 + $0x48] sm:$0xff]
    %v1460 = vld [vmem:[%s1449 + $0x50] sm:$0xff]
    %v1461 = vld [vmem:[%s1449 + $0x58] sm:$0xff]
    %v1462 = vld [vmem:[%s1449 + $0x60] sm:$0xff]
    %v1463 = vld [vmem:[%s1449 + $0x68] sm:$0xff]
    %v1464 = vld [vmem:[%s1449 + $0x70] sm:$0xff]
    %v1465 = vld [vmem:[%s1449 + $0x78] sm:$0xff]
    %v1466 = vld [vmem:[%s1449 + $0x80] sm:$0xff]
    %v1467 = vld [vmem:[%s1449 + $0x88] sm:$0xff]
    %v1468 = vld [vmem:[%s1449 + $0x90] sm:$0xff]
    %v1469 = vld [vmem:[%s1449 + $0x98] sm:$0xff]
    %v1470 = vld [vmem:[%s1449 + $0xa0] sm:$0xff]
    %v1471 = vld [vmem:[%s1449 + $0xa8] sm:$0xff]
    %v1472 = vld [vmem:[%s1449 + $0xb0] sm:$0xff]
    %v1473 = vld [vmem:[%s1449 + $0xb8] sm:$0xff]
    %v1474 = vld [vmem:[%s1449 + $0xc0] sm:$0x3f]
    %v1475 = vld [vmem:[%s1449 + $0xc8] sm:$0x3f]
    %v1477 = vsel %vm1149, %v1426, 0
    %v1480 = vsel %vm1149, %v1429, 0
    %v1483 = vsel %vm1149, %v1432, 0
    %v1486 = vsel %vm1149, %v1435, 0
    %v1489 = vsel %vm1149, %v1438, 0
    %v1492 = vsel %vm1149, %v1441, 0
    %v1495 = vsel %vm1149, %v1444, 0
    %v1498 = vsel %vm1149, %v1447, 0
    %v1501 = vsel %vm1174, %v1474, 0
    %v1504 = vsel %vm1174, %v1475, 0
    %1506 = vmatpush.msra.mxu0 0.0
    %1507 = vmatpush.msra.mxu0 0.0
    %1508 = vmatpush.msra.mxu0 0.0
    %1509 = vmatpush.msra.mxu0 %v1501
    %1510 = vmatpush.msra.mxu0 %v1472
    %1511 = vmatpush.msra.mxu0 %v1470
    %1512 = vmatpush.msra.mxu0 %v1468
    %1513 = vmatpush.msra.mxu0 %v1466
    %1514 = vmatpush.msra.mxu0 %v1464
    %1515 = vmatpush.msra.mxu0 %v1462
    %1516 = vmatpush.msra.mxu0 %v1460
    %1517 = vmatpush.msra.mxu0 %v1458
    %1518 = vmatpush.msra.mxu0 %v1456
    %1519 = vmatpush.msra.mxu0 %v1454
    %1520 = vmatpush.msra.mxu0 %v1452
    %1521 = vmatpush.msra.mxu0 %v1450
    %1522 = vmatmul.f32.gmra.mxu0 %v1477
    %v1523 = vpop.f32.mrf.mxu0
    %v1524 = vadd.f32 0.0, %v1523
    %1525 = vmatmul.f32.gmra.mxu0 %v1480
    %v1526 = vpop.f32.mrf.mxu0
    %v1527 = vadd.f32 0.0, %v1526
    %1528 = vmatmul.f32.gmra.mxu0 %v1483
    %v1529 = vpop.f32.mrf.mxu0
    %v1530 = vadd.f32 0.0, %v1529
    %1531 = vmatmul.f32.gmra.mxu0 %v1486
    %v1532 = vpop.f32.mrf.mxu0
    %v1533 = vadd.f32 0.0, %v1532
    %1534 = vmatmul.f32.gmra.mxu0 %v1489
    %v1535 = vpop.f32.mrf.mxu0
    %v1536 = vadd.f32 0.0, %v1535
    %1537 = vmatmul.f32.gmra.mxu0 %v1492
    %v1538 = vpop.f32.mrf.mxu0
    %v1539 = vadd.f32 0.0, %v1538
    %1540 = vmatmul.f32.gmra.mxu0 %v1495
    %v1541 = vpop.f32.mrf.mxu0
    %v1542 = vadd.f32 0.0, %v1541
    %1543 = vmatmul.f32.gmra.mxu0 %v1498
    %v1544 = vpop.f32.mrf.mxu0
    %v1545 = vadd.f32 0.0, %v1544
    %1546 = vdwg.mxu0
    %1547 = vmatpush.msra.mxu0 0.0
    %1548 = vmatpush.msra.mxu0 0.0
    %1549 = vmatpush.msra.mxu0 0.0
    %1550 = vmatpush.msra.mxu0 %v1504
    %1551 = vmatpush.msra.mxu0 %v1473
    %1552 = vmatpush.msra.mxu0 %v1471
    %1553 = vmatpush.msra.mxu0 %v1469
    %1554 = vmatpush.msra.mxu0 %v1467
    %1555 = vmatpush.msra.mxu0 %v1465
    %1556 = vmatpush.msra.mxu0 %v1463
    %1557 = vmatpush.msra.mxu0 %v1461
    %1558 = vmatpush.msra.mxu0 %v1459
    %1559 = vmatpush.msra.mxu0 %v1457
    %1560 = vmatpush.msra.mxu0 %v1455
    %1561 = vmatpush.msra.mxu0 %v1453
    %1562 = vmatpush.msra.mxu0 %v1451
    %1563 = vmatmul.f32.gmra.mxu0 %v1477
    %v1564 = vpop.f32.mrf.mxu0
    %v1565 = vadd.f32 0.0, %v1564
    %1566 = vmatmul.f32.gmra.mxu0 %v1480
    %v1567 = vpop.f32.mrf.mxu0
    %v1568 = vadd.f32 0.0, %v1567
    %1569 = vmatmul.f32.gmra.mxu0 %v1483
    %v1570 = vpop.f32.mrf.mxu0
    %v1571 = vadd.f32 0.0, %v1570
    %1572 = vmatmul.f32.gmra.mxu0 %v1486
    %v1573 = vpop.f32.mrf.mxu0
    %v1574 = vadd.f32 0.0, %v1573
    %1575 = vmatmul.f32.gmra.mxu0 %v1489
    %v1576 = vpop.f32.mrf.mxu0
    %v1577 = vadd.f32 0.0, %v1576
    %1578 = vmatmul.f32.gmra.mxu0 %v1492
    %v1579 = vpop.f32.mrf.mxu0
    %v1580 = vadd.f32 0.0, %v1579
    %1581 = vmatmul.f32.gmra.mxu0 %v1495
    %v1582 = vpop.f32.mrf.mxu0
    %v1583 = vadd.f32 0.0, %v1582
    %1584 = vmatmul.f32.gmra.mxu0 %v1498
    %v1585 = vpop.f32.mrf.mxu0
    %v1586 = vadd.f32 0.0, %v1585
    %1587 = vdwg.mxu0
    %v1588 = vadd.f32 %v1311, %v1524
    %v1589 = vadd.f32 %v1352, %v1565
    %v1590 = vadd.f32 %v1314, %v1527
    %v1591 = vadd.f32 %v1355, %v1568
    %v1592 = vadd.f32 %v1317, %v1530
    %v1593 = vadd.f32 %v1358, %v1571
    %v1594 = vadd.f32 %v1320, %v1533
    %v1595 = vadd.f32 %v1361, %v1574
    %v1596 = vadd.f32 %v1323, %v1536
    %v1597 = vadd.f32 %v1364, %v1577
    %v1598 = vadd.f32 %v1326, %v1539
    %v1599 = vadd.f32 %v1367, %v1580
    %v1600 = vadd.f32 %v1329, %v1542
    %v1601 = vadd.f32 %v1370, %v1583
    %v1602 = vadd.f32 %v1332, %v1545
    %v1603 = vadd.f32 %v1373, %v1586
    %v1604 = vld [vmem:[%s15] sm:$0xff]
    %v1605 = vld [vmem:[%s15 + $0x8] sm:$0xff]
    %v1606 = vld [vmem:[%s15 + $0x10] sm:$0xff]
    %v1607 = vld [vmem:[%s15 + $0x18] sm:$0xff]
    %v1608 = vld [vmem:[%s15 + $0x20] sm:$0xff]
    %v1609 = vld [vmem:[%s15 + $0x28] sm:$0xff]
    %v1610 = vld [vmem:[%s15 + $0x30] sm:$0xff]
    %v1611 = vld [vmem:[%s15 + $0x38] sm:$0xff]
    %v1612 = vld [vmem:[%s15 + $0x40] sm:$0xff]
    %v1613 = vld [vmem:[%s15 + $0x48] sm:$0xff]
    %v1614 = vld [vmem:[%s15 + $0x50] sm:$0xff]
    %v1615 = vld [vmem:[%s15 + $0x58] sm:$0xff]
    %v1616 = vld [vmem:[%s15 + $0x60] sm:$0xff]
    %v1617 = vld [vmem:[%s15 + $0x68] sm:$0xff]
    %v1618 = vld [vmem:[%s15 + $0x70] sm:$0xff]
    %v1619 = vld [vmem:[%s15 + $0x78] sm:$0xff]
    %v1620 = vld [vmem:[%s15 + $0x80] sm:$0xff]
    %v1621 = vld [vmem:[%s15 + $0x88] sm:$0xff]
    %v1622 = vld [vmem:[%s15 + $0x90] sm:$0xff]
    %v1623 = vld [vmem:[%s15 + $0x98] sm:$0xff]
    %v1624 = vld [vmem:[%s15 + $0xa0] sm:$0xff]
    %v1625 = vld [vmem:[%s15 + $0xa8] sm:$0xff]
    %v1626 = vld [vmem:[%s15 + $0xb0] sm:$0xff]
    %v1627 = vld [vmem:[%s15 + $0xb8] sm:$0xff]
    %v1628 = vld [vmem:[%s15 + $0xc0] sm:$0xff]
    %v1629 = vld [vmem:[%s15 + $0xc8] sm:$0xff]
    %v1630 = vld [vmem:[%s15 + $0xd0] sm:$0xff]
    %v1631 = vld [vmem:[%s15 + $0xd8] sm:$0xff]
    %v1632 = vld [vmem:[%s15 + $0xe0] sm:$0xff]
    %v1633 = vld [vmem:[%s15 + $0xe8] sm:$0xff]
    %v1634 = vld [vmem:[%s15 + $0xf0] sm:$0xff]
    %v1635 = vld [vmem:[%s15 + $0xf8] sm:$0xff]
    %v1636 = vld [vmem:[#allocation7] sm:$0xff]
    %v1637 = vld [vmem:[#allocation7 + $0x8] sm:$0xff]
    %v1638 = vadd.f32 %v1588, %v1590
    %v1639 = vadd.f32 %v1638, %v1592
    %v1640 = vadd.f32 %v1639, %v1594
    %v1641 = vadd.f32 %v1640, %v1596
    %v1642 = vadd.f32 %v1641, %v1598
    %v1643 = vadd.f32 %v1642, %v1600
    %v1644 = vadd.f32 %v1643, %v1602
    %v1645 = vrot.slane %v1644, 4
    %v1646 = vadd.f32 %v1644, %v1645
    %v1647 = vrot.slane %v1646, 2
    %v1648 = vadd.f32 %v1646, %v1647
    %v1649 = vrot.slane %v1648, 1
    %v1650 = vadd.f32 %v1648, %v1649
    %v1651 = vadd.f32 %v1589, %v1591
    %v1652 = vadd.f32 %v1651, %v1593
    %v1653 = vadd.f32 %v1652, %v1595
    %v1654 = vadd.f32 %v1653, %v1597
    %v1655 = vadd.f32 %v1654, %v1599
    %v1656 = vadd.f32 %v1655, %v1601
    %v1657 = vadd.f32 %v1656, %v1603
    %v1658 = vrot.slane %v1657, 4
    %v1659 = vadd.f32 %v1657, %v1658
    %v1660 = vrot.slane %v1659, 2
    %v1661 = vadd.f32 %v1659, %v1660
    %v1662 = vrot.slane %v1661, 1
    %v1663 = vadd.f32 %v1661, %v1662
    %1664 = vmatpush.msra.mxu0 %v1619
    %1665 = vmatpush.msra.mxu0 %v1618
    %1666 = vmatpush.msra.mxu0 %v1617
    %1667 = vmatpush.msra.mxu0 %v1616
    %1668 = vmatpush.msra.mxu0 %v1615
    %1669 = vmatpush.msra.mxu0 %v1614
    %1670 = vmatpush.msra.mxu0 %v1613
    %1671 = vmatpush.msra.mxu0 %v1612
    %1672 = vmatpush.msra.mxu0 %v1611
    %1673 = vmatpush.msra.mxu0 %v1610
    %1674 = vmatpush.msra.mxu0 %v1609
    %1675 = vmatpush.msra.mxu0 %v1608
    %1676 = vmatpush.msra.mxu0 %v1607
    %1677 = vmatpush.msra.mxu0 %v1606
    %1678 = vmatpush.msra.mxu0 %v1605
    %1679 = vmatpush.msra.mxu0 %v1604
    %1680 = vmatmul.f32.gmra.mxu0 %v1650
    %v1681 = vpop.f32.mrf.mxu0
    %v1682 = vadd.f32 0.0, %v1681
    %1683 = vdwg.mxu0
    %1684 = vmatpush.msra.mxu0 %v1635
    %1685 = vmatpush.msra.mxu0 %v1634
    %1686 = vmatpush.msra.mxu0 %v1633
    %1687 = vmatpush.msra.mxu0 %v1632
    %1688 = vmatpush.msra.mxu0 %v1631
    %1689 = vmatpush.msra.mxu0 %v1630
    %1690 = vmatpush.msra.mxu0 %v1629
    %1691 = vmatpush.msra.mxu0 %v1628
    %1692 = vmatpush.msra.mxu0 %v1627
    %1693 = vmatpush.msra.mxu0 %v1626
    %1694 = vmatpush.msra.mxu0 %v1625
    %1695 = vmatpush.msra.mxu0 %v1624
    %1696 = vmatpush.msra.mxu0 %v1623
    %1697 = vmatpush.msra.mxu0 %v1622
    %1698 = vmatpush.msra.mxu0 %v1621
    %1699 = vmatpush.msra.mxu0 %v1620
    %1700 = vmatmul.f32.gmra.mxu0 %v1663
    %v1701 = vpop.f32.mrf.mxu0
    %v1702 = vadd.f32 %v1682, %v1701
    %1703 = vdwg.mxu0
    %v1704 = vmul.f32 %v1702, 0.00048828125
    %vm1705 = vcmask 64512
    %v1707 = vsel %vm1705, %v1704, 0
    %1709 = vmatpush.msra.mxu0 0.0
    %1710 = vmatpush.msra.mxu0 0.0
    %1711 = vmatpush.msra.mxu0 0.0
    %1712 = vmatpush.msra.mxu0 0.0
    %1713 = vmatpush.msra.mxu0 0.0
    %1714 = vmatpush.msra.mxu0 0.0
    %1715 = vmatpush.msra.mxu0 0.0
    %1716 = vmatpush.msra.mxu0 0.0
    %1717 = vmatpush.msra.mxu0 0.0
    %1718 = vmatpush.msra.mxu0 0.0
    %1719 = vmatpush.msra.mxu0 0.0
    %1720 = vmatpush.msra.mxu0 0.0
    %1721 = vmatpush.msra.mxu0 0.0
    %1722 = vmatpush.msra.mxu0 0.0
    %1723 = vmatpush.msra.mxu0 0.0
    %1724 = vmatpush.msra.mxu0 %v1636
    %1725 = vmatmul.f32.gmra.mxu0 %v1707
    %v1726 = vpop.f32.mrf.mxu0
    %v1727 = vadd.f32 0.0, %v1726
    %1728 = vdwg.mxu0
    %1729 = vmatpush.msra.mxu0 0.0
    %1730 = vmatpush.msra.mxu0 0.0
    %1731 = vmatpush.msra.mxu0 0.0
    %1732 = vmatpush.msra.mxu0 0.0
    %1733 = vmatpush.msra.mxu0 0.0
    %1734 = vmatpush.msra.mxu0 0.0
    %1735 = vmatpush.msra.mxu0 0.0
    %1736 = vmatpush.msra.mxu0 0.0
    %1737 = vmatpush.msra.mxu0 0.0
    %1738 = vmatpush.msra.mxu0 0.0
    %1739 = vmatpush.msra.mxu0 0.0
    %1740 = vmatpush.msra.mxu0 0.0
    %1741 = vmatpush.msra.mxu0 0.0
    %1742 = vmatpush.msra.mxu0 0.0
    %1743 = vmatpush.msra.mxu0 0.0
    %1744 = vmatpush.msra.mxu0 %v1637
    %1745 = vmatmul.f32.gmra.mxu0 %v1707
    %v1746 = vpop.f32.mrf.mxu0
    %v1747 = vadd.f32 0.0, %v1746
    %1748 = vdwg.mxu0
    %v1749 = vperm.slane %v1727, 0
    %v1750 = vperm.slane %v1747, 0
    %v1751 = vsub.f32 %v1588, %v1749
    %v1752 = vsub.f32 %v1589, %v1750
    %v1753 = vsub.f32 %v1590, %v1749
    %v1754 = vsub.f32 %v1591, %v1750
    %v1755 = vsub.f32 %v1592, %v1749
    %v1756 = vsub.f32 %v1593, %v1750
    %v1757 = vsub.f32 %v1594, %v1749
    %v1758 = vsub.f32 %v1595, %v1750
    %v1759 = vsub.f32 %v1596, %v1749
    %v1760 = vsub.f32 %v1597, %v1750
    %v1761 = vsub.f32 %v1598, %v1749
    %v1762 = vsub.f32 %v1599, %v1750
    %v1763 = vsub.f32 %v1600, %v1749
    %v1764 = vsub.f32 %v1601, %v1750
    %v1765 = vsub.f32 %v1602, %v1749
    %v1766 = vsub.f32 %v1603, %v1750
    %v1767 = vmul.f32 %v1751, %v1751
    %v1768 = vmul.f32 %v1752, %v1752
    %v1769 = vmul.f32 %v1753, %v1753
    %v1770 = vmul.f32 %v1754, %v1754
    %v1771 = vmul.f32 %v1755, %v1755
    %v1772 = vmul.f32 %v1756, %v1756
    %v1773 = vmul.f32 %v1757, %v1757
    %v1774 = vmul.f32 %v1758, %v1758
    %v1775 = vmul.f32 %v1759, %v1759
    %v1776 = vmul.f32 %v1760, %v1760
    %v1777 = vmul.f32 %v1761, %v1761
    %v1778 = vmul.f32 %v1762, %v1762
    %v1779 = vmul.f32 %v1763, %v1763
    %v1780 = vmul.f32 %v1764, %v1764
    %v1781 = vmul.f32 %v1765, %v1765
    %v1782 = vmul.f32 %v1766, %v1766
    %v1783 = vadd.f32 %v1767, %v1769
    %v1784 = vadd.f32 %v1783, %v1771
    %v1785 = vadd.f32 %v1784, %v1773
    %v1786 = vadd.f32 %v1785, %v1775
    %v1787 = vadd.f32 %v1786, %v1777
    %v1788 = vadd.f32 %v1787, %v1779
    %v1789 = vadd.f32 %v1788, %v1781
    %v1790 = vrot.slane %v1789, 4
    %v1791 = vadd.f32 %v1789, %v1790
    %v1792 = vrot.slane %v1791, 2
    %v1793 = vadd.f32 %v1791, %v1792
    %v1794 = vrot.slane %v1793, 1
    %v1795 = vadd.f32 %v1793, %v1794
    %v1796 = vadd.f32 %v1768, %v1770
    %v1797 = vadd.f32 %v1796, %v1772
    %v1798 = vadd.f32 %v1797, %v1774
    %v1799 = vadd.f32 %v1798, %v1776
    %v1800 = vadd.f32 %v1799, %v1778
    %v1801 = vadd.f32 %v1800, %v1780
    %v1802 = vadd.f32 %v1801, %v1782
    %v1803 = vrot.slane %v1802, 4
    %v1804 = vadd.f32 %v1802, %v1803
    %v1805 = vrot.slane %v1804, 2
    %v1806 = vadd.f32 %v1804, %v1805
    %v1807 = vrot.slane %v1806, 1
    %v1808 = vadd.f32 %v1806, %v1807
    %1809 = vmatpush.msra.mxu0 %v1619
    %1810 = vmatpush.msra.mxu0 %v1618
    %1811 = vmatpush.msra.mxu0 %v1617
    %1812 = vmatpush.msra.mxu0 %v1616
    %1813 = vmatpush.msra.mxu0 %v1615
    %1814 = vmatpush.msra.mxu0 %v1614
    %1815 = vmatpush.msra.mxu0 %v1613
    %1816 = vmatpush.msra.mxu0 %v1612
    %1817 = vmatpush.msra.mxu0 %v1611
    %1818 = vmatpush.msra.mxu0 %v1610
    %1819 = vmatpush.msra.mxu0 %v1609
    %1820 = vmatpush.msra.mxu0 %v1608
    %1821 = vmatpush.msra.mxu0 %v1607
    %1822 = vmatpush.msra.mxu0 %v1606
    %1823 = vmatpush.msra.mxu0 %v1605
    %1824 = vmatpush.msra.mxu0 %v1604
    %1825 = vmatmul.f32.gmra.mxu0 %v1795
    %v1826 = vpop.f32.mrf.mxu0
    %v1827 = vadd.f32 0.0, %v1826
    %1828 = vdwg.mxu0
    %1829 = vmatpush.msra.mxu0 %v1635
    %1830 = vmatpush.msra.mxu0 %v1634
    %1831 = vmatpush.msra.mxu0 %v1633
    %1832 = vmatpush.msra.mxu0 %v1632
    %1833 = vmatpush.msra.mxu0 %v1631
    %1834 = vmatpush.msra.mxu0 %v1630
    %1835 = vmatpush.msra.mxu0 %v1629
    %1836 = vmatpush.msra.mxu0 %v1628
    %1837 = vmatpush.msra.mxu0 %v1627
    %1838 = vmatpush.msra.mxu0 %v1626
    %1839 = vmatpush.msra.mxu0 %v1625
    %1840 = vmatpush.msra.mxu0 %v1624
    %1841 = vmatpush.msra.mxu0 %v1623
    %1842 = vmatpush.msra.mxu0 %v1622
    %1843 = vmatpush.msra.mxu0 %v1621
    %1844 = vmatpush.msra.mxu0 %v1620
    %1845 = vmatmul.f32.gmra.mxu0 %v1808
    %v1846 = vpop.f32.mrf.mxu0
    %v1847 = vadd.f32 %v1827, %v1846
    %1848 = vdwg.mxu0
    %v1849 = vmul.f32 %v1847, 0.00048828125
    %v1850 = vadd.f32 %v1849, 1e-05
    %v1851 = vrsqrt.pop %v1850
    %v1852 = vmul.f32 %v1851, %v1850
    %v1853 = vmul.f32 %v1852, %v1851
    %v1854 = vmul.f32 0.5, %v1853
    %v1855 = vsub.f32 1.5, %v1854
    %v1856 = vmul.f32 %v1851, %v1855
    %vm1857 = vweird.f32 %v1850
    %vm1858 = vweird.f32 %v1851
    %vm1859 = vmor %vm1857, %vm1858
    %v1860 = vsel %vm1859, %v1851, %v1856
    %v1862 = vsel %vm1705, %v1860, 0
    %1864 = vmatpush.msra.mxu0 0.0
    %1865 = vmatpush.msra.mxu0 0.0
    %1866 = vmatpush.msra.mxu0 0.0
    %1867 = vmatpush.msra.mxu0 0.0
    %1868 = vmatpush.msra.mxu0 0.0
    %1869 = vmatpush.msra.mxu0 0.0
    %1870 = vmatpush.msra.mxu0 0.0
    %1871 = vmatpush.msra.mxu0 0.0
    %1872 = vmatpush.msra.mxu0 0.0
    %1873 = vmatpush.msra.mxu0 0.0
    %1874 = vmatpush.msra.mxu0 0.0
    %1875 = vmatpush.msra.mxu0 0.0
    %1876 = vmatpush.msra.mxu0 0.0
    %1877 = vmatpush.msra.mxu0 0.0
    %1878 = vmatpush.msra.mxu0 0.0
    %1879 = vmatpush.msra.mxu0 %v1636
    %1880 = vmatmul.f32.gmra.mxu0 %v1862
    %v1881 = vpop.f32.mrf.mxu0
    %v1882 = vadd.f32 0.0, %v1881
    %1883 = vdwg.mxu0
    %1884 = vmatpush.msra.mxu0 0.0
    %1885 = vmatpush.msra.mxu0 0.0
    %1886 = vmatpush.msra.mxu0 0.0
    %1887 = vmatpush.msra.mxu0 0.0
    %1888 = vmatpush.msra.mxu0 0.0
    %1889 = vmatpush.msra.mxu0 0.0
    %1890 = vmatpush.msra.mxu0 0.0
    %1891 = vmatpush.msra.mxu0 0.0
    %1892 = vmatpush.msra.mxu0 0.0
    %1893 = vmatpush.msra.mxu0 0.0
    %1894 = vmatpush.msra.mxu0 0.0
    %1895 = vmatpush.msra.mxu0 0.0
    %1896 = vmatpush.msra.mxu0 0.0
    %1897 = vmatpush.msra.mxu0 0.0
    %1898 = vmatpush.msra.mxu0 0.0
    %1899 = vmatpush.msra.mxu0 %v1637
    %1900 = vmatmul.f32.gmra.mxu0 %v1862
    %v1901 = vpop.f32.mrf.mxu0
    %v1902 = vadd.f32 0.0, %v1901
    %1903 = vdwg.mxu0
    %v1904 = vperm.slane %v1882, 0
    %v1905 = vperm.slane %v1902, 0
    %v1906 = vmul.f32 %v1751, %v1904
    %v1907 = vmul.f32 %v1752, %v1905
    %v1908 = vmul.f32 %v1753, %v1904
    %v1909 = vmul.f32 %v1754, %v1905
    %v1910 = vmul.f32 %v1755, %v1904
    %v1911 = vmul.f32 %v1756, %v1905
    %v1912 = vmul.f32 %v1757, %v1904
    %v1913 = vmul.f32 %v1758, %v1905
    %v1914 = vmul.f32 %v1759, %v1904
    %v1915 = vmul.f32 %v1760, %v1905
    %v1916 = vmul.f32 %v1761, %v1904
    %v1917 = vmul.f32 %v1762, %v1905
    %v1918 = vmul.f32 %v1763, %v1904
    %v1919 = vmul.f32 %v1764, %v1905
    %v1920 = vmul.f32 %v1765, %v1904
    %v1921 = vmul.f32 %v1766, %v1905
    %v1922 = vld [vmem:[#allocation8] sm:$0x3]
    %v1924 = vperm.slane %v1922, 0
    %v1925 = vperm.slane %v1922, 1
    %v1928 = vmul.f32 %v1906, %v1924
    %v1929 = vmul.f32 %v1907, %v1925
    %v1930 = vmul.f32 %v1908, %v1924
    %v1931 = vmul.f32 %v1909, %v1925
    %v1932 = vmul.f32 %v1910, %v1924
    %v1933 = vmul.f32 %v1911, %v1925
    %v1934 = vmul.f32 %v1912, %v1924
    %v1935 = vmul.f32 %v1913, %v1925
    %v1936 = vmul.f32 %v1914, %v1924
    %v1937 = vmul.f32 %v1915, %v1925
    %v1938 = vmul.f32 %v1916, %v1924
    %v1939 = vmul.f32 %v1917, %v1925
    %v1940 = vmul.f32 %v1918, %v1924
    %v1941 = vmul.f32 %v1919, %v1925
    %v1942 = vmul.f32 %v1920, %v1924
    %v1943 = vmul.f32 %v1921, %v1925
    %v1944 = vld [vmem:[#allocation10] sm:$0x3]
    %v1946 = vperm.slane %v1944, 0
    %v1947 = vperm.slane %v1944, 1
    %v1950 = vadd.f32 %v1928, %v1946
    %v1951 = vadd.f32 %v1929, %v1947
    %v1952 = vadd.f32 %v1930, %v1946
    %v1953 = vadd.f32 %v1931, %v1947
    %v1954 = vadd.f32 %v1932, %v1946
    %v1955 = vadd.f32 %v1933, %v1947
    %v1956 = vadd.f32 %v1934, %v1946
    %v1957 = vadd.f32 %v1935, %v1947
    %v1958 = vadd.f32 %v1936, %v1946
    %v1959 = vadd.f32 %v1937, %v1947
    %v1960 = vadd.f32 %v1938, %v1946
    %v1961 = vadd.f32 %v1939, %v1947
    %v1962 = vadd.f32 %v1940, %v1946
    %v1963 = vadd.f32 %v1941, %v1947
    %v1964 = vadd.f32 %v1942, %v1946
    %v1965 = vadd.f32 %v1943, %v1947
    %v1966 = vmax.f32 %v1950, 0.0
    %v1967 = vmax.f32 %v1951, 0.0
    %v1968 = vmax.f32 %v1952, 0.0
    %v1969 = vmax.f32 %v1953, 0.0
    %v1970 = vmax.f32 %v1954, 0.0
    %v1971 = vmax.f32 %v1955, 0.0
    %v1972 = vmax.f32 %v1956, 0.0
    %v1973 = vmax.f32 %v1957, 0.0
    %v1974 = vmax.f32 %v1958, 0.0
    %v1975 = vmax.f32 %v1959, 0.0
    %v1976 = vmax.f32 %v1960, 0.0
    %v1977 = vmax.f32 %v1961, 0.0
    %v1978 = vmax.f32 %v1962, 0.0
    %v1979 = vmax.f32 %v1963, 0.0
    %v1980 = vmax.f32 %v1964, 0.0
    %v1981 = vmax.f32 %v1965, 0.0
    %v1982 = vld [vmem:[%s11] sm:$0xff]
    %v1983 = vld [vmem:[%s11 + $0x8] sm:$0xff]
    %v1984 = vld [vmem:[%s11 + $0x10] sm:$0xff]
    %v1985 = vld [vmem:[%s11 + $0x18] sm:$0xff]
    %v1986 = vld [vmem:[%s11 + $0x20] sm:$0xff]
    %v1987 = vld [vmem:[%s11 + $0x28] sm:$0xff]
    %v1988 = vld [vmem:[%s11 + $0x30] sm:$0xff]
    %v1989 = vld [vmem:[%s11 + $0x38] sm:$0xff]
    %v1990 = vld [vmem:[%s11 + $0x40] sm:$0xff]
    %v1991 = vld [vmem:[%s11 + $0x48] sm:$0xff]
    %v1992 = vld [vmem:[%s11 + $0x50] sm:$0xff]
    %v1993 = vld [vmem:[%s11 + $0x58] sm:$0xff]
    %v1994 = vld [vmem:[%s11 + $0x60] sm:$0xff]
    %v1995 = vld [vmem:[%s11 + $0x68] sm:$0xff]
    %v1996 = vld [vmem:[%s11 + $0x70] sm:$0xff]
    %v1997 = vld [vmem:[%s11 + $0x78] sm:$0xff]
    %v1998 = vld [vmem:[%s11 + $0x80] sm:$0xff]
    %v1999 = vld [vmem:[%s11 + $0x88] sm:$0xff]
    %v2000 = vld [vmem:[%s11 + $0x90] sm:$0xff]
    %v2001 = vld [vmem:[%s11 + $0x98] sm:$0xff]
    %v2002 = vld [vmem:[%s11 + $0xa0] sm:$0xff]
    %v2003 = vld [vmem:[%s11 + $0xa8] sm:$0xff]
    %v2004 = vld [vmem:[%s11 + $0xb0] sm:$0xff]
    %v2005 = vld [vmem:[%s11 + $0xb8] sm:$0xff]
    %v2006 = vld [vmem:[%s11 + $0xc0] sm:$0xff]
    %v2007 = vld [vmem:[%s11 + $0xc8] sm:$0xff]
    %v2008 = vld [vmem:[%s11 + $0xd0] sm:$0xff]
    %v2009 = vld [vmem:[%s11 + $0xd8] sm:$0xff]
    %v2010 = vld [vmem:[%s11 + $0xe0] sm:$0xff]
    %v2011 = vld [vmem:[%s11 + $0xe8] sm:$0xff]
    %v2012 = vld [vmem:[%s11 + $0xf0] sm:$0xff]
    %v2013 = vld [vmem:[%s11 + $0xf8] sm:$0xff]
    %v2014 = vld [vmem:[%s11 + $0x100] sm:$0xff]
    %v2015 = vld [vmem:[%s11 + $0x108] sm:$0xff]
    %v2016 = vld [vmem:[%s11 + $0x110] sm:$0xff]
    %v2017 = vld [vmem:[%s11 + $0x118] sm:$0xff]
    %v2018 = vld [vmem:[%s11 + $0x120] sm:$0xff]
    %v2019 = vld [vmem:[%s11 + $0x128] sm:$0xff]
    %v2020 = vld [vmem:[%s11 + $0x130] sm:$0xff]
    %v2021 = vld [vmem:[%s11 + $0x138] sm:$0xff]
    %v2022 = vld [vmem:[%s11 + $0x140] sm:$0xff]
    %v2023 = vld [vmem:[%s11 + $0x148] sm:$0xff]
    %v2024 = vld [vmem:[%s11 + $0x150] sm:$0xff]
    %v2025 = vld [vmem:[%s11 + $0x158] sm:$0xff]
    %v2026 = vld [vmem:[%s11 + $0x160] sm:$0xff]
    %v2027 = vld [vmem:[%s11 + $0x168] sm:$0xff]
    %v2028 = vld [vmem:[%s11 + $0x170] sm:$0xff]
    %v2029 = vld [vmem:[%s11 + $0x178] sm:$0xff]
    %v2030 = vld [vmem:[%s11 + $0x180] sm:$0xff]
    %v2031 = vld [vmem:[%s11 + $0x188] sm:$0xff]
    %v2032 = vld [vmem:[%s11 + $0x190] sm:$0xff]
    %v2033 = vld [vmem:[%s11 + $0x198] sm:$0xff]
    %v2034 = vld [vmem:[%s11 + $0x1a0] sm:$0xff]
    %v2035 = vld [vmem:[%s11 + $0x1a8] sm:$0xff]
    %v2036 = vld [vmem:[%s11 + $0x1b0] sm:$0xff]
    %v2037 = vld [vmem:[%s11 + $0x1b8] sm:$0xff]
    %v2038 = vld [vmem:[%s11 + $0x1c0] sm:$0xff]
    %v2039 = vld [vmem:[%s11 + $0x1c8] sm:$0xff]
    %v2040 = vld [vmem:[%s11 + $0x1d0] sm:$0xff]
    %v2041 = vld [vmem:[%s11 + $0x1d8] sm:$0xff]
    %v2042 = vld [vmem:[%s11 + $0x1e0] sm:$0xff]
    %v2043 = vld [vmem:[%s11 + $0x1e8] sm:$0xff]
    %v2044 = vld [vmem:[%s11 + $0x1f0] sm:$0xff]
    %v2045 = vld [vmem:[%s11 + $0x1f8] sm:$0xff]
    %2046 = vmatpush.msra.mxu0 %v2012
    %2047 = vmatpush.msra.mxu0 %v2010
    %2048 = vmatpush.msra.mxu0 %v2008
    %2049 = vmatpush.msra.mxu0 %v2006
    %2050 = vmatpush.msra.mxu0 %v2004
    %2051 = vmatpush.msra.mxu0 %v2002
    %2052 = vmatpush.msra.mxu0 %v2000
    %2053 = vmatpush.msra.mxu0 %v1998
    %2054 = vmatpush.msra.mxu0 %v1996
    %2055 = vmatpush.msra.mxu0 %v1994
    %2056 = vmatpush.msra.mxu0 %v1992
    %2057 = vmatpush.msra.mxu0 %v1990
    %2058 = vmatpush.msra.mxu0 %v1988
    %2059 = vmatpush.msra.mxu0 %v1986
    %2060 = vmatpush.msra.mxu0 %v1984
    %2061 = vmatpush.msra.mxu0 %v1982
    %2062 = vmatmul.f32.gmra.mxu0 %v1966
    %v2063 = vpop.f32.mrf.mxu0
    %v2064 = vadd.f32 0.0, %v2063
    %2065 = vmatmul.f32.gmra.mxu0 %v1968
    %v2066 = vpop.f32.mrf.mxu0
    %v2067 = vadd.f32 0.0, %v2066
    %2068 = vmatmul.f32.gmra.mxu0 %v1970
    %v2069 = vpop.f32.mrf.mxu0
    %v2070 = vadd.f32 0.0, %v2069
    %2071 = vmatmul.f32.gmra.mxu0 %v1972
    %v2072 = vpop.f32.mrf.mxu0
    %v2073 = vadd.f32 0.0, %v2072
    %2074 = vmatmul.f32.gmra.mxu0 %v1974
    %v2075 = vpop.f32.mrf.mxu0
    %v2076 = vadd.f32 0.0, %v2075
    %2077 = vmatmul.f32.gmra.mxu0 %v1976
    %v2078 = vpop.f32.mrf.mxu0
    %v2079 = vadd.f32 0.0, %v2078
    %2080 = vmatmul.f32.gmra.mxu0 %v1978
    %v2081 = vpop.f32.mrf.mxu0
    %v2082 = vadd.f32 0.0, %v2081
    %2083 = vmatmul.f32.gmra.mxu0 %v1980
    %v2084 = vpop.f32.mrf.mxu0
    %v2085 = vadd.f32 0.0, %v2084
    %2086 = vdwg.mxu0
    %2087 = vmatpush.msra.mxu0 %v2044
    %2088 = vmatpush.msra.mxu0 %v2042
    %2089 = vmatpush.msra.mxu0 %v2040
    %2090 = vmatpush.msra.mxu0 %v2038
    %2091 = vmatpush.msra.mxu0 %v2036
    %2092 = vmatpush.msra.mxu0 %v2034
    %2093 = vmatpush.msra.mxu0 %v2032
    %2094 = vmatpush.msra.mxu0 %v2030
    %2095 = vmatpush.msra.mxu0 %v2028
    %2096 = vmatpush.msra.mxu0 %v2026
    %2097 = vmatpush.msra.mxu0 %v2024
    %2098 = vmatpush.msra.mxu0 %v2022
    %2099 = vmatpush.msra.mxu0 %v2020
    %2100 = vmatpush.msra.mxu0 %v2018
    %2101 = vmatpush.msra.mxu0 %v2016
    %2102 = vmatpush.msra.mxu0 %v2014
    %2103 = vmatmul.f32.gmra.mxu0 %v1967
    %v2104 = vpop.f32.mrf.mxu0
    %v2105 = vadd.f32 %v2064, %v2104
    %2106 = vmatmul.f32.gmra.mxu0 %v1969
    %v2107 = vpop.f32.mrf.mxu0
    %v2108 = vadd.f32 %v2067, %v2107
    %2109 = vmatmul.f32.gmra.mxu0 %v1971
    %v2110 = vpop.f32.mrf.mxu0
    %v2111 = vadd.f32 %v2070, %v2110
    %2112 = vmatmul.f32.gmra.mxu0 %v1973
    %v2113 = vpop.f32.mrf.mxu0
    %v2114 = vadd.f32 %v2073, %v2113
    %2115 = vmatmul.f32.gmra.mxu0 %v1975
    %v2116 = vpop.f32.mrf.mxu0
    %v2117 = vadd.f32 %v2076, %v2116
    %2118 = vmatmul.f32.gmra.mxu0 %v1977
    %v2119 = vpop.f32.mrf.mxu0
    %v2120 = vadd.f32 %v2079, %v2119
    %2121 = vmatmul.f32.gmra.mxu0 %v1979
    %v2122 = vpop.f32.mrf.mxu0
    %v2123 = vadd.f32 %v2082, %v2122
    %2124 = vmatmul.f32.gmra.mxu0 %v1981
    %v2125 = vpop.f32.mrf.mxu0
    %v2126 = vadd.f32 %v2085, %v2125
    %2127 = vdwg.mxu0
    %2128 = vmatpush.msra.mxu0 %v2013
    %2129 = vmatpush.msra.mxu0 %v2011
    %2130 = vmatpush.msra.mxu0 %v2009
    %2131 = vmatpush.msra.mxu0 %v2007
    %2132 = vmatpush.msra.mxu0 %v2005
    %2133 = vmatpush.msra.mxu0 %v2003
    %2134 = vmatpush.msra.mxu0 %v2001
    %2135 = vmatpush.msra.mxu0 %v1999
    %2136 = vmatpush.msra.mxu0 %v1997
    %2137 = vmatpush.msra.mxu0 %v1995
    %2138 = vmatpush.msra.mxu0 %v1993
    %2139 = vmatpush.msra.mxu0 %v1991
    %2140 = vmatpush.msra.mxu0 %v1989
    %2141 = vmatpush.msra.mxu0 %v1987
    %2142 = vmatpush.msra.mxu0 %v1985
    %2143 = vmatpush.msra.mxu0 %v1983
    %2144 = vmatmul.f32.gmra.mxu0 %v1966
    %v2145 = vpop.f32.mrf.mxu0
    %v2146 = vadd.f32 0.0, %v2145
    %2147 = vmatmul.f32.gmra.mxu0 %v1968
    %v2148 = vpop.f32.mrf.mxu0
    %v2149 = vadd.f32 0.0, %v2148
    %2150 = vmatmul.f32.gmra.mxu0 %v1970
    %v2151 = vpop.f32.mrf.mxu0
    %v2152 = vadd.f32 0.0, %v2151
    %2153 = vmatmul.f32.gmra.mxu0 %v1972
    %v2154 = vpop.f32.mrf.mxu0
    %v2155 = vadd.f32 0.0, %v2154
    %2156 = vmatmul.f32.gmra.mxu0 %v1974
    %v2157 = vpop.f32.mrf.mxu0
    %v2158 = vadd.f32 0.0, %v2157
    %2159 = vmatmul.f32.gmra.mxu0 %v1976
    %v2160 = vpop.f32.mrf.mxu0
    %v2161 = vadd.f32 0.0, %v2160
    %2162 = vmatmul.f32.gmra.mxu0 %v1978
    %v2163 = vpop.f32.mrf.mxu0
    %v2164 = vadd.f32 0.0, %v2163
    %2165 = vmatmul.f32.gmra.mxu0 %v1980
    %v2166 = vpop.f32.mrf.mxu0
    %v2167 = vadd.f32 0.0, %v2166
    %2168 = vdwg.mxu0
    %2169 = vmatpush.msra.mxu0 %v2045
    %2170 = vmatpush.msra.mxu0 %v2043
    %2171 = vmatpush.msra.mxu0 %v2041
    %2172 = vmatpush.msra.mxu0 %v2039
    %2173 = vmatpush.msra.mxu0 %v2037
    %2174 = vmatpush.msra.mxu0 %v2035
    %2175 = vmatpush.msra.mxu0 %v2033
    %2176 = vmatpush.msra.mxu0 %v2031
    %2177 = vmatpush.msra.mxu0 %v2029
    %2178 = vmatpush.msra.mxu0 %v2027
    %2179 = vmatpush.msra.mxu0 %v2025
    %2180 = vmatpush.msra.mxu0 %v2023
    %2181 = vmatpush.msra.mxu0 %v2021
    %2182 = vmatpush.msra.mxu0 %v2019
    %2183 = vmatpush.msra.mxu0 %v2017
    %2184 = vmatpush.msra.mxu0 %v2015
    %2185 = vmatmul.f32.gmra.mxu0 %v1967
    %v2186 = vpop.f32.mrf.mxu0
    %v2187 = vadd.f32 %v2146, %v2186
    %2188 = vmatmul.f32.gmra.mxu0 %v1969
    %v2189 = vpop.f32.mrf.mxu0
    %v2190 = vadd.f32 %v2149, %v2189
    %2191 = vmatmul.f32.gmra.mxu0 %v1971
    %v2192 = vpop.f32.mrf.mxu0
    %v2193 = vadd.f32 %v2152, %v2192
    %2194 = vmatmul.f32.gmra.mxu0 %v1973
    %v2195 = vpop.f32.mrf.mxu0
    %v2196 = vadd.f32 %v2155, %v2195
    %2197 = vmatmul.f32.gmra.mxu0 %v1975
    %v2198 = vpop.f32.mrf.mxu0
    %v2199 = vadd.f32 %v2158, %v2198
    %2200 = vmatmul.f32.gmra.mxu0 %v1977
    %v2201 = vpop.f32.mrf.mxu0
    %v2202 = vadd.f32 %v2161, %v2201
    %2203 = vmatmul.f32.gmra.mxu0 %v1979
    %v2204 = vpop.f32.mrf.mxu0
    %v2205 = vadd.f32 %v2164, %v2204
    %2206 = vmatmul.f32.gmra.mxu0 %v1981
    %v2207 = vpop.f32.mrf.mxu0
    %v2208 = vadd.f32 %v2167, %v2207
    %2209 = vdwg.mxu0
    %s2210 = scalar_lea.vmem %s11, 512
    %v2211 = vld [vmem:[%s2210] sm:$0xff]
    %v2212 = vld [vmem:[%s2210 + $0x8] sm:$0xff]
    %v2213 = vld [vmem:[%s2210 + $0x10] sm:$0xff]
    %v2214 = vld [vmem:[%s2210 + $0x18] sm:$0xff]
    %v2215 = vld [vmem:[%s2210 + $0x20] sm:$0xff]
    %v2216 = vld [vmem:[%s2210 + $0x28] sm:$0xff]
    %v2217 = vld [vmem:[%s2210 + $0x30] sm:$0xff]
    %v2218 = vld [vmem:[%s2210 + $0x38] sm:$0xff]
    %v2219 = vld [vmem:[%s2210 + $0x40] sm:$0xff]
    %v2220 = vld [vmem:[%s2210 + $0x48] sm:$0xff]
    %v2221 = vld [vmem:[%s2210 + $0x50] sm:$0xff]
    %v2222 = vld [vmem:[%s2210 + $0x58] sm:$0xff]
    %v2223 = vld [vmem:[%s2210 + $0x60] sm:$0xff]
    %v2224 = vld [vmem:[%s2210 + $0x68] sm:$0xff]
    %v2225 = vld [vmem:[%s2210 + $0x70] sm:$0xff]
    %v2226 = vld [vmem:[%s2210 + $0x78] sm:$0xff]
    %v2227 = vld [vmem:[%s2210 + $0x80] sm:$0xff]
    %v2228 = vld [vmem:[%s2210 + $0x88] sm:$0xff]
    %v2229 = vld [vmem:[%s2210 + $0x90] sm:$0xff]
    %v2230 = vld [vmem:[%s2210 + $0x98] sm:$0xff]
    %v2231 = vld [vmem:[%s2210 + $0xa0] sm:$0xff]
    %v2232 = vld [vmem:[%s2210 + $0xa8] sm:$0xff]
    %v2233 = vld [vmem:[%s2210 + $0xb0] sm:$0xff]
    %v2234 = vld [vmem:[%s2210 + $0xb8] sm:$0xff]
    %v2235 = vld [vmem:[%s2210 + $0xc0] sm:$0xff]
    %v2236 = vld [vmem:[%s2210 + $0xc8] sm:$0xff]
    %v2237 = vld [vmem:[%s2210 + $0xd0] sm:$0xff]
    %v2238 = vld [vmem:[%s2210 + $0xd8] sm:$0xff]
    %v2239 = vld [vmem:[%s2210 + $0xe0] sm:$0xff]
    %v2240 = vld [vmem:[%s2210 + $0xe8] sm:$0xff]
    %v2241 = vld [vmem:[%s2210 + $0xf0] sm:$0xff]
    %v2242 = vld [vmem:[%s2210 + $0xf8] sm:$0xff]
    %v2243 = vld [vmem:[%s2210 + $0x100] sm:$0xff]
    %v2244 = vld [vmem:[%s2210 + $0x108] sm:$0xff]
    %v2245 = vld [vmem:[%s2210 + $0x110] sm:$0xff]
    %v2246 = vld [vmem:[%s2210 + $0x118] sm:$0xff]
    %v2247 = vld [vmem:[%s2210 + $0x120] sm:$0xff]
    %v2248 = vld [vmem:[%s2210 + $0x128] sm:$0xff]
    %v2249 = vld [vmem:[%s2210 + $0x130] sm:$0xff]
    %v2250 = vld [vmem:[%s2210 + $0x138] sm:$0xff]
    %v2251 = vld [vmem:[%s2210 + $0x140] sm:$0xff]
    %v2252 = vld [vmem:[%s2210 + $0x148] sm:$0xff]
    %v2253 = vld [vmem:[%s2210 + $0x150] sm:$0xff]
    %v2254 = vld [vmem:[%s2210 + $0x158] sm:$0xff]
    %v2255 = vld [vmem:[%s2210 + $0x160] sm:$0xff]
    %v2256 = vld [vmem:[%s2210 + $0x168] sm:$0xff]
    %v2257 = vld [vmem:[%s2210 + $0x170] sm:$0xff]
    %v2258 = vld [vmem:[%s2210 + $0x178] sm:$0xff]
    %v2259 = vld [vmem:[%s2210 + $0x180] sm:$0xff]
    %v2260 = vld [vmem:[%s2210 + $0x188] sm:$0xff]
    %v2261 = vld [vmem:[%s2210 + $0x190] sm:$0xff]
    %v2262 = vld [vmem:[%s2210 + $0x198] sm:$0xff]
    %v2263 = vld [vmem:[%s2210 + $0x1a0] sm:$0xff]
    %v2264 = vld [vmem:[%s2210 + $0x1a8] sm:$0xff]
    %v2265 = vld [vmem:[%s2210 + $0x1b0] sm:$0xff]
    %v2266 = vld [vmem:[%s2210 + $0x1b8] sm:$0xff]
    %v2267 = vld [vmem:[%s2210 + $0x1c0] sm:$0xff]
    %v2268 = vld [vmem:[%s2210 + $0x1c8] sm:$0xff]
    %v2269 = vld [vmem:[%s2210 + $0x1d0] sm:$0xff]
    %v2270 = vld [vmem:[%s2210 + $0x1d8] sm:$0xff]
    %v2271 = vld [vmem:[%s2210 + $0x1e0] sm:$0xff]
    %v2272 = vld [vmem:[%s2210 + $0x1e8] sm:$0xff]
    %v2273 = vld [vmem:[%s2210 + $0x1f0] sm:$0xff]
    %v2274 = vld [vmem:[%s2210 + $0x1f8] sm:$0xff]
    %2275 = vmatpush.msra.mxu0 %v2241
    %2276 = vmatpush.msra.mxu0 %v2239
    %2277 = vmatpush.msra.mxu0 %v2237
    %2278 = vmatpush.msra.mxu0 %v2235
    %2279 = vmatpush.msra.mxu0 %v2233
    %2280 = vmatpush.msra.mxu0 %v2231
    %2281 = vmatpush.msra.mxu0 %v2229
    %2282 = vmatpush.msra.mxu0 %v2227
    %2283 = vmatpush.msra.mxu0 %v2225
    %2284 = vmatpush.msra.mxu0 %v2223
    %2285 = vmatpush.msra.mxu0 %v2221
    %2286 = vmatpush.msra.mxu0 %v2219
    %2287 = vmatpush.msra.mxu0 %v2217
    %2288 = vmatpush.msra.mxu0 %v2215
    %2289 = vmatpush.msra.mxu0 %v2213
    %2290 = vmatpush.msra.mxu0 %v2211
    %2291 = vmatmul.f32.gmra.mxu0 %v1966
    %v2292 = vpop.f32.mrf.mxu0
    %v2293 = vadd.f32 0.0, %v2292
    %2294 = vmatmul.f32.gmra.mxu0 %v1968
    %v2295 = vpop.f32.mrf.mxu0
    %v2296 = vadd.f32 0.0, %v2295
    %2297 = vmatmul.f32.gmra.mxu0 %v1970
    %v2298 = vpop.f32.mrf.mxu0
    %v2299 = vadd.f32 0.0, %v2298
    %2300 = vmatmul.f32.gmra.mxu0 %v1972
    %v2301 = vpop.f32.mrf.mxu0
    %v2302 = vadd.f32 0.0, %v2301
    %2303 = vmatmul.f32.gmra.mxu0 %v1974
    %v2304 = vpop.f32.mrf.mxu0
    %v2305 = vadd.f32 0.0, %v2304
    %2306 = vmatmul.f32.gmra.mxu0 %v1976
    %v2307 = vpop.f32.mrf.mxu0
    %v2308 = vadd.f32 0.0, %v2307
    %2309 = vmatmul.f32.gmra.mxu0 %v1978
    %v2310 = vpop.f32.mrf.mxu0
    %v2311 = vadd.f32 0.0, %v2310
    %2312 = vmatmul.f32.gmra.mxu0 %v1980
    %v2313 = vpop.f32.mrf.mxu0
    %v2314 = vadd.f32 0.0, %v2313
    %2315 = vdwg.mxu0
    %2316 = vmatpush.msra.mxu0 %v2273
    %2317 = vmatpush.msra.mxu0 %v2271
    %2318 = vmatpush.msra.mxu0 %v2269
    %2319 = vmatpush.msra.mxu0 %v2267
    %2320 = vmatpush.msra.mxu0 %v2265
    %2321 = vmatpush.msra.mxu0 %v2263
    %2322 = vmatpush.msra.mxu0 %v2261
    %2323 = vmatpush.msra.mxu0 %v2259
    %2324 = vmatpush.msra.mxu0 %v2257
    %2325 = vmatpush.msra.mxu0 %v2255
    %2326 = vmatpush.msra.mxu0 %v2253
    %2327 = vmatpush.msra.mxu0 %v2251
    %2328 = vmatpush.msra.mxu0 %v2249
    %2329 = vmatpush.msra.mxu0 %v2247
    %2330 = vmatpush.msra.mxu0 %v2245
    %2331 = vmatpush.msra.mxu0 %v2243
    %2332 = vmatmul.f32.gmra.mxu0 %v1967
    %v2333 = vpop.f32.mrf.mxu0
    %v2334 = vadd.f32 %v2293, %v2333
    %2335 = vmatmul.f32.gmra.mxu0 %v1969
    %v2336 = vpop.f32.mrf.mxu0
    %v2337 = vadd.f32 %v2296, %v2336
    %2338 = vmatmul.f32.gmra.mxu0 %v1971
    %v2339 = vpop.f32.mrf.mxu0
    %v2340 = vadd.f32 %v2299, %v2339
    %2341 = vmatmul.f32.gmra.mxu0 %v1973
    %v2342 = vpop.f32.mrf.mxu0
    %v2343 = vadd.f32 %v2302, %v2342
    %2344 = vmatmul.f32.gmra.mxu0 %v1975
    %v2345 = vpop.f32.mrf.mxu0
    %v2346 = vadd.f32 %v2305, %v2345
    %2347 = vmatmul.f32.gmra.mxu0 %v1977
    %v2348 = vpop.f32.mrf.mxu0
    %v2349 = vadd.f32 %v2308, %v2348
    %2350 = vmatmul.f32.gmra.mxu0 %v1979
    %v2351 = vpop.f32.mrf.mxu0
    %v2352 = vadd.f32 %v2311, %v2351
    %2353 = vmatmul.f32.gmra.mxu0 %v1981
    %v2354 = vpop.f32.mrf.mxu0
    %v2355 = vadd.f32 %v2314, %v2354
    %2356 = vdwg.mxu0
    %2357 = vmatpush.msra.mxu0 %v2242
    %2358 = vmatpush.msra.mxu0 %v2240
    %2359 = vmatpush.msra.mxu0 %v2238
    %2360 = vmatpush.msra.mxu0 %v2236
    %2361 = vmatpush.msra.mxu0 %v2234
    %2362 = vmatpush.msra.mxu0 %v2232
    %2363 = vmatpush.msra.mxu0 %v2230
    %2364 = vmatpush.msra.mxu0 %v2228
    %2365 = vmatpush.msra.mxu0 %v2226
    %2366 = vmatpush.msra.mxu0 %v2224
    %2367 = vmatpush.msra.mxu0 %v2222
    %2368 = vmatpush.msra.mxu0 %v2220
    %2369 = vmatpush.msra.mxu0 %v2218
    %2370 = vmatpush.msra.mxu0 %v2216
    %2371 = vmatpush.msra.mxu0 %v2214
    %2372 = vmatpush.msra.mxu0 %v2212
    %2373 = vmatmul.f32.gmra.mxu0 %v1966
    %v2374 = vpop.f32.mrf.mxu0
    %v2375 = vadd.f32 0.0, %v2374
    %2376 = vmatmul.f32.gmra.mxu0 %v1968
    %v2377 = vpop.f32.mrf.mxu0
    %v2378 = vadd.f32 0.0, %v2377
    %2379 = vmatmul.f32.gmra.mxu0 %v1970
    %v2380 = vpop.f32.mrf.mxu0
    %v2381 = vadd.f32 0.0, %v2380
    %2382 = vmatmul.f32.gmra.mxu0 %v1972
    %v2383 = vpop.f32.mrf.mxu0
    %v2384 = vadd.f32 0.0, %v2383
    %2385 = vmatmul.f32.gmra.mxu0 %v1974
    %v2386 = vpop.f32.mrf.mxu0
    %v2387 = vadd.f32 0.0, %v2386
    %2388 = vmatmul.f32.gmra.mxu0 %v1976
    %v2389 = vpop.f32.mrf.mxu0
    %v2390 = vadd.f32 0.0, %v2389
    %2391 = vmatmul.f32.gmra.mxu0 %v1978
    %v2392 = vpop.f32.mrf.mxu0
    %v2393 = vadd.f32 0.0, %v2392
    %2394 = vmatmul.f32.gmra.mxu0 %v1980
    %v2395 = vpop.f32.mrf.mxu0
    %v2396 = vadd.f32 0.0, %v2395
    %2397 = vdwg.mxu0
    %2398 = vmatpush.msra.mxu0 %v2274
    %2399 = vmatpush.msra.mxu0 %v2272
    %2400 = vmatpush.msra.mxu0 %v2270
    %2401 = vmatpush.msra.mxu0 %v2268
    %2402 = vmatpush.msra.mxu0 %v2266
    %2403 = vmatpush.msra.mxu0 %v2264
    %2404 = vmatpush.msra.mxu0 %v2262
    %2405 = vmatpush.msra.mxu0 %v2260
    %2406 = vmatpush.msra.mxu0 %v2258
    %2407 = vmatpush.msra.mxu0 %v2256
    %2408 = vmatpush.msra.mxu0 %v2254
    %2409 = vmatpush.msra.mxu0 %v2252
    %2410 = vmatpush.msra.mxu0 %v2250
    %2411 = vmatpush.msra.mxu0 %v2248
    %2412 = vmatpush.msra.mxu0 %v2246
    %2413 = vmatpush.msra.mxu0 %v2244
    %2414 = vmatmul.f32.gmra.mxu0 %v1967
    %v2415 = vpop.f32.mrf.mxu0
    %v2416 = vadd.f32 %v2375, %v2415
    %2417 = vmatmul.f32.gmra.mxu0 %v1969
    %v2418 = vpop.f32.mrf.mxu0
    %v2419 = vadd.f32 %v2378, %v2418
    %2420 = vmatmul.f32.gmra.mxu0 %v1971
    %v2421 = vpop.f32.mrf.mxu0
    %v2422 = vadd.f32 %v2381, %v2421
    %2423 = vmatmul.f32.gmra.mxu0 %v1973
    %v2424 = vpop.f32.mrf.mxu0
    %v2425 = vadd.f32 %v2384, %v2424
    %2426 = vmatmul.f32.gmra.mxu0 %v1975
    %v2427 = vpop.f32.mrf.mxu0
    %v2428 = vadd.f32 %v2387, %v2427
    %2429 = vmatmul.f32.gmra.mxu0 %v1977
    %v2430 = vpop.f32.mrf.mxu0
    %v2431 = vadd.f32 %v2390, %v2430
    %2432 = vmatmul.f32.gmra.mxu0 %v1979
    %v2433 = vpop.f32.mrf.mxu0
    %v2434 = vadd.f32 %v2393, %v2433
    %2435 = vmatmul.f32.gmra.mxu0 %v1981
    %v2436 = vpop.f32.mrf.mxu0
    %v2437 = vadd.f32 %v2396, %v2436
    %2438 = vdwg.mxu0
    %v2439 = vmax.f32 %v2105, %v2334
    %v2440 = vmax.f32 %v2187, %v2416
    %v2441 = vmax.f32 %v2108, %v2337
    %v2442 = vmax.f32 %v2190, %v2419
    %v2443 = vmax.f32 %v2111, %v2340
    %v2444 = vmax.f32 %v2193, %v2422
    %v2445 = vmax.f32 %v2114, %v2343
    %v2446 = vmax.f32 %v2196, %v2425
    %v2447 = vmax.f32 %v2117, %v2346
    %v2448 = vmax.f32 %v2199, %v2428
    %v2449 = vmax.f32 %v2120, %v2349
    %v2450 = vmax.f32 %v2202, %v2431
    %v2451 = vmax.f32 %v2123, %v2352
    %v2452 = vmax.f32 %v2205, %v2434
    %v2453 = vmax.f32 %v2126, %v2355
    %v2454 = vmax.f32 %v2208, %v2437
    %v2455 = vld [vmem:[%s13] sm:$0xff]
    %v2456 = vld [vmem:[%s13 + $0x8] sm:$0xff]
    %v2457 = vld [vmem:[%s13 + $0x10] sm:$0xff]
    %v2458 = vld [vmem:[%s13 + $0x18] sm:$0xff]
    %v2460 = vsel %vm452, %v2455, 0
    %v2463 = vsel %vm452, %v2456, 0
    %v2466 = vsel %vm452, %v2457, 0
    %v2469 = vsel %vm452, %v2458, 0
    %2471 = vmatpush.msra.mxu0 0.0
    %2472 = vmatpush.msra.mxu0 0.0
    %2473 = vmatpush.msra.mxu0 0.0
    %2474 = vmatpush.msra.mxu0 0.0
    %2475 = vmatpush.msra.mxu0 0.0
    %2476 = vmatpush.msra.mxu0 0.0
    %2477 = vmatpush.msra.mxu0 0.0
    %2478 = vmatpush.msra.mxu0 0.0
    %2479 = vmatpush.msra.mxu0 %v2453
    %2480 = vmatpush.msra.mxu0 %v2451
    %2481 = vmatpush.msra.mxu0 %v2449
    %2482 = vmatpush.msra.mxu0 %v2447
    %2483 = vmatpush.msra.mxu0 %v2445
    %2484 = vmatpush.msra.mxu0 %v2443
    %2485 = vmatpush.msra.mxu0 %v2441
    %2486 = vmatpush.msra.mxu0 %v2439
    %2487 = vmatmul.f32.gmra.mxu0 %v2460
    %v2488 = vpop.f32.mrf.mxu0
    %v2489 = vadd.f32 0.0, %v2488
    %2490 = vmatmul.f32.gmra.mxu0 %v2463
    %v2491 = vpop.f32.mrf.mxu0
    %v2492 = vadd.f32 0.0, %v2491
    %2493 = vmatmul.f32.gmra.mxu0 %v2466
    %v2494 = vpop.f32.mrf.mxu0
    %v2495 = vadd.f32 0.0, %v2494
    %2496 = vmatmul.f32.gmra.mxu0 %v2469
    %v2497 = vpop.f32.mrf.mxu0
    %v2498 = vadd.f32 0.0, %v2497
    %2499 = vdwg.mxu0
    %2500 = vmatpush.msra.mxu0 0.0
    %2501 = vmatpush.msra.mxu0 0.0
    %2502 = vmatpush.msra.mxu0 0.0
    %2503 = vmatpush.msra.mxu0 0.0
    %2504 = vmatpush.msra.mxu0 0.0
    %2505 = vmatpush.msra.mxu0 0.0
    %2506 = vmatpush.msra.mxu0 0.0
    %2507 = vmatpush.msra.mxu0 0.0
    %2508 = vmatpush.msra.mxu0 %v2454
    %2509 = vmatpush.msra.mxu0 %v2452
    %2510 = vmatpush.msra.mxu0 %v2450
    %2511 = vmatpush.msra.mxu0 %v2448
    %2512 = vmatpush.msra.mxu0 %v2446
    %2513 = vmatpush.msra.mxu0 %v2444
    %2514 = vmatpush.msra.mxu0 %v2442
    %2515 = vmatpush.msra.mxu0 %v2440
    %2516 = vmatmul.f32.gmra.mxu0 %v2460
    %v2517 = vpop.f32.mrf.mxu0
    %v2518 = vadd.f32 0.0, %v2517
    %2519 = vmatmul.f32.gmra.mxu0 %v2463
    %v2520 = vpop.f32.mrf.mxu0
    %v2521 = vadd.f32 0.0, %v2520
    %2522 = vmatmul.f32.gmra.mxu0 %v2466
    %v2523 = vpop.f32.mrf.mxu0
    %v2524 = vadd.f32 0.0, %v2523
    %2525 = vmatmul.f32.gmra.mxu0 %v2469
    %v2526 = vpop.f32.mrf.mxu0
    %v2527 = vadd.f32 0.0, %v2526
    %2528 = vdwg.mxu0
    %s2529 = scalar_lea.vmem %s13, 32
    %v2530 = vld [vmem:[%s2529] sm:$0xff]
    %v2531 = vld [vmem:[%s2529 + $0x8] sm:$0xff]
    %v2532 = vld [vmem:[%s2529 + $0x10] sm:$0xff]
    %v2533 = vld [vmem:[%s2529 + $0x18] sm:$0xff]
    %v2535 = vsel %vm452, %v2530, 0
    %v2538 = vsel %vm452, %v2531, 0
    %v2541 = vsel %vm452, %v2532, 0
    %v2544 = vsel %vm452, %v2533, 0
    %2546 = vmatpush.msra.mxu0 0.0
    %2547 = vmatpush.msra.mxu0 0.0
    %2548 = vmatpush.msra.mxu0 0.0
    %2549 = vmatpush.msra.mxu0 0.0
    %2550 = vmatpush.msra.mxu0 0.0
    %2551 = vmatpush.msra.mxu0 0.0
    %2552 = vmatpush.msra.mxu0 0.0
    %2553 = vmatpush.msra.mxu0 0.0
    %2554 = vmatpush.msra.mxu0 %v2453
    %2555 = vmatpush.msra.mxu0 %v2451
    %2556 = vmatpush.msra.mxu0 %v2449
    %2557 = vmatpush.msra.mxu0 %v2447
    %2558 = vmatpush.msra.mxu0 %v2445
    %2559 = vmatpush.msra.mxu0 %v2443
    %2560 = vmatpush.msra.mxu0 %v2441
    %2561 = vmatpush.msra.mxu0 %v2439
    %2562 = vmatmul.f32.gmra.mxu0 %v2535
    %v2563 = vpop.f32.mrf.mxu0
    %v2564 = vadd.f32 0.0, %v2563
    %2565 = vmatmul.f32.gmra.mxu0 %v2538
    %v2566 = vpop.f32.mrf.mxu0
    %v2567 = vadd.f32 0.0, %v2566
    %2568 = vmatmul.f32.gmra.mxu0 %v2541
    %v2569 = vpop.f32.mrf.mxu0
    %v2570 = vadd.f32 0.0, %v2569
    %2571 = vmatmul.f32.gmra.mxu0 %v2544
    %v2572 = vpop.f32.mrf.mxu0
    %v2573 = vadd.f32 0.0, %v2572
    %2574 = vdwg.mxu0
    %2575 = vmatpush.msra.mxu0 0.0
    %2576 = vmatpush.msra.mxu0 0.0
    %2577 = vmatpush.msra.mxu0 0.0
    %2578 = vmatpush.msra.mxu0 0.0
    %2579 = vmatpush.msra.mxu0 0.0
    %2580 = vmatpush.msra.mxu0 0.0
    %2581 = vmatpush.msra.mxu0 0.0
    %2582 = vmatpush.msra.mxu0 0.0
    %2583 = vmatpush.msra.mxu0 %v2454
    %2584 = vmatpush.msra.mxu0 %v2452
    %2585 = vmatpush.msra.mxu0 %v2450
    %2586 = vmatpush.msra.mxu0 %v2448
    %2587 = vmatpush.msra.mxu0 %v2446
    %2588 = vmatpush.msra.mxu0 %v2444
    %2589 = vmatpush.msra.mxu0 %v2442
    %2590 = vmatpush.msra.mxu0 %v2440
    %2591 = vmatmul.f32.gmra.mxu0 %v2535
    %v2592 = vpop.f32.mrf.mxu0
    %v2593 = vadd.f32 0.0, %v2592
    %2594 = vmatmul.f32.gmra.mxu0 %v2538
    %v2595 = vpop.f32.mrf.mxu0
    %v2596 = vadd.f32 0.0, %v2595
    %2597 = vmatmul.f32.gmra.mxu0 %v2541
    %v2598 = vpop.f32.mrf.mxu0
    %v2599 = vadd.f32 0.0, %v2598
    %2600 = vmatmul.f32.gmra.mxu0 %v2544
    %v2601 = vpop.f32.mrf.mxu0
    %v2602 = vadd.f32 0.0, %v2601
    %2603 = vdwg.mxu0
    %v2604 = vmax.f32 %v2489, %v2564
    %v2605 = vmax.f32 %v2518, %v2593
    %v2606 = vmax.f32 %v2492, %v2567
    %v2607 = vmax.f32 %v2521, %v2596
    %v2608 = vmax.f32 %v2495, %v2570
    %v2609 = vmax.f32 %v2524, %v2599
    %v2610 = vmax.f32 %v2498, %v2573
    %v2611 = vmax.f32 %v2527, %v2602
    %s2612 = scalar_lea.vmem %s23, 288
    %v2613 = vld [vmem:[%s2612] sm:$0xff]
    %v2614 = vld [vmem:[%s2612 + $0x8] sm:$0xff]
    %v2615 = vld [vmem:[%s2612 + $0x10] sm:$0xff]
    %v2616 = vld [vmem:[%s2612 + $0x18] sm:$0xff]
    %v2617 = vld [vmem:[%s2612 + $0x20] sm:$0xff]
    %v2618 = vld [vmem:[%s2612 + $0x28] sm:$0xff]
    %v2619 = vld [vmem:[%s2612 + $0x30] sm:$0xff]
    %v2620 = vld [vmem:[%s2612 + $0x38] sm:$0xff]
    %v2621 = vld [vmem:[%s2612 + $0x40] sm:$0xff]
    %v2622 = vld [vmem:[%s2612 + $0x48] sm:$0xff]
    %v2623 = vld [vmem:[%s2612 + $0x50] sm:$0xff]
    %v2624 = vld [vmem:[%s2612 + $0x58] sm:$0xff]
    %v2625 = vld [vmem:[%s2612 + $0x60] sm:$0xff]
    %v2626 = vld [vmem:[%s2612 + $0x68] sm:$0xff]
    %v2627 = vld [vmem:[%s2612 + $0x70] sm:$0xff]
    %v2628 = vld [vmem:[%s2612 + $0x78] sm:$0xff]
    %v2629 = vld [vmem:[%s2612 + $0x80] sm:$0xff]
    %v2630 = vld [vmem:[%s2612 + $0x88] sm:$0xff]
    %v2631 = vld [vmem:[%s2612 + $0x90] sm:$0xff]
    %v2632 = vld [vmem:[%s2612 + $0x98] sm:$0xff]
    %v2633 = vld [vmem:[%s2612 + $0xa0] sm:$0xff]
    %v2634 = vld [vmem:[%s2612 + $0xa8] sm:$0xff]
    %v2635 = vld [vmem:[%s2612 + $0xb0] sm:$0xff]
    %v2636 = vld [vmem:[%s2612 + $0xb8] sm:$0xff]
    %v2637 = vld [vmem:[%s2612 + $0xc0] sm:$0xff]
    %v2638 = vld [vmem:[%s2612 + $0xc8] sm:$0xff]
    %v2639 = vld [vmem:[%s2612 + $0xd0] sm:$0xff]
    %v2640 = vld [vmem:[%s2612 + $0xd8] sm:$0xff]
    %v2641 = vld [vmem:[%s2612 + $0xe0] sm:$0xff]
    %v2642 = vld [vmem:[%s2612 + $0xe8] sm:$0xff]
    %v2643 = vld [vmem:[%s2612 + $0xf0] sm:$0xff]
    %v2644 = vld [vmem:[%s2612 + $0xf8] sm:$0xff]
    %v2645 = vld [vmem:[%s2612 + $0x100] sm:$0xff]
    %v2646 = vld [vmem:[%s2612 + $0x108] sm:$0xff]
    %v2647 = vld [vmem:[%s2612 + $0x110] sm:$0xff]
    %v2648 = vld [vmem:[%s2612 + $0x118] sm:$0xff]
    %v2649 = vld [vmem:[#allocation11] sm:$0xff]
    %v2650 = vld [vmem:[#allocation11 + $0x8] sm:$0xff]
    %v2651 = vld [vmem:[#allocation11 + $0x10] sm:$0xff]
    %v2652 = vld [vmem:[#allocation11 + $0x18] sm:$0xff]
    %v2654 = vsel %vm691, %v2649, 0
    %v2657 = vsel %vm691, %v2650, 0
    %v2660 = vsel %vm691, %v2651, 0
    %v2663 = vsel %vm691, %v2652, 0
    %2665 = vmatpush.msra.mxu0 0.0
    %2666 = vmatpush.msra.mxu0 0.0
    %2667 = vmatpush.msra.mxu0 0.0
    %2668 = vmatpush.msra.mxu0 0.0
    %2669 = vmatpush.msra.mxu0 0.0
    %2670 = vmatpush.msra.mxu0 0.0
    %2671 = vmatpush.msra.mxu0 0.0
    %2672 = vmatpush.msra.mxu0 0.0
    %2673 = vmatpush.msra.mxu0 0.0
    %2674 = vmatpush.msra.mxu0 0.0
    %2675 = vmatpush.msra.mxu0 0.0
    %2676 = vmatpush.msra.mxu0 0.0
    %2677 = vmatpush.msra.mxu0 %v2610
    %2678 = vmatpush.msra.mxu0 %v2608
    %2679 = vmatpush.msra.mxu0 %v2606
    %2680 = vmatpush.msra.mxu0 %v2604
    %2681 = vmatmul.f32.gmra.mxu0 %v2654
    %v2682 = vpop.f32.mrf.mxu0
    %v2683 = vadd.f32 0.0, %v2682
    %2684 = vmatmul.f32.gmra.mxu0 %v2657
    %v2685 = vpop.f32.mrf.mxu0
    %v2686 = vadd.f32 0.0, %v2685
    %2687 = vmatmul.f32.gmra.mxu0 %v2660
    %v2688 = vpop.f32.mrf.mxu0
    %v2689 = vadd.f32 0.0, %v2688
    %2690 = vmatmul.f32.gmra.mxu0 %v2663
    %v2691 = vpop.f32.mrf.mxu0
    %v2692 = vadd.f32 0.0, %v2691
    %2693 = vdwg.mxu0
    %2694 = vmatpush.msra.mxu0 0.0
    %2695 = vmatpush.msra.mxu0 0.0
    %2696 = vmatpush.msra.mxu0 0.0
    %2697 = vmatpush.msra.mxu0 0.0
    %2698 = vmatpush.msra.mxu0 0.0
    %2699 = vmatpush.msra.mxu0 0.0
    %2700 = vmatpush.msra.mxu0 0.0
    %2701 = vmatpush.msra.mxu0 0.0
    %2702 = vmatpush.msra.mxu0 0.0
    %2703 = vmatpush.msra.mxu0 0.0
    %2704 = vmatpush.msra.mxu0 0.0
    %2705 = vmatpush.msra.mxu0 0.0
    %2706 = vmatpush.msra.mxu0 %v2611
    %2707 = vmatpush.msra.mxu0 %v2609
    %2708 = vmatpush.msra.mxu0 %v2607
    %2709 = vmatpush.msra.mxu0 %v2605
    %2710 = vmatmul.f32.gmra.mxu0 %v2654
    %v2711 = vpop.f32.mrf.mxu0
    %v2712 = vadd.f32 0.0, %v2711
    %2713 = vmatmul.f32.gmra.mxu0 %v2657
    %v2714 = vpop.f32.mrf.mxu0
    %v2715 = vadd.f32 0.0, %v2714
    %2716 = vmatmul.f32.gmra.mxu0 %v2660
    %v2717 = vpop.f32.mrf.mxu0
    %v2718 = vadd.f32 0.0, %v2717
    %2719 = vmatmul.f32.gmra.mxu0 %v2663
    %v2720 = vpop.f32.mrf.mxu0
    %v2721 = vadd.f32 0.0, %v2720
    %2722 = vdwg.mxu0
    %v2723 = vld [vmem:[%s23] sm:$0xff]
    %v2724 = vld [vmem:[%s23 + $0x8] sm:$0xff]
    %v2725 = vld [vmem:[%s23 + $0x10] sm:$0xff]
    %v2726 = vld [vmem:[%s23 + $0x18] sm:$0xff]
    %v2727 = vld [vmem:[%s23 + $0x20] sm:$0xff]
    %v2728 = vld [vmem:[%s23 + $0x28] sm:$0xff]
    %v2729 = vld [vmem:[%s23 + $0x30] sm:$0xff]
    %v2730 = vld [vmem:[%s23 + $0x38] sm:$0xff]
    %v2731 = vld [vmem:[%s23 + $0x40] sm:$0xff]
    %v2732 = vld [vmem:[%s23 + $0x48] sm:$0xff]
    %v2733 = vld [vmem:[%s23 + $0x50] sm:$0xff]
    %v2734 = vld [vmem:[%s23 + $0x58] sm:$0xff]
    %v2735 = vld [vmem:[%s23 + $0x60] sm:$0xff]
    %v2736 = vld [vmem:[%s23 + $0x68] sm:$0xff]
    %v2737 = vld [vmem:[%s23 + $0x70] sm:$0xff]
    %v2738 = vld [vmem:[%s23 + $0x78] sm:$0xff]
    %v2739 = vld [vmem:[%s23 + $0x80] sm:$0xff]
    %v2740 = vld [vmem:[%s23 + $0x88] sm:$0xff]
    %v2741 = vld [vmem:[%s23 + $0x90] sm:$0xff]
    %v2742 = vld [vmem:[%s23 + $0x98] sm:$0xff]
    %v2743 = vld [vmem:[%s23 + $0xa0] sm:$0xff]
    %v2744 = vld [vmem:[%s23 + $0xa8] sm:$0xff]
    %v2745 = vld [vmem:[%s23 + $0xb0] sm:$0xff]
    %v2746 = vld [vmem:[%s23 + $0xb8] sm:$0xff]
    %v2747 = vld [vmem:[%s23 + $0xc0] sm:$0xff]
    %v2748 = vld [vmem:[%s23 + $0xc8] sm:$0xff]
    %v2749 = vld [vmem:[%s23 + $0xd0] sm:$0xff]
    %v2750 = vld [vmem:[%s23 + $0xd8] sm:$0xff]
    %v2751 = vld [vmem:[%s23 + $0xe0] sm:$0xff]
    %v2752 = vld [vmem:[%s23 + $0xe8] sm:$0xff]
    %v2753 = vld [vmem:[%s23 + $0xf0] sm:$0xff]
    %v2754 = vld [vmem:[%s23 + $0xf8] sm:$0xff]
    %v2755 = vld [vmem:[%s23 + $0x100] sm:$0xff]
    %v2756 = vld [vmem:[%s23 + $0x108] sm:$0xff]
    %v2757 = vld [vmem:[%s23 + $0x110] sm:$0xff]
    %v2758 = vld [vmem:[%s23 + $0x118] sm:$0xff]
    %vm2759 = vcmask 130048
    %v2761 = vsel %vm2759, %v2712, 0
    %v2764 = vsel %vm2759, %v2715, 0
    %v2767 = vsel %vm2759, %v2718, 0
    %v2770 = vsel %vm2759, %v2721, 0
    %2772 = vmatpush.msra.mxu0 %v2753
    %2773 = vmatpush.msra.mxu0 %v2751
    %2774 = vmatpush.msra.mxu0 %v2749
    %2775 = vmatpush.msra.mxu0 %v2747
    %2776 = vmatpush.msra.mxu0 %v2745
    %2777 = vmatpush.msra.mxu0 %v2743
    %2778 = vmatpush.msra.mxu0 %v2741
    %2779 = vmatpush.msra.mxu0 %v2739
    %2780 = vmatpush.msra.mxu0 %v2737
    %2781 = vmatpush.msra.mxu0 %v2735
    %2782 = vmatpush.msra.mxu0 %v2733
    %2783 = vmatpush.msra.mxu0 %v2731
    %2784 = vmatpush.msra.mxu0 %v2729
    %2785 = vmatpush.msra.mxu0 %v2727
    %2786 = vmatpush.msra.mxu0 %v2725
    %2787 = vmatpush.msra.mxu0 %v2723
    %2788 = vmatmul.f32.gmra.mxu0 %v2683
    %v2789 = vpop.f32.mrf.mxu0
    %v2790 = vadd.f32 0.0, %v2789
    %2791 = vmatmul.f32.gmra.mxu0 %v2686
    %v2792 = vpop.f32.mrf.mxu0
    %v2793 = vadd.f32 0.0, %v2792
    %2794 = vmatmul.f32.gmra.mxu0 %v2689
    %v2795 = vpop.f32.mrf.mxu0
    %v2796 = vadd.f32 0.0, %v2795
    %2797 = vmatmul.f32.gmra.mxu0 %v2692
    %v2798 = vpop.f32.mrf.mxu0
    %v2799 = vadd.f32 0.0, %v2798
    %2800 = vdwg.mxu0
    %2801 = vmatpush.msra.mxu0 0.0
    %2802 = vmatpush.msra.mxu0 0.0
    %2803 = vmatpush.msra.mxu0 0.0
    %2804 = vmatpush.msra.mxu0 0.0
    %2805 = vmatpush.msra.mxu0 0.0
    %2806 = vmatpush.msra.mxu0 0.0
    %2807 = vmatpush.msra.mxu0 0.0
    %2808 = vmatpush.msra.mxu0 0.0
    %2809 = vmatpush.msra.mxu0 0.0
    %2810 = vmatpush.msra.mxu0 0.0
    %2811 = vmatpush.msra.mxu0 0.0
    %2812 = vmatpush.msra.mxu0 0.0
    %2813 = vmatpush.msra.mxu0 0.0
    %2814 = vmatpush.msra.mxu0 0.0
    %2815 = vmatpush.msra.mxu0 %v2757
    %2816 = vmatpush.msra.mxu0 %v2755
    %2817 = vmatmul.f32.gmra.mxu0 %v2761
    %v2818 = vpop.f32.mrf.mxu0
    %v2819 = vadd.f32 %v2790, %v2818
    %2820 = vmatmul.f32.gmra.mxu0 %v2764
    %v2821 = vpop.f32.mrf.mxu0
    %v2822 = vadd.f32 %v2793, %v2821
    %2823 = vmatmul.f32.gmra.mxu0 %v2767
    %v2824 = vpop.f32.mrf.mxu0
    %v2825 = vadd.f32 %v2796, %v2824
    %2826 = vmatmul.f32.gmra.mxu0 %v2770
    %v2827 = vpop.f32.mrf.mxu0
    %v2828 = vadd.f32 %v2799, %v2827
    %2829 = vdwg.mxu0
    %2830 = vmatpush.msra.mxu0 %v2754
    %2831 = vmatpush.msra.mxu0 %v2752
    %2832 = vmatpush.msra.mxu0 %v2750
    %2833 = vmatpush.msra.mxu0 %v2748
    %2834 = vmatpush.msra.mxu0 %v2746
    %2835 = vmatpush.msra.mxu0 %v2744
    %2836 = vmatpush.msra.mxu0 %v2742
    %2837 = vmatpush.msra.mxu0 %v2740
    %2838 = vmatpush.msra.mxu0 %v2738
    %2839 = vmatpush.msra.mxu0 %v2736
    %2840 = vmatpush.msra.mxu0 %v2734
    %2841 = vmatpush.msra.mxu0 %v2732
    %2842 = vmatpush.msra.mxu0 %v2730
    %2843 = vmatpush.msra.mxu0 %v2728
    %2844 = vmatpush.msra.mxu0 %v2726
    %2845 = vmatpush.msra.mxu0 %v2724
    %2846 = vmatmul.f32.gmra.mxu0 %v2683
    %v2847 = vpop.f32.mrf.mxu0
    %v2848 = vadd.f32 0.0, %v2847
    %2849 = vmatmul.f32.gmra.mxu0 %v2686
    %v2850 = vpop.f32.mrf.mxu0
    %v2851 = vadd.f32 0.0, %v2850
    %2852 = vmatmul.f32.gmra.mxu0 %v2689
    %v2853 = vpop.f32.mrf.mxu0
    %v2854 = vadd.f32 0.0, %v2853
    %2855 = vmatmul.f32.gmra.mxu0 %v2692
    %v2856 = vpop.f32.mrf.mxu0
    %v2857 = vadd.f32 0.0, %v2856
    %2858 = vdwg.mxu0
    %2859 = vmatpush.msra.mxu0 0.0
    %2860 = vmatpush.msra.mxu0 0.0
    %2861 = vmatpush.msra.mxu0 0.0
    %2862 = vmatpush.msra.mxu0 0.0
    %2863 = vmatpush.msra.mxu0 0.0
    %2864 = vmatpush.msra.mxu0 0.0
    %2865 = vmatpush.msra.mxu0 0.0
    %2866 = vmatpush.msra.mxu0 0.0
    %2867 = vmatpush.msra.mxu0 0.0
    %2868 = vmatpush.msra.mxu0 0.0
    %2869 = vmatpush.msra.mxu0 0.0
    %2870 = vmatpush.msra.mxu0 0.0
    %2871 = vmatpush.msra.mxu0 0.0
    %2872 = vmatpush.msra.mxu0 0.0
    %2873 = vmatpush.msra.mxu0 %v2758
    %2874 = vmatpush.msra.mxu0 %v2756
    %2875 = vmatmul.f32.gmra.mxu0 %v2761
    %v2876 = vpop.f32.mrf.mxu0
    %v2877 = vadd.f32 %v2848, %v2876
    %2878 = vmatmul.f32.gmra.mxu0 %v2764
    %v2879 = vpop.f32.mrf.mxu0
    %v2880 = vadd.f32 %v2851, %v2879
    %2881 = vmatmul.f32.gmra.mxu0 %v2767
    %v2882 = vpop.f32.mrf.mxu0
    %v2883 = vadd.f32 %v2854, %v2882
    %2884 = vmatmul.f32.gmra.mxu0 %v2770
    %v2885 = vpop.f32.mrf.mxu0
    %v2886 = vadd.f32 %v2857, %v2885
    %2887 = vdwg.mxu0
    %v2889 = vsel %vm2759, %v2605, 0
    %v2892 = vsel %vm2759, %v2607, 0
    %v2895 = vsel %vm2759, %v2609, 0
    %v2898 = vsel %vm2759, %v2611, 0
    %2900 = vmatpush.msra.mxu0 %v2643
    %2901 = vmatpush.msra.mxu0 %v2641
    %2902 = vmatpush.msra.mxu0 %v2639
    %2903 = vmatpush.msra.mxu0 %v2637
    %2904 = vmatpush.msra.mxu0 %v2635
    %2905 = vmatpush.msra.mxu0 %v2633
    %2906 = vmatpush.msra.mxu0 %v2631
    %2907 = vmatpush.msra.mxu0 %v2629
    %2908 = vmatpush.msra.mxu0 %v2627
    %2909 = vmatpush.msra.mxu0 %v2625
    %2910 = vmatpush.msra.mxu0 %v2623
    %2911 = vmatpush.msra.mxu0 %v2621
    %2912 = vmatpush.msra.mxu0 %v2619
    %2913 = vmatpush.msra.mxu0 %v2617
    %2914 = vmatpush.msra.mxu0 %v2615
    %2915 = vmatpush.msra.mxu0 %v2613
    %2916 = vmatmul.f32.gmra.mxu0 %v2604
    %v2917 = vpop.f32.mrf.mxu0
    %v2918 = vadd.f32 %v2819, %v2917
    %2919 = vmatmul.f32.gmra.mxu0 %v2606
    %v2920 = vpop.f32.mrf.mxu0
    %v2921 = vadd.f32 %v2822, %v2920
    %2922 = vmatmul.f32.gmra.mxu0 %v2608
    %v2923 = vpop.f32.mrf.mxu0
    %v2924 = vadd.f32 %v2825, %v2923
    %2925 = vmatmul.f32.gmra.mxu0 %v2610
    %v2926 = vpop.f32.mrf.mxu0
    %v2927 = vadd.f32 %v2828, %v2926
    %2928 = vdwg.mxu0
    %2929 = vmatpush.msra.mxu0 0.0
    %2930 = vmatpush.msra.mxu0 0.0
    %2931 = vmatpush.msra.mxu0 0.0
    %2932 = vmatpush.msra.mxu0 0.0
    %2933 = vmatpush.msra.mxu0 0.0
    %2934 = vmatpush.msra.mxu0 0.0
    %2935 = vmatpush.msra.mxu0 0.0
    %2936 = vmatpush.msra.mxu0 0.0
    %2937 = vmatpush.msra.mxu0 0.0
    %2938 = vmatpush.msra.mxu0 0.0
    %2939 = vmatpush.msra.mxu0 0.0
    %2940 = vmatpush.msra.mxu0 0.0
    %2941 = vmatpush.msra.mxu0 0.0
    %2942 = vmatpush.msra.mxu0 0.0
    %2943 = vmatpush.msra.mxu0 %v2647
    %2944 = vmatpush.msra.mxu0 %v2645
    %2945 = vmatmul.f32.gmra.mxu0 %v2889
    %v2946 = vpop.f32.mrf.mxu0
    %v2947 = vadd.f32 %v2918, %v2946
    %2948 = vmatmul.f32.gmra.mxu0 %v2892
    %v2949 = vpop.f32.mrf.mxu0
    %v2950 = vadd.f32 %v2921, %v2949
    %2951 = vmatmul.f32.gmra.mxu0 %v2895
    %v2952 = vpop.f32.mrf.mxu0
    %v2953 = vadd.f32 %v2924, %v2952
    %2954 = vmatmul.f32.gmra.mxu0 %v2898
    %v2955 = vpop.f32.mrf.mxu0
    %v2956 = vadd.f32 %v2927, %v2955
    %2957 = vdwg.mxu0
    %2958 = vmatpush.msra.mxu0 %v2644
    %2959 = vmatpush.msra.mxu0 %v2642
    %2960 = vmatpush.msra.mxu0 %v2640
    %2961 = vmatpush.msra.mxu0 %v2638
    %2962 = vmatpush.msra.mxu0 %v2636
    %2963 = vmatpush.msra.mxu0 %v2634
    %2964 = vmatpush.msra.mxu0 %v2632
    %2965 = vmatpush.msra.mxu0 %v2630
    %2966 = vmatpush.msra.mxu0 %v2628
    %2967 = vmatpush.msra.mxu0 %v2626
    %2968 = vmatpush.msra.mxu0 %v2624
    %2969 = vmatpush.msra.mxu0 %v2622
    %2970 = vmatpush.msra.mxu0 %v2620
    %2971 = vmatpush.msra.mxu0 %v2618
    %2972 = vmatpush.msra.mxu0 %v2616
    %2973 = vmatpush.msra.mxu0 %v2614
    %2974 = vmatmul.f32.gmra.mxu0 %v2604
    %v2975 = vpop.f32.mrf.mxu0
    %v2976 = vadd.f32 %v2877, %v2975
    %2977 = vmatmul.f32.gmra.mxu0 %v2606
    %v2978 = vpop.f32.mrf.mxu0
    %v2979 = vadd.f32 %v2880, %v2978
    %2980 = vmatmul.f32.gmra.mxu0 %v2608
    %v2981 = vpop.f32.mrf.mxu0
    %v2982 = vadd.f32 %v2883, %v2981
    %2983 = vmatmul.f32.gmra.mxu0 %v2610
    %v2984 = vpop.f32.mrf.mxu0
    %v2985 = vadd.f32 %v2886, %v2984
    %2986 = vdwg.mxu0
    %2987 = vmatpush.msra.mxu0 0.0
    %2988 = vmatpush.msra.mxu0 0.0
    %2989 = vmatpush.msra.mxu0 0.0
    %2990 = vmatpush.msra.mxu0 0.0
    %2991 = vmatpush.msra.mxu0 0.0
    %2992 = vmatpush.msra.mxu0 0.0
    %2993 = vmatpush.msra.mxu0 0.0
    %2994 = vmatpush.msra.mxu0 0.0
    %2995 = vmatpush.msra.mxu0 0.0
    %2996 = vmatpush.msra.mxu0 0.0
    %2997 = vmatpush.msra.mxu0 0.0
    %2998 = vmatpush.msra.mxu0 0.0
    %2999 = vmatpush.msra.mxu0 0.0
    %3000 = vmatpush.msra.mxu0 0.0
    %3001 = vmatpush.msra.mxu0 %v2648
    %3002 = vmatpush.msra.mxu0 %v2646
    %3003 = vmatmul.f32.gmra.mxu0 %v2889
    %v3004 = vpop.f32.mrf.mxu0
    %v3005 = vadd.f32 %v2976, %v3004
    %3006 = vmatmul.f32.gmra.mxu0 %v2892
    %v3007 = vpop.f32.mrf.mxu0
    %v3008 = vadd.f32 %v2979, %v3007
    %3009 = vmatmul.f32.gmra.mxu0 %v2895
    %v3010 = vpop.f32.mrf.mxu0
    %v3011 = vadd.f32 %v2982, %v3010
    %3012 = vmatmul.f32.gmra.mxu0 %v2898
    %v3013 = vpop.f32.mrf.mxu0
    %v3014 = vadd.f32 %v2985, %v3013
    %3015 = vdwg.mxu0
    %s3016 = scalar_lea.vmem [#allocation11], 32
    %v3017 = vld [vmem:[%s3016] sm:$0xff]
    %v3018 = vld [vmem:[%s3016 + $0x8] sm:$0xff]
    %v3019 = vld [vmem:[%s3016 + $0x10] sm:$0xff]
    %v3020 = vld [vmem:[%s3016 + $0x18] sm:$0xff]
    %v3022 = vsel %vm691, %v3017, 0
    %v3025 = vsel %vm691, %v3018, 0
    %v3028 = vsel %vm691, %v3019, 0
    %v3031 = vsel %vm691, %v3020, 0
    %3033 = vmatpush.msra.mxu0 0.0
    %3034 = vmatpush.msra.mxu0 0.0
    %3035 = vmatpush.msra.mxu0 0.0
    %3036 = vmatpush.msra.mxu0 0.0
    %3037 = vmatpush.msra.mxu0 0.0
    %3038 = vmatpush.msra.mxu0 0.0
    %3039 = vmatpush.msra.mxu0 0.0
    %3040 = vmatpush.msra.mxu0 0.0
    %3041 = vmatpush.msra.mxu0 0.0
    %3042 = vmatpush.msra.mxu0 0.0
    %3043 = vmatpush.msra.mxu0 0.0
    %3044 = vmatpush.msra.mxu0 0.0
    %3045 = vmatpush.msra.mxu0 %v2610
    %3046 = vmatpush.msra.mxu0 %v2608
    %3047 = vmatpush.msra.mxu0 %v2606
    %3048 = vmatpush.msra.mxu0 %v2604
    %3049 = vmatmul.f32.gmra.mxu0 %v3022
    %v3050 = vpop.f32.mrf.mxu0
    %v3051 = vadd.f32 0.0, %v3050
    %3052 = vmatmul.f32.gmra.mxu0 %v3025
    %v3053 = vpop.f32.mrf.mxu0
    %v3054 = vadd.f32 0.0, %v3053
    %3055 = vmatmul.f32.gmra.mxu0 %v3028
    %v3056 = vpop.f32.mrf.mxu0
    %v3057 = vadd.f32 0.0, %v3056
    %3058 = vmatmul.f32.gmra.mxu0 %v3031
    %v3059 = vpop.f32.mrf.mxu0
    %v3060 = vadd.f32 0.0, %v3059
    %3061 = vdwg.mxu0
    %3062 = vmatpush.msra.mxu0 0.0
    %3063 = vmatpush.msra.mxu0 0.0
    %3064 = vmatpush.msra.mxu0 0.0
    %3065 = vmatpush.msra.mxu0 0.0
    %3066 = vmatpush.msra.mxu0 0.0
    %3067 = vmatpush.msra.mxu0 0.0
    %3068 = vmatpush.msra.mxu0 0.0
    %3069 = vmatpush.msra.mxu0 0.0
    %3070 = vmatpush.msra.mxu0 0.0
    %3071 = vmatpush.msra.mxu0 0.0
    %3072 = vmatpush.msra.mxu0 0.0
    %3073 = vmatpush.msra.mxu0 0.0
    %3074 = vmatpush.msra.mxu0 %v2611
    %3075 = vmatpush.msra.mxu0 %v2609
    %3076 = vmatpush.msra.mxu0 %v2607
    %3077 = vmatpush.msra.mxu0 %v2605
    %3078 = vmatmul.f32.gmra.mxu0 %v3022
    %v3079 = vpop.f32.mrf.mxu0
    %v3080 = vadd.f32 0.0, %v3079
    %3081 = vmatmul.f32.gmra.mxu0 %v3025
    %v3082 = vpop.f32.mrf.mxu0
    %v3083 = vadd.f32 0.0, %v3082
    %3084 = vmatmul.f32.gmra.mxu0 %v3028
    %v3085 = vpop.f32.mrf.mxu0
    %v3086 = vadd.f32 0.0, %v3085
    %3087 = vmatmul.f32.gmra.mxu0 %v3031
    %v3088 = vpop.f32.mrf.mxu0
    %v3089 = vadd.f32 0.0, %v3088
    %3090 = vdwg.mxu0
    %s3091 = scalar_lea.vmem %s23, 576
    %v3092 = vld [vmem:[%s3091] sm:$0xff]
    %v3093 = vld [vmem:[%s3091 + $0x8] sm:$0xff]
    %v3094 = vld [vmem:[%s3091 + $0x10] sm:$0xff]
    %v3095 = vld [vmem:[%s3091 + $0x18] sm:$0xff]
    %v3096 = vld [vmem:[%s3091 + $0x20] sm:$0xff]
    %v3097 = vld [vmem:[%s3091 + $0x28] sm:$0xff]
    %v3098 = vld [vmem:[%s3091 + $0x30] sm:$0xff]
    %v3099 = vld [vmem:[%s3091 + $0x38] sm:$0xff]
    %v3100 = vld [vmem:[%s3091 + $0x40] sm:$0xff]
    %v3101 = vld [vmem:[%s3091 + $0x48] sm:$0xff]
    %v3102 = vld [vmem:[%s3091 + $0x50] sm:$0xff]
    %v3103 = vld [vmem:[%s3091 + $0x58] sm:$0xff]
    %v3104 = vld [vmem:[%s3091 + $0x60] sm:$0xff]
    %v3105 = vld [vmem:[%s3091 + $0x68] sm:$0xff]
    %v3106 = vld [vmem:[%s3091 + $0x70] sm:$0xff]
    %v3107 = vld [vmem:[%s3091 + $0x78] sm:$0xff]
    %v3108 = vld [vmem:[%s3091 + $0x80] sm:$0xff]
    %v3109 = vld [vmem:[%s3091 + $0x88] sm:$0xff]
    %v3110 = vld [vmem:[%s3091 + $0x90] sm:$0xff]
    %v3111 = vld [vmem:[%s3091 + $0x98] sm:$0xff]
    %v3112 = vld [vmem:[%s3091 + $0xa0] sm:$0xff]
    %v3113 = vld [vmem:[%s3091 + $0xa8] sm:$0xff]
    %v3114 = vld [vmem:[%s3091 + $0xb0] sm:$0xff]
    %v3115 = vld [vmem:[%s3091 + $0xb8] sm:$0xff]
    %v3116 = vld [vmem:[%s3091 + $0xc0] sm:$0xff]
    %v3117 = vld [vmem:[%s3091 + $0xc8] sm:$0xff]
    %v3118 = vld [vmem:[%s3091 + $0xd0] sm:$0xff]
    %v3119 = vld [vmem:[%s3091 + $0xd8] sm:$0xff]
    %v3120 = vld [vmem:[%s3091 + $0xe0] sm:$0xff]
    %v3121 = vld [vmem:[%s3091 + $0xe8] sm:$0xff]
    %v3122 = vld [vmem:[%s3091 + $0xf0] sm:$0xff]
    %v3123 = vld [vmem:[%s3091 + $0xf8] sm:$0xff]
    %v3124 = vld [vmem:[%s3091 + $0x100] sm:$0xff]
    %v3125 = vld [vmem:[%s3091 + $0x108] sm:$0xff]
    %v3126 = vld [vmem:[%s3091 + $0x110] sm:$0xff]
    %v3127 = vld [vmem:[%s3091 + $0x118] sm:$0xff]
    %v3129 = vsel %vm2759, %v3080, 0
    %v3132 = vsel %vm2759, %v3083, 0
    %v3135 = vsel %vm2759, %v3086, 0
    %v3138 = vsel %vm2759, %v3089, 0
    %3140 = vmatpush.msra.mxu0 %v3122
    %3141 = vmatpush.msra.mxu0 %v3120
    %3142 = vmatpush.msra.mxu0 %v3118
    %3143 = vmatpush.msra.mxu0 %v3116
    %3144 = vmatpush.msra.mxu0 %v3114
    %3145 = vmatpush.msra.mxu0 %v3112
    %3146 = vmatpush.msra.mxu0 %v3110
    %3147 = vmatpush.msra.mxu0 %v3108
    %3148 = vmatpush.msra.mxu0 %v3106
    %3149 = vmatpush.msra.mxu0 %v3104
    %3150 = vmatpush.msra.mxu0 %v3102
    %3151 = vmatpush.msra.mxu0 %v3100
    %3152 = vmatpush.msra.mxu0 %v3098
    %3153 = vmatpush.msra.mxu0 %v3096
    %3154 = vmatpush.msra.mxu0 %v3094
    %3155 = vmatpush.msra.mxu0 %v3092
    %3156 = vmatmul.f32.gmra.mxu0 %v3051
    %v3157 = vpop.f32.mrf.mxu0
    %v3158 = vadd.f32 0.0, %v3157
    %3159 = vmatmul.f32.gmra.mxu0 %v3054
    %v3160 = vpop.f32.mrf.mxu0
    %v3161 = vadd.f32 0.0, %v3160
    %3162 = vmatmul.f32.gmra.mxu0 %v3057
    %v3163 = vpop.f32.mrf.mxu0
    %v3164 = vadd.f32 0.0, %v3163
    %3165 = vmatmul.f32.gmra.mxu0 %v3060
    %v3166 = vpop.f32.mrf.mxu0
    %v3167 = vadd.f32 0.0, %v3166
    %3168 = vdwg.mxu0
    %3169 = vmatpush.msra.mxu0 0.0
    %3170 = vmatpush.msra.mxu0 0.0
    %3171 = vmatpush.msra.mxu0 0.0
    %3172 = vmatpush.msra.mxu0 0.0
    %3173 = vmatpush.msra.mxu0 0.0
    %3174 = vmatpush.msra.mxu0 0.0
    %3175 = vmatpush.msra.mxu0 0.0
    %3176 = vmatpush.msra.mxu0 0.0
    %3177 = vmatpush.msra.mxu0 0.0
    %3178 = vmatpush.msra.mxu0 0.0
    %3179 = vmatpush.msra.mxu0 0.0
    %3180 = vmatpush.msra.mxu0 0.0
    %3181 = vmatpush.msra.mxu0 0.0
    %3182 = vmatpush.msra.mxu0 0.0
    %3183 = vmatpush.msra.mxu0 %v3126
    %3184 = vmatpush.msra.mxu0 %v3124
    %3185 = vmatmul.f32.gmra.mxu0 %v3129
    %v3186 = vpop.f32.mrf.mxu0
    %v3187 = vadd.f32 %v3158, %v3186
    %3188 = vmatmul.f32.gmra.mxu0 %v3132
    %v3189 = vpop.f32.mrf.mxu0
    %v3190 = vadd.f32 %v3161, %v3189
    %3191 = vmatmul.f32.gmra.mxu0 %v3135
    %v3192 = vpop.f32.mrf.mxu0
    %v3193 = vadd.f32 %v3164, %v3192
    %3194 = vmatmul.f32.gmra.mxu0 %v3138
    %v3195 = vpop.f32.mrf.mxu0
    %v3196 = vadd.f32 %v3167, %v3195
    %3197 = vdwg.mxu0
    %3198 = vmatpush.msra.mxu0 %v3123
    %3199 = vmatpush.msra.mxu0 %v3121
    %3200 = vmatpush.msra.mxu0 %v3119
    %3201 = vmatpush.msra.mxu0 %v3117
    %3202 = vmatpush.msra.mxu0 %v3115
    %3203 = vmatpush.msra.mxu0 %v3113
    %3204 = vmatpush.msra.mxu0 %v3111
    %3205 = vmatpush.msra.mxu0 %v3109
    %3206 = vmatpush.msra.mxu0 %v3107
    %3207 = vmatpush.msra.mxu0 %v3105
    %3208 = vmatpush.msra.mxu0 %v3103
    %3209 = vmatpush.msra.mxu0 %v3101
    %3210 = vmatpush.msra.mxu0 %v3099
    %3211 = vmatpush.msra.mxu0 %v3097
    %3212 = vmatpush.msra.mxu0 %v3095
    %3213 = vmatpush.msra.mxu0 %v3093
    %3214 = vmatmul.f32.gmra.mxu0 %v3051
    %v3215 = vpop.f32.mrf.mxu0
    %v3216 = vadd.f32 0.0, %v3215
    %3217 = vmatmul.f32.gmra.mxu0 %v3054
    %v3218 = vpop.f32.mrf.mxu0
    %v3219 = vadd.f32 0.0, %v3218
    %3220 = vmatmul.f32.gmra.mxu0 %v3057
    %v3221 = vpop.f32.mrf.mxu0
    %v3222 = vadd.f32 0.0, %v3221
    %3223 = vmatmul.f32.gmra.mxu0 %v3060
    %v3224 = vpop.f32.mrf.mxu0
    %v3225 = vadd.f32 0.0, %v3224
    %3226 = vdwg.mxu0
    %3227 = vmatpush.msra.mxu0 0.0
    %3228 = vmatpush.msra.mxu0 0.0
    %3229 = vmatpush.msra.mxu0 0.0
    %3230 = vmatpush.msra.mxu0 0.0
    %3231 = vmatpush.msra.mxu0 0.0
    %3232 = vmatpush.msra.mxu0 0.0
    %3233 = vmatpush.msra.mxu0 0.0
    %3234 = vmatpush.msra.mxu0 0.0
    %3235 = vmatpush.msra.mxu0 0.0
    %3236 = vmatpush.msra.mxu0 0.0
    %3237 = vmatpush.msra.mxu0 0.0
    %3238 = vmatpush.msra.mxu0 0.0
    %3239 = vmatpush.msra.mxu0 0.0
    %3240 = vmatpush.msra.mxu0 0.0
    %3241 = vmatpush.msra.mxu0 %v3127
    %3242 = vmatpush.msra.mxu0 %v3125
    %3243 = vmatmul.f32.gmra.mxu0 %v3129
    %v3244 = vpop.f32.mrf.mxu0
    %v3245 = vadd.f32 %v3216, %v3244
    %3246 = vmatmul.f32.gmra.mxu0 %v3132
    %v3247 = vpop.f32.mrf.mxu0
    %v3248 = vadd.f32 %v3219, %v3247
    %3249 = vmatmul.f32.gmra.mxu0 %v3135
    %v3250 = vpop.f32.mrf.mxu0
    %v3251 = vadd.f32 %v3222, %v3250
    %3252 = vmatmul.f32.gmra.mxu0 %v3138
    %v3253 = vpop.f32.mrf.mxu0
    %v3254 = vadd.f32 %v3225, %v3253
    %3255 = vdwg.mxu0
    %v3256 = vadd.f32 %v2947, %v3187
    %v3257 = vadd.f32 %v3005, %v3245
    %v3258 = vadd.f32 %v2950, %v3190
    %v3259 = vadd.f32 %v3008, %v3248
    %v3260 = vadd.f32 %v2953, %v3193
    %v3261 = vadd.f32 %v3011, %v3251
    %v3262 = vadd.f32 %v2956, %v3196
    %v3263 = vadd.f32 %v3014, %v3254
    %v3264 = vld [vmem:[%s31] sm:$0xff]
    %v3265 = vld [vmem:[%s31 + $0x8] sm:$0xff]
    %v3266 = vld [vmem:[%s31 + $0x10] sm:$0xff]
    %v3267 = vld [vmem:[%s31 + $0x18] sm:$0xff]
    %v3268 = vld [vmem:[%s31 + $0x20] sm:$0xff]
    %v3269 = vld [vmem:[%s31 + $0x28] sm:$0xff]
    %v3270 = vld [vmem:[%s31 + $0x30] sm:$0xff]
    %v3271 = vld [vmem:[%s31 + $0x38] sm:$0xff]
    %v3272 = vld [vmem:[%s31 + $0x40] sm:$0xff]
    %v3273 = vld [vmem:[%s31 + $0x48] sm:$0xff]
    %v3274 = vld [vmem:[%s31 + $0x50] sm:$0xff]
    %v3275 = vld [vmem:[%s31 + $0x58] sm:$0xff]
    %v3276 = vld [vmem:[%s31 + $0x60] sm:$0xff]
    %v3277 = vld [vmem:[%s31 + $0x68] sm:$0xff]
    %v3278 = vld [vmem:[%s31 + $0x70] sm:$0xff]
    %v3279 = vld [vmem:[%s31 + $0x78] sm:$0xff]
    %v3280 = vld [vmem:[%s31 + $0x80] sm:$0xff]
    %v3281 = vld [vmem:[%s31 + $0x88] sm:$0xff]
    %v3282 = vld [vmem:[%s31 + $0x90] sm:$0xff]
    %v3283 = vld [vmem:[%s31 + $0x98] sm:$0xff]
    %v3284 = vld [vmem:[%s31 + $0xa0] sm:$0xff]
    %v3285 = vld [vmem:[%s31 + $0xa8] sm:$0xff]
    %v3286 = vld [vmem:[%s31 + $0xb0] sm:$0xff]
    %v3287 = vld [vmem:[%s31 + $0xb8] sm:$0xff]
    %v3288 = vld [vmem:[%s31 + $0xc0] sm:$0xff]
    %v3289 = vld [vmem:[%s31 + $0xc8] sm:$0xff]
    %v3290 = vld [vmem:[%s31 + $0xd0] sm:$0xff]
    %v3291 = vld [vmem:[%s31 + $0xd8] sm:$0xff]
    %v3292 = vld [vmem:[%s31 + $0xe0] sm:$0xff]
    %v3293 = vld [vmem:[%s31 + $0xe8] sm:$0xff]
    %v3294 = vld [vmem:[%s31 + $0xf0] sm:$0xff]
    %v3295 = vld [vmem:[%s31 + $0xf8] sm:$0xff]
    %v3296 = vld [vmem:[#allocation14] sm:$0xff]
    %v3297 = vld [vmem:[#allocation14 + $0x8] sm:$0xff]
    %v3298 = vld [vmem:[#allocation14 + $0x10] sm:$0xff]
    %v3299 = vld [vmem:[#allocation14 + $0x18] sm:$0xff]
    %v3300 = vadd.f32 %v3256, %v3258
    %v3301 = vadd.f32 %v3300, %v3260
    %v3302 = vadd.f32 %v3301, %v3262
    %v3303 = vrot.slane %v3302, 4
    %v3304 = vadd.f32 %v3302, %v3303
    %v3305 = vrot.slane %v3304, 2
    %v3306 = vadd.f32 %v3304, %v3305
    %v3307 = vrot.slane %v3306, 1
    %v3308 = vadd.f32 %v3306, %v3307
    %v3309 = vadd.f32 %v3257, %v3259
    %v3310 = vadd.f32 %v3309, %v3261
    %v3311 = vadd.f32 %v3310, %v3263
    %v3312 = vrot.slane %v3311, 4
    %v3313 = vadd.f32 %v3311, %v3312
    %v3314 = vrot.slane %v3313, 2
    %v3315 = vadd.f32 %v3313, %v3314
    %v3316 = vrot.slane %v3315, 1
    %v3317 = vadd.f32 %v3315, %v3316
    %3318 = vmatpush.msra.mxu0 %v3279
    %3319 = vmatpush.msra.mxu0 %v3278
    %3320 = vmatpush.msra.mxu0 %v3277
    %3321 = vmatpush.msra.mxu0 %v3276
    %3322 = vmatpush.msra.mxu0 %v3275
    %3323 = vmatpush.msra.mxu0 %v3274
    %3324 = vmatpush.msra.mxu0 %v3273
    %3325 = vmatpush.msra.mxu0 %v3272
    %3326 = vmatpush.msra.mxu0 %v3271
    %3327 = vmatpush.msra.mxu0 %v3270
    %3328 = vmatpush.msra.mxu0 %v3269
    %3329 = vmatpush.msra.mxu0 %v3268
    %3330 = vmatpush.msra.mxu0 %v3267
    %3331 = vmatpush.msra.mxu0 %v3266
    %3332 = vmatpush.msra.mxu0 %v3265
    %3333 = vmatpush.msra.mxu0 %v3264
    %3334 = vmatmul.f32.gmra.mxu0 %v3308
    %v3335 = vpop.f32.mrf.mxu0
    %v3336 = vadd.f32 0.0, %v3335
    %3337 = vdwg.mxu0
    %3338 = vmatpush.msra.mxu0 %v3295
    %3339 = vmatpush.msra.mxu0 %v3294
    %3340 = vmatpush.msra.mxu0 %v3293
    %3341 = vmatpush.msra.mxu0 %v3292
    %3342 = vmatpush.msra.mxu0 %v3291
    %3343 = vmatpush.msra.mxu0 %v3290
    %3344 = vmatpush.msra.mxu0 %v3289
    %3345 = vmatpush.msra.mxu0 %v3288
    %3346 = vmatpush.msra.mxu0 %v3287
    %3347 = vmatpush.msra.mxu0 %v3286
    %3348 = vmatpush.msra.mxu0 %v3285
    %3349 = vmatpush.msra.mxu0 %v3284
    %3350 = vmatpush.msra.mxu0 %v3283
    %3351 = vmatpush.msra.mxu0 %v3282
    %3352 = vmatpush.msra.mxu0 %v3281
    %3353 = vmatpush.msra.mxu0 %v3280
    %3354 = vmatmul.f32.gmra.mxu0 %v3317
    %v3355 = vpop.f32.mrf.mxu0
    %v3356 = vadd.f32 %v3336, %v3355
    %3357 = vdwg.mxu0
    %v3358 = vmul.f32 %v3356, 0.001953125
    %v3360 = vsel %vm2759, %v3358, 0
    %3362 = vmatpush.msra.mxu0 0.0
    %3363 = vmatpush.msra.mxu0 0.0
    %3364 = vmatpush.msra.mxu0 0.0
    %3365 = vmatpush.msra.mxu0 0.0
    %3366 = vmatpush.msra.mxu0 0.0
    %3367 = vmatpush.msra.mxu0 0.0
    %3368 = vmatpush.msra.mxu0 0.0
    %3369 = vmatpush.msra.mxu0 0.0
    %3370 = vmatpush.msra.mxu0 0.0
    %3371 = vmatpush.msra.mxu0 0.0
    %3372 = vmatpush.msra.mxu0 0.0
    %3373 = vmatpush.msra.mxu0 0.0
    %3374 = vmatpush.msra.mxu0 0.0
    %3375 = vmatpush.msra.mxu0 0.0
    %3376 = vmatpush.msra.mxu0 %v3298
    %3377 = vmatpush.msra.mxu0 %v3296
    %3378 = vmatmul.f32.gmra.mxu0 %v3360
    %v3379 = vpop.f32.mrf.mxu0
    %v3380 = vadd.f32 0.0, %v3379
    %3381 = vdwg.mxu0
    %3382 = vmatpush.msra.mxu0 0.0
    %3383 = vmatpush.msra.mxu0 0.0
    %3384 = vmatpush.msra.mxu0 0.0
    %3385 = vmatpush.msra.mxu0 0.0
    %3386 = vmatpush.msra.mxu0 0.0
    %3387 = vmatpush.msra.mxu0 0.0
    %3388 = vmatpush.msra.mxu0 0.0
    %3389 = vmatpush.msra.mxu0 0.0
    %3390 = vmatpush.msra.mxu0 0.0
    %3391 = vmatpush.msra.mxu0 0.0
    %3392 = vmatpush.msra.mxu0 0.0
    %3393 = vmatpush.msra.mxu0 0.0
    %3394 = vmatpush.msra.mxu0 0.0
    %3395 = vmatpush.msra.mxu0 0.0
    %3396 = vmatpush.msra.mxu0 %v3299
    %3397 = vmatpush.msra.mxu0 %v3297
    %3398 = vmatmul.f32.gmra.mxu0 %v3360
    %v3399 = vpop.f32.mrf.mxu0
    %v3400 = vadd.f32 0.0, %v3399
    %3401 = vdwg.mxu0
    %v3402 = vperm.slane %v3380, 0
    %v3403 = vperm.slane %v3400, 0
    %v3404 = vsub.f32 %v3256, %v3402
    %v3405 = vsub.f32 %v3257, %v3403
    %v3406 = vsub.f32 %v3258, %v3402
    %v3407 = vsub.f32 %v3259, %v3403
    %v3408 = vsub.f32 %v3260, %v3402
    %v3409 = vsub.f32 %v3261, %v3403
    %v3410 = vsub.f32 %v3262, %v3402
    %v3411 = vsub.f32 %v3263, %v3403
    %v3412 = vmul.f32 %v3404, %v3404
    %v3413 = vmul.f32 %v3405, %v3405
    %v3414 = vmul.f32 %v3406, %v3406
    %v3415 = vmul.f32 %v3407, %v3407
    %v3416 = vmul.f32 %v3408, %v3408
    %v3417 = vmul.f32 %v3409, %v3409
    %v3418 = vmul.f32 %v3410, %v3410
    %v3419 = vmul.f32 %v3411, %v3411
    %v3420 = vadd.f32 %v3412, %v3414
    %v3421 = vadd.f32 %v3420, %v3416
    %v3422 = vadd.f32 %v3421, %v3418
    %v3423 = vrot.slane %v3422, 4
    %v3424 = vadd.f32 %v3422, %v3423
    %v3425 = vrot.slane %v3424, 2
    %v3426 = vadd.f32 %v3424, %v3425
    %v3427 = vrot.slane %v3426, 1
    %v3428 = vadd.f32 %v3426, %v3427
    %v3429 = vadd.f32 %v3413, %v3415
    %v3430 = vadd.f32 %v3429, %v3417
    %v3431 = vadd.f32 %v3430, %v3419
    %v3432 = vrot.slane %v3431, 4
    %v3433 = vadd.f32 %v3431, %v3432
    %v3434 = vrot.slane %v3433, 2
    %v3435 = vadd.f32 %v3433, %v3434
    %v3436 = vrot.slane %v3435, 1
    %v3437 = vadd.f32 %v3435, %v3436
    %3438 = vmatpush.msra.mxu0 %v3279
    %3439 = vmatpush.msra.mxu0 %v3278
    %3440 = vmatpush.msra.mxu0 %v3277
    %3441 = vmatpush.msra.mxu0 %v3276
    %3442 = vmatpush.msra.mxu0 %v3275
    %3443 = vmatpush.msra.mxu0 %v3274
    %3444 = vmatpush.msra.mxu0 %v3273
    %3445 = vmatpush.msra.mxu0 %v3272
    %3446 = vmatpush.msra.mxu0 %v3271
    %3447 = vmatpush.msra.mxu0 %v3270
    %3448 = vmatpush.msra.mxu0 %v3269
    %3449 = vmatpush.msra.mxu0 %v3268
    %3450 = vmatpush.msra.mxu0 %v3267
    %3451 = vmatpush.msra.mxu0 %v3266
    %3452 = vmatpush.msra.mxu0 %v3265
    %3453 = vmatpush.msra.mxu0 %v3264
    %3454 = vmatmul.f32.gmra.mxu0 %v3428
    %v3455 = vpop.f32.mrf.mxu0
    %v3456 = vadd.f32 0.0, %v3455
    %3457 = vdwg.mxu0
    %3458 = vmatpush.msra.mxu0 %v3295
    %3459 = vmatpush.msra.mxu0 %v3294
    %3460 = vmatpush.msra.mxu0 %v3293
    %3461 = vmatpush.msra.mxu0 %v3292
    %3462 = vmatpush.msra.mxu0 %v3291
    %3463 = vmatpush.msra.mxu0 %v3290
    %3464 = vmatpush.msra.mxu0 %v3289
    %3465 = vmatpush.msra.mxu0 %v3288
    %3466 = vmatpush.msra.mxu0 %v3287
    %3467 = vmatpush.msra.mxu0 %v3286
    %3468 = vmatpush.msra.mxu0 %v3285
    %3469 = vmatpush.msra.mxu0 %v3284
    %3470 = vmatpush.msra.mxu0 %v3283
    %3471 = vmatpush.msra.mxu0 %v3282
    %3472 = vmatpush.msra.mxu0 %v3281
    %3473 = vmatpush.msra.mxu0 %v3280
    %3474 = vmatmul.f32.gmra.mxu0 %v3437
    %v3475 = vpop.f32.mrf.mxu0
    %v3476 = vadd.f32 %v3456, %v3475
    %3477 = vdwg.mxu0
    %v3478 = vmul.f32 %v3476, 0.001953125
    %v3479 = vadd.f32 %v3478, 1e-05
    %v3480 = vrsqrt.pop %v3479
    %v3481 = vmul.f32 %v3480, %v3479
    %v3482 = vmul.f32 %v3481, %v3480
    %v3483 = vmul.f32 0.5, %v3482
    %v3484 = vsub.f32 1.5, %v3483
    %v3485 = vmul.f32 %v3480, %v3484
    %vm3486 = vweird.f32 %v3479
    %vm3487 = vweird.f32 %v3480
    %vm3488 = vmor %vm3486, %vm3487
    %v3489 = vsel %vm3488, %v3480, %v3485
    %v3491 = vsel %vm2759, %v3489, 0
    %3493 = vmatpush.msra.mxu0 0.0
    %3494 = vmatpush.msra.mxu0 0.0
    %3495 = vmatpush.msra.mxu0 0.0
    %3496 = vmatpush.msra.mxu0 0.0
    %3497 = vmatpush.msra.mxu0 0.0
    %3498 = vmatpush.msra.mxu0 0.0
    %3499 = vmatpush.msra.mxu0 0.0
    %3500 = vmatpush.msra.mxu0 0.0
    %3501 = vmatpush.msra.mxu0 0.0
    %3502 = vmatpush.msra.mxu0 0.0
    %3503 = vmatpush.msra.mxu0 0.0
    %3504 = vmatpush.msra.mxu0 0.0
    %3505 = vmatpush.msra.mxu0 0.0
    %3506 = vmatpush.msra.mxu0 0.0
    %3507 = vmatpush.msra.mxu0 %v3298
    %3508 = vmatpush.msra.mxu0 %v3296
    %3509 = vmatmul.f32.gmra.mxu0 %v3491
    %v3510 = vpop.f32.mrf.mxu0
    %v3511 = vadd.f32 0.0, %v3510
    %3512 = vdwg.mxu0
    %3513 = vmatpush.msra.mxu0 0.0
    %3514 = vmatpush.msra.mxu0 0.0
    %3515 = vmatpush.msra.mxu0 0.0
    %3516 = vmatpush.msra.mxu0 0.0
    %3517 = vmatpush.msra.mxu0 0.0
    %3518 = vmatpush.msra.mxu0 0.0
    %3519 = vmatpush.msra.mxu0 0.0
    %3520 = vmatpush.msra.mxu0 0.0
    %3521 = vmatpush.msra.mxu0 0.0
    %3522 = vmatpush.msra.mxu0 0.0
    %3523 = vmatpush.msra.mxu0 0.0
    %3524 = vmatpush.msra.mxu0 0.0
    %3525 = vmatpush.msra.mxu0 0.0
    %3526 = vmatpush.msra.mxu0 0.0
    %3527 = vmatpush.msra.mxu0 %v3299
    %3528 = vmatpush.msra.mxu0 %v3297
    %3529 = vmatmul.f32.gmra.mxu0 %v3491
    %v3530 = vpop.f32.mrf.mxu0
    %v3531 = vadd.f32 0.0, %v3530
    %3532 = vdwg.mxu0
    %v3533 = vperm.slane %v3511, 0
    %v3534 = vperm.slane %v3531, 0
    %v3535 = vmul.f32 %v3404, %v3533
    %v3536 = vmul.f32 %v3405, %v3534
    %v3537 = vmul.f32 %v3406, %v3533
    %v3538 = vmul.f32 %v3407, %v3534
    %v3539 = vmul.f32 %v3408, %v3533
    %v3540 = vmul.f32 %v3409, %v3534
    %v3541 = vmul.f32 %v3410, %v3533
    %v3542 = vmul.f32 %v3411, %v3534
    %v3543 = vld [vmem:[#allocation16] sm:$0x3]
    %v3545 = vperm.slane %v3543, 0
    %v3546 = vperm.slane %v3543, 1
    %v3549 = vmul.f32 %v3535, %v3545
    %v3550 = vmul.f32 %v3536, %v3546
    %v3551 = vmul.f32 %v3537, %v3545
    %v3552 = vmul.f32 %v3538, %v3546
    %v3553 = vmul.f32 %v3539, %v3545
    %v3554 = vmul.f32 %v3540, %v3546
    %v3555 = vmul.f32 %v3541, %v3545
    %v3556 = vmul.f32 %v3542, %v3546
    %v3557 = vld [vmem:[#allocation17] sm:$0x3]
    %v3559 = vperm.slane %v3557, 0
    %v3560 = vperm.slane %v3557, 1
    %v3563 = vadd.f32 %v3549, %v3559
    %v3564 = vadd.f32 %v3550, %v3560
    %v3565 = vadd.f32 %v3551, %v3559
    %v3566 = vadd.f32 %v3552, %v3560
    %v3567 = vadd.f32 %v3553, %v3559
    %v3568 = vadd.f32 %v3554, %v3560
    %v3569 = vadd.f32 %v3555, %v3559
    %v3570 = vadd.f32 %v3556, %v3560
    %v3571 = vmax.f32 %v3563, 0.0
    %v3572 = vmax.f32 %v3564, 0.0
    %v3573 = vmax.f32 %v3565, 0.0
    %v3574 = vmax.f32 %v3566, 0.0
    %v3575 = vmax.f32 %v3567, 0.0
    %v3576 = vmax.f32 %v3568, 0.0
    %v3577 = vmax.f32 %v3569, 0.0
    %v3578 = vmax.f32 %v3570, 0.0
    %v3579 = vld [vmem:[%s27] sm:$0xff]
    %v3580 = vld [vmem:[%s27 + $0x8] sm:$0xff]
    %v3581 = vld [vmem:[%s27 + $0x10] sm:$0xff]
    %v3582 = vld [vmem:[%s27 + $0x18] sm:$0xff]
    %v3583 = vld [vmem:[%s27 + $0x20] sm:$0xff]
    %v3584 = vld [vmem:[%s27 + $0x28] sm:$0xff]
    %v3585 = vld [vmem:[%s27 + $0x30] sm:$0xff]
    %v3586 = vld [vmem:[%s27 + $0x38] sm:$0xff]
    %v3587 = vld [vmem:[%s27 + $0x40] sm:$0xff]
    %v3588 = vld [vmem:[%s27 + $0x48] sm:$0xff]
    %v3589 = vld [vmem:[%s27 + $0x50] sm:$0xff]
    %v3590 = vld [vmem:[%s27 + $0x58] sm:$0xff]
    %v3591 = vld [vmem:[%s27 + $0x60] sm:$0xff]
    %v3592 = vld [vmem:[%s27 + $0x68] sm:$0xff]
    %v3593 = vld [vmem:[%s27 + $0x70] sm:$0xff]
    %v3594 = vld [vmem:[%s27 + $0x78] sm:$0xff]
    %v3595 = vld [vmem:[%s27 + $0x80] sm:$0xff]
    %v3596 = vld [vmem:[%s27 + $0x88] sm:$0xff]
    %v3597 = vld [vmem:[%s27 + $0x90] sm:$0xff]
    %v3598 = vld [vmem:[%s27 + $0x98] sm:$0xff]
    %v3599 = vld [vmem:[%s27 + $0xa0] sm:$0xff]
    %v3600 = vld [vmem:[%s27 + $0xa8] sm:$0xff]
    %v3601 = vld [vmem:[%s27 + $0xb0] sm:$0xff]
    %v3602 = vld [vmem:[%s27 + $0xb8] sm:$0xff]
    %v3603 = vld [vmem:[%s27 + $0xc0] sm:$0xff]
    %v3604 = vld [vmem:[%s27 + $0xc8] sm:$0xff]
    %v3605 = vld [vmem:[%s27 + $0xd0] sm:$0xff]
    %v3606 = vld [vmem:[%s27 + $0xd8] sm:$0xff]
    %v3607 = vld [vmem:[%s27 + $0xe0] sm:$0xff]
    %v3608 = vld [vmem:[%s27 + $0xe8] sm:$0xff]
    %v3609 = vld [vmem:[%s27 + $0xf0] sm:$0xff]
    %v3610 = vld [vmem:[%s27 + $0xf8] sm:$0xff]
    %v3611 = vld [vmem:[%s27 + $0x100] sm:$0xff]
    %v3612 = vld [vmem:[%s27 + $0x108] sm:$0xff]
    %v3613 = vld [vmem:[%s27 + $0x110] sm:$0xff]
    %v3614 = vld [vmem:[%s27 + $0x118] sm:$0xff]
    %v3615 = vld [vmem:[%s27 + $0x120] sm:$0xff]
    %v3616 = vld [vmem:[%s27 + $0x128] sm:$0xff]
    %v3617 = vld [vmem:[%s27 + $0x130] sm:$0xff]
    %v3618 = vld [vmem:[%s27 + $0x138] sm:$0xff]
    %v3619 = vld [vmem:[%s27 + $0x140] sm:$0xff]
    %v3620 = vld [vmem:[%s27 + $0x148] sm:$0xff]
    %v3621 = vld [vmem:[%s27 + $0x150] sm:$0xff]
    %v3622 = vld [vmem:[%s27 + $0x158] sm:$0xff]
    %v3623 = vld [vmem:[%s27 + $0x160] sm:$0xff]
    %v3624 = vld [vmem:[%s27 + $0x168] sm:$0xff]
    %v3625 = vld [vmem:[%s27 + $0x170] sm:$0xff]
    %v3626 = vld [vmem:[%s27 + $0x178] sm:$0xff]
    %v3627 = vld [vmem:[%s27 + $0x180] sm:$0xff]
    %v3628 = vld [vmem:[%s27 + $0x188] sm:$0xff]
    %v3629 = vld [vmem:[%s27 + $0x190] sm:$0xff]
    %v3630 = vld [vmem:[%s27 + $0x198] sm:$0xff]
    %v3631 = vld [vmem:[%s27 + $0x1a0] sm:$0xff]
    %v3632 = vld [vmem:[%s27 + $0x1a8] sm:$0xff]
    %v3633 = vld [vmem:[%s27 + $0x1b0] sm:$0xff]
    %v3634 = vld [vmem:[%s27 + $0x1b8] sm:$0xff]
    %v3635 = vld [vmem:[%s27 + $0x1c0] sm:$0xff]
    %v3636 = vld [vmem:[%s27 + $0x1c8] sm:$0xff]
    %v3637 = vld [vmem:[%s27 + $0x1d0] sm:$0xff]
    %v3638 = vld [vmem:[%s27 + $0x1d8] sm:$0xff]
    %v3639 = vld [vmem:[%s27 + $0x1e0] sm:$0xff]
    %v3640 = vld [vmem:[%s27 + $0x1e8] sm:$0xff]
    %v3641 = vld [vmem:[%s27 + $0x1f0] sm:$0xff]
    %v3642 = vld [vmem:[%s27 + $0x1f8] sm:$0xff]
    %3643 = vmatpush.msra.mxu0 %v3609
    %3644 = vmatpush.msra.mxu0 %v3607
    %3645 = vmatpush.msra.mxu0 %v3605
    %3646 = vmatpush.msra.mxu0 %v3603
    %3647 = vmatpush.msra.mxu0 %v3601
    %3648 = vmatpush.msra.mxu0 %v3599
    %3649 = vmatpush.msra.mxu0 %v3597
    %3650 = vmatpush.msra.mxu0 %v3595
    %3651 = vmatpush.msra.mxu0 %v3593
    %3652 = vmatpush.msra.mxu0 %v3591
    %3653 = vmatpush.msra.mxu0 %v3589
    %3654 = vmatpush.msra.mxu0 %v3587
    %3655 = vmatpush.msra.mxu0 %v3585
    %3656 = vmatpush.msra.mxu0 %v3583
    %3657 = vmatpush.msra.mxu0 %v3581
    %3658 = vmatpush.msra.mxu0 %v3579
    %3659 = vmatmul.f32.gmra.mxu0 %v3571
    %v3660 = vpop.f32.mrf.mxu0
    %v3661 = vadd.f32 0.0, %v3660
    %3662 = vmatmul.f32.gmra.mxu0 %v3573
    %v3663 = vpop.f32.mrf.mxu0
    %v3664 = vadd.f32 0.0, %v3663
    %3665 = vmatmul.f32.gmra.mxu0 %v3575
    %v3666 = vpop.f32.mrf.mxu0
    %v3667 = vadd.f32 0.0, %v3666
    %3668 = vmatmul.f32.gmra.mxu0 %v3577
    %v3669 = vpop.f32.mrf.mxu0
    %v3670 = vadd.f32 0.0, %v3669
    %3671 = vdwg.mxu0
    %3672 = vmatpush.msra.mxu0 %v3641
    %3673 = vmatpush.msra.mxu0 %v3639
    %3674 = vmatpush.msra.mxu0 %v3637
    %3675 = vmatpush.msra.mxu0 %v3635
    %3676 = vmatpush.msra.mxu0 %v3633
    %3677 = vmatpush.msra.mxu0 %v3631
    %3678 = vmatpush.msra.mxu0 %v3629
    %3679 = vmatpush.msra.mxu0 %v3627
    %3680 = vmatpush.msra.mxu0 %v3625
    %3681 = vmatpush.msra.mxu0 %v3623
    %3682 = vmatpush.msra.mxu0 %v3621
    %3683 = vmatpush.msra.mxu0 %v3619
    %3684 = vmatpush.msra.mxu0 %v3617
    %3685 = vmatpush.msra.mxu0 %v3615
    %3686 = vmatpush.msra.mxu0 %v3613
    %3687 = vmatpush.msra.mxu0 %v3611
    %3688 = vmatmul.f32.gmra.mxu0 %v3572
    %v3689 = vpop.f32.mrf.mxu0
    %v3690 = vadd.f32 %v3661, %v3689
    %3691 = vmatmul.f32.gmra.mxu0 %v3574
    %v3692 = vpop.f32.mrf.mxu0
    %v3693 = vadd.f32 %v3664, %v3692
    %3694 = vmatmul.f32.gmra.mxu0 %v3576
    %v3695 = vpop.f32.mrf.mxu0
    %v3696 = vadd.f32 %v3667, %v3695
    %3697 = vmatmul.f32.gmra.mxu0 %v3578
    %v3698 = vpop.f32.mrf.mxu0
    %v3699 = vadd.f32 %v3670, %v3698
    %3700 = vdwg.mxu0
    %3701 = vmatpush.msra.mxu0 %v3610
    %3702 = vmatpush.msra.mxu0 %v3608
    %3703 = vmatpush.msra.mxu0 %v3606
    %3704 = vmatpush.msra.mxu0 %v3604
    %3705 = vmatpush.msra.mxu0 %v3602
    %3706 = vmatpush.msra.mxu0 %v3600
    %3707 = vmatpush.msra.mxu0 %v3598
    %3708 = vmatpush.msra.mxu0 %v3596
    %3709 = vmatpush.msra.mxu0 %v3594
    %3710 = vmatpush.msra.mxu0 %v3592
    %3711 = vmatpush.msra.mxu0 %v3590
    %3712 = vmatpush.msra.mxu0 %v3588
    %3713 = vmatpush.msra.mxu0 %v3586
    %3714 = vmatpush.msra.mxu0 %v3584
    %3715 = vmatpush.msra.mxu0 %v3582
    %3716 = vmatpush.msra.mxu0 %v3580
    %3717 = vmatmul.f32.gmra.mxu0 %v3571
    %v3718 = vpop.f32.mrf.mxu0
    %v3719 = vadd.f32 0.0, %v3718
    %3720 = vmatmul.f32.gmra.mxu0 %v3573
    %v3721 = vpop.f32.mrf.mxu0
    %v3722 = vadd.f32 0.0, %v3721
    %3723 = vmatmul.f32.gmra.mxu0 %v3575
    %v3724 = vpop.f32.mrf.mxu0
    %v3725 = vadd.f32 0.0, %v3724
    %3726 = vmatmul.f32.gmra.mxu0 %v3577
    %v3727 = vpop.f32.mrf.mxu0
    %v3728 = vadd.f32 0.0, %v3727
    %3729 = vdwg.mxu0
    %3730 = vmatpush.msra.mxu0 %v3642
    %3731 = vmatpush.msra.mxu0 %v3640
    %3732 = vmatpush.msra.mxu0 %v3638
    %3733 = vmatpush.msra.mxu0 %v3636
    %3734 = vmatpush.msra.mxu0 %v3634
    %3735 = vmatpush.msra.mxu0 %v3632
    %3736 = vmatpush.msra.mxu0 %v3630
    %3737 = vmatpush.msra.mxu0 %v3628
    %3738 = vmatpush.msra.mxu0 %v3626
    %3739 = vmatpush.msra.mxu0 %v3624
    %3740 = vmatpush.msra.mxu0 %v3622
    %3741 = vmatpush.msra.mxu0 %v3620
    %3742 = vmatpush.msra.mxu0 %v3618
    %3743 = vmatpush.msra.mxu0 %v3616
    %3744 = vmatpush.msra.mxu0 %v3614
    %3745 = vmatpush.msra.mxu0 %v3612
    %3746 = vmatmul.f32.gmra.mxu0 %v3572
    %v3747 = vpop.f32.mrf.mxu0
    %v3748 = vadd.f32 %v3719, %v3747
    %3749 = vmatmul.f32.gmra.mxu0 %v3574
    %v3750 = vpop.f32.mrf.mxu0
    %v3751 = vadd.f32 %v3722, %v3750
    %3752 = vmatmul.f32.gmra.mxu0 %v3576
    %v3753 = vpop.f32.mrf.mxu0
    %v3754 = vadd.f32 %v3725, %v3753
    %3755 = vmatmul.f32.gmra.mxu0 %v3578
    %v3756 = vpop.f32.mrf.mxu0
    %v3757 = vadd.f32 %v3728, %v3756
    %3758 = vdwg.mxu0
    %s3759 = scalar_lea.vmem %s27, 512
    %v3760 = vld [vmem:[%s3759] sm:$0xff]
    %v3761 = vld [vmem:[%s3759 + $0x8] sm:$0xff]
    %v3762 = vld [vmem:[%s3759 + $0x10] sm:$0xff]
    %v3763 = vld [vmem:[%s3759 + $0x18] sm:$0xff]
    %v3764 = vld [vmem:[%s3759 + $0x20] sm:$0xff]
    %v3765 = vld [vmem:[%s3759 + $0x28] sm:$0xff]
    %v3766 = vld [vmem:[%s3759 + $0x30] sm:$0xff]
    %v3767 = vld [vmem:[%s3759 + $0x38] sm:$0xff]
    %v3768 = vld [vmem:[%s3759 + $0x40] sm:$0xff]
    %v3769 = vld [vmem:[%s3759 + $0x48] sm:$0xff]
    %v3770 = vld [vmem:[%s3759 + $0x50] sm:$0xff]
    %v3771 = vld [vmem:[%s3759 + $0x58] sm:$0xff]
    %v3772 = vld [vmem:[%s3759 + $0x60] sm:$0xff]
    %v3773 = vld [vmem:[%s3759 + $0x68] sm:$0xff]
    %v3774 = vld [vmem:[%s3759 + $0x70] sm:$0xff]
    %v3775 = vld [vmem:[%s3759 + $0x78] sm:$0xff]
    %v3776 = vld [vmem:[%s3759 + $0x80] sm:$0xff]
    %v3777 = vld [vmem:[%s3759 + $0x88] sm:$0xff]
    %v3778 = vld [vmem:[%s3759 + $0x90] sm:$0xff]
    %v3779 = vld [vmem:[%s3759 + $0x98] sm:$0xff]
    %v3780 = vld [vmem:[%s3759 + $0xa0] sm:$0xff]
    %v3781 = vld [vmem:[%s3759 + $0xa8] sm:$0xff]
    %v3782 = vld [vmem:[%s3759 + $0xb0] sm:$0xff]
    %v3783 = vld [vmem:[%s3759 + $0xb8] sm:$0xff]
    %v3784 = vld [vmem:[%s3759 + $0xc0] sm:$0xff]
    %v3785 = vld [vmem:[%s3759 + $0xc8] sm:$0xff]
    %v3786 = vld [vmem:[%s3759 + $0xd0] sm:$0xff]
    %v3787 = vld [vmem:[%s3759 + $0xd8] sm:$0xff]
    %v3788 = vld [vmem:[%s3759 + $0xe0] sm:$0xff]
    %v3789 = vld [vmem:[%s3759 + $0xe8] sm:$0xff]
    %v3790 = vld [vmem:[%s3759 + $0xf0] sm:$0xff]
    %v3791 = vld [vmem:[%s3759 + $0xf8] sm:$0xff]
    %v3792 = vld [vmem:[%s3759 + $0x100] sm:$0xff]
    %v3793 = vld [vmem:[%s3759 + $0x108] sm:$0xff]
    %v3794 = vld [vmem:[%s3759 + $0x110] sm:$0xff]
    %v3795 = vld [vmem:[%s3759 + $0x118] sm:$0xff]
    %v3796 = vld [vmem:[%s3759 + $0x120] sm:$0xff]
    %v3797 = vld [vmem:[%s3759 + $0x128] sm:$0xff]
    %v3798 = vld [vmem:[%s3759 + $0x130] sm:$0xff]
    %v3799 = vld [vmem:[%s3759 + $0x138] sm:$0xff]
    %v3800 = vld [vmem:[%s3759 + $0x140] sm:$0xff]
    %v3801 = vld [vmem:[%s3759 + $0x148] sm:$0xff]
    %v3802 = vld [vmem:[%s3759 + $0x150] sm:$0xff]
    %v3803 = vld [vmem:[%s3759 + $0x158] sm:$0xff]
    %v3804 = vld [vmem:[%s3759 + $0x160] sm:$0xff]
    %v3805 = vld [vmem:[%s3759 + $0x168] sm:$0xff]
    %v3806 = vld [vmem:[%s3759 + $0x170] sm:$0xff]
    %v3807 = vld [vmem:[%s3759 + $0x178] sm:$0xff]
    %v3808 = vld [vmem:[%s3759 + $0x180] sm:$0xff]
    %v3809 = vld [vmem:[%s3759 + $0x188] sm:$0xff]
    %v3810 = vld [vmem:[%s3759 + $0x190] sm:$0xff]
    %v3811 = vld [vmem:[%s3759 + $0x198] sm:$0xff]
    %v3812 = vld [vmem:[%s3759 + $0x1a0] sm:$0xff]
    %v3813 = vld [vmem:[%s3759 + $0x1a8] sm:$0xff]
    %v3814 = vld [vmem:[%s3759 + $0x1b0] sm:$0xff]
    %v3815 = vld [vmem:[%s3759 + $0x1b8] sm:$0xff]
    %v3816 = vld [vmem:[%s3759 + $0x1c0] sm:$0xff]
    %v3817 = vld [vmem:[%s3759 + $0x1c8] sm:$0xff]
    %v3818 = vld [vmem:[%s3759 + $0x1d0] sm:$0xff]
    %v3819 = vld [vmem:[%s3759 + $0x1d8] sm:$0xff]
    %v3820 = vld [vmem:[%s3759 + $0x1e0] sm:$0xff]
    %v3821 = vld [vmem:[%s3759 + $0x1e8] sm:$0xff]
    %v3822 = vld [vmem:[%s3759 + $0x1f0] sm:$0xff]
    %v3823 = vld [vmem:[%s3759 + $0x1f8] sm:$0xff]
    %3824 = vmatpush.msra.mxu0 %v3790
    %3825 = vmatpush.msra.mxu0 %v3788
    %3826 = vmatpush.msra.mxu0 %v3786
    %3827 = vmatpush.msra.mxu0 %v3784
    %3828 = vmatpush.msra.mxu0 %v3782
    %3829 = vmatpush.msra.mxu0 %v3780
    %3830 = vmatpush.msra.mxu0 %v3778
    %3831 = vmatpush.msra.mxu0 %v3776
    %3832 = vmatpush.msra.mxu0 %v3774
    %3833 = vmatpush.msra.mxu0 %v3772
    %3834 = vmatpush.msra.mxu0 %v3770
    %3835 = vmatpush.msra.mxu0 %v3768
    %3836 = vmatpush.msra.mxu0 %v3766
    %3837 = vmatpush.msra.mxu0 %v3764
    %3838 = vmatpush.msra.mxu0 %v3762
    %3839 = vmatpush.msra.mxu0 %v3760
    %3840 = vmatmul.f32.gmra.mxu0 %v3571
    %v3841 = vpop.f32.mrf.mxu0
    %v3842 = vadd.f32 0.0, %v3841
    %3843 = vmatmul.f32.gmra.mxu0 %v3573
    %v3844 = vpop.f32.mrf.mxu0
    %v3845 = vadd.f32 0.0, %v3844
    %3846 = vmatmul.f32.gmra.mxu0 %v3575
    %v3847 = vpop.f32.mrf.mxu0
    %v3848 = vadd.f32 0.0, %v3847
    %3849 = vmatmul.f32.gmra.mxu0 %v3577
    %v3850 = vpop.f32.mrf.mxu0
    %v3851 = vadd.f32 0.0, %v3850
    %3852 = vdwg.mxu0
    %3853 = vmatpush.msra.mxu0 %v3822
    %3854 = vmatpush.msra.mxu0 %v3820
    %3855 = vmatpush.msra.mxu0 %v3818
    %3856 = vmatpush.msra.mxu0 %v3816
    %3857 = vmatpush.msra.mxu0 %v3814
    %3858 = vmatpush.msra.mxu0 %v3812
    %3859 = vmatpush.msra.mxu0 %v3810
    %3860 = vmatpush.msra.mxu0 %v3808
    %3861 = vmatpush.msra.mxu0 %v3806
    %3862 = vmatpush.msra.mxu0 %v3804
    %3863 = vmatpush.msra.mxu0 %v3802
    %3864 = vmatpush.msra.mxu0 %v3800
    %3865 = vmatpush.msra.mxu0 %v3798
    %3866 = vmatpush.msra.mxu0 %v3796
    %3867 = vmatpush.msra.mxu0 %v3794
    %3868 = vmatpush.msra.mxu0 %v3792
    %3869 = vmatmul.f32.gmra.mxu0 %v3572
    %v3870 = vpop.f32.mrf.mxu0
    %v3871 = vadd.f32 %v3842, %v3870
    %3872 = vmatmul.f32.gmra.mxu0 %v3574
    %v3873 = vpop.f32.mrf.mxu0
    %v3874 = vadd.f32 %v3845, %v3873
    %3875 = vmatmul.f32.gmra.mxu0 %v3576
    %v3876 = vpop.f32.mrf.mxu0
    %v3877 = vadd.f32 %v3848, %v3876
    %3878 = vmatmul.f32.gmra.mxu0 %v3578
    %v3879 = vpop.f32.mrf.mxu0
    %v3880 = vadd.f32 %v3851, %v3879
    %3881 = vdwg.mxu0
    %3882 = vmatpush.msra.mxu0 %v3791
    %3883 = vmatpush.msra.mxu0 %v3789
    %3884 = vmatpush.msra.mxu0 %v3787
    %3885 = vmatpush.msra.mxu0 %v3785
    %3886 = vmatpush.msra.mxu0 %v3783
    %3887 = vmatpush.msra.mxu0 %v3781
    %3888 = vmatpush.msra.mxu0 %v3779
    %3889 = vmatpush.msra.mxu0 %v3777
    %3890 = vmatpush.msra.mxu0 %v3775
    %3891 = vmatpush.msra.mxu0 %v3773
    %3892 = vmatpush.msra.mxu0 %v3771
    %3893 = vmatpush.msra.mxu0 %v3769
    %3894 = vmatpush.msra.mxu0 %v3767
    %3895 = vmatpush.msra.mxu0 %v3765
    %3896 = vmatpush.msra.mxu0 %v3763
    %3897 = vmatpush.msra.mxu0 %v3761
    %3898 = vmatmul.f32.gmra.mxu0 %v3571
    %v3899 = vpop.f32.mrf.mxu0
    %v3900 = vadd.f32 0.0, %v3899
    %3901 = vmatmul.f32.gmra.mxu0 %v3573
    %v3902 = vpop.f32.mrf.mxu0
    %v3903 = vadd.f32 0.0, %v3902
    %3904 = vmatmul.f32.gmra.mxu0 %v3575
    %v3905 = vpop.f32.mrf.mxu0
    %v3906 = vadd.f32 0.0, %v3905
    %3907 = vmatmul.f32.gmra.mxu0 %v3577
    %v3908 = vpop.f32.mrf.mxu0
    %v3909 = vadd.f32 0.0, %v3908
    %3910 = vdwg.mxu0
    %3911 = vmatpush.msra.mxu0 %v3823
    %3912 = vmatpush.msra.mxu0 %v3821
    %3913 = vmatpush.msra.mxu0 %v3819
    %3914 = vmatpush.msra.mxu0 %v3817
    %3915 = vmatpush.msra.mxu0 %v3815
    %3916 = vmatpush.msra.mxu0 %v3813
    %3917 = vmatpush.msra.mxu0 %v3811
    %3918 = vmatpush.msra.mxu0 %v3809
    %3919 = vmatpush.msra.mxu0 %v3807
    %3920 = vmatpush.msra.mxu0 %v3805
    %3921 = vmatpush.msra.mxu0 %v3803
    %3922 = vmatpush.msra.mxu0 %v3801
    %3923 = vmatpush.msra.mxu0 %v3799
    %3924 = vmatpush.msra.mxu0 %v3797
    %3925 = vmatpush.msra.mxu0 %v3795
    %3926 = vmatpush.msra.mxu0 %v3793
    %3927 = vmatmul.f32.gmra.mxu0 %v3572
    %v3928 = vpop.f32.mrf.mxu0
    %v3929 = vadd.f32 %v3900, %v3928
    %3930 = vmatmul.f32.gmra.mxu0 %v3574
    %v3931 = vpop.f32.mrf.mxu0
    %v3932 = vadd.f32 %v3903, %v3931
    %3933 = vmatmul.f32.gmra.mxu0 %v3576
    %v3934 = vpop.f32.mrf.mxu0
    %v3935 = vadd.f32 %v3906, %v3934
    %3936 = vmatmul.f32.gmra.mxu0 %v3578
    %v3937 = vpop.f32.mrf.mxu0
    %v3938 = vadd.f32 %v3909, %v3937
    %3939 = vdwg.mxu0
    %v3940 = vmax.f32 %v3690, %v3871
    %v3941 = vmax.f32 %v3748, %v3929
    %v3942 = vmax.f32 %v3693, %v3874
    %v3943 = vmax.f32 %v3751, %v3932
    %v3944 = vmax.f32 %v3696, %v3877
    %v3945 = vmax.f32 %v3754, %v3935
    %v3946 = vmax.f32 %v3699, %v3880
    %v3947 = vmax.f32 %v3757, %v3938
    %v3948 = vld [vmem:[#allocation13] sm:$0xff]
    %v3949 = vld [vmem:[#allocation13 + $0x8] sm:$0xff]
    %v3951 = vsel %vm691, %v3948, 0
    %v3954 = vsel %vm691, %v3949, 0
    %3956 = vmatpush.msra.mxu0 0.0
    %3957 = vmatpush.msra.mxu0 0.0
    %3958 = vmatpush.msra.mxu0 0.0
    %3959 = vmatpush.msra.mxu0 0.0
    %3960 = vmatpush.msra.mxu0 0.0
    %3961 = vmatpush.msra.mxu0 0.0
    %3962 = vmatpush.msra.mxu0 0.0
    %3963 = vmatpush.msra.mxu0 0.0
    %3964 = vmatpush.msra.mxu0 0.0
    %3965 = vmatpush.msra.mxu0 0.0
    %3966 = vmatpush.msra.mxu0 0.0
    %3967 = vmatpush.msra.mxu0 0.0
    %3968 = vmatpush.msra.mxu0 %v3946
    %3969 = vmatpush.msra.mxu0 %v3944
    %3970 = vmatpush.msra.mxu0 %v3942
    %3971 = vmatpush.msra.mxu0 %v3940
    %3972 = vmatmul.f32.gmra.mxu0 %v3951
    %v3973 = vpop.f32.mrf.mxu0
    %v3974 = vadd.f32 0.0, %v3973
    %3975 = vmatmul.f32.gmra.mxu0 %v3954
    %v3976 = vpop.f32.mrf.mxu0
    %v3977 = vadd.f32 0.0, %v3976
    %3978 = vdwg.mxu0
    %3979 = vmatpush.msra.mxu0 0.0
    %3980 = vmatpush.msra.mxu0 0.0
    %3981 = vmatpush.msra.mxu0 0.0
    %3982 = vmatpush.msra.mxu0 0.0
    %3983 = vmatpush.msra.mxu0 0.0
    %3984 = vmatpush.msra.mxu0 0.0
    %3985 = vmatpush.msra.mxu0 0.0
    %3986 = vmatpush.msra.mxu0 0.0
    %3987 = vmatpush.msra.mxu0 0.0
    %3988 = vmatpush.msra.mxu0 0.0
    %3989 = vmatpush.msra.mxu0 0.0
    %3990 = vmatpush.msra.mxu0 0.0
    %3991 = vmatpush.msra.mxu0 %v3947
    %3992 = vmatpush.msra.mxu0 %v3945
    %3993 = vmatpush.msra.mxu0 %v3943
    %3994 = vmatpush.msra.mxu0 %v3941
    %3995 = vmatmul.f32.gmra.mxu0 %v3951
    %v3996 = vpop.f32.mrf.mxu0
    %v3997 = vadd.f32 0.0, %v3996
    %3998 = vmatmul.f32.gmra.mxu0 %v3954
    %v3999 = vpop.f32.mrf.mxu0
    %v4000 = vadd.f32 0.0, %v3999
    %4001 = vdwg.mxu0
    %s4002 = scalar_lea.vmem [#allocation13], 16
    %v4003 = vld [vmem:[%s4002] sm:$0xff]
    %v4004 = vld [vmem:[%s4002 + $0x8] sm:$0xff]
    %v4006 = vsel %vm691, %v4003, 0
    %v4009 = vsel %vm691, %v4004, 0
    %4011 = vmatpush.msra.mxu0 0.0
    %4012 = vmatpush.msra.mxu0 0.0
    %4013 = vmatpush.msra.mxu0 0.0
    %4014 = vmatpush.msra.mxu0 0.0
    %4015 = vmatpush.msra.mxu0 0.0
    %4016 = vmatpush.msra.mxu0 0.0
    %4017 = vmatpush.msra.mxu0 0.0
    %4018 = vmatpush.msra.mxu0 0.0
    %4019 = vmatpush.msra.mxu0 0.0
    %4020 = vmatpush.msra.mxu0 0.0
    %4021 = vmatpush.msra.mxu0 0.0
    %4022 = vmatpush.msra.mxu0 0.0
    %4023 = vmatpush.msra.mxu0 %v3946
    %4024 = vmatpush.msra.mxu0 %v3944
    %4025 = vmatpush.msra.mxu0 %v3942
    %4026 = vmatpush.msra.mxu0 %v3940
    %4027 = vmatmul.f32.gmra.mxu0 %v4006
    %v4028 = vpop.f32.mrf.mxu0
    %v4029 = vadd.f32 0.0, %v4028
    %4030 = vmatmul.f32.gmra.mxu0 %v4009
    %v4031 = vpop.f32.mrf.mxu0
    %v4032 = vadd.f32 0.0, %v4031
    %4033 = vdwg.mxu0
    %4034 = vmatpush.msra.mxu0 0.0
    %4035 = vmatpush.msra.mxu0 0.0
    %4036 = vmatpush.msra.mxu0 0.0
    %4037 = vmatpush.msra.mxu0 0.0
    %4038 = vmatpush.msra.mxu0 0.0
    %4039 = vmatpush.msra.mxu0 0.0
    %4040 = vmatpush.msra.mxu0 0.0
    %4041 = vmatpush.msra.mxu0 0.0
    %4042 = vmatpush.msra.mxu0 0.0
    %4043 = vmatpush.msra.mxu0 0.0
    %4044 = vmatpush.msra.mxu0 0.0
    %4045 = vmatpush.msra.mxu0 0.0
    %4046 = vmatpush.msra.mxu0 %v3947
    %4047 = vmatpush.msra.mxu0 %v3945
    %4048 = vmatpush.msra.mxu0 %v3943
    %4049 = vmatpush.msra.mxu0 %v3941
    %4050 = vmatmul.f32.gmra.mxu0 %v4006
    %v4051 = vpop.f32.mrf.mxu0
    %v4052 = vadd.f32 0.0, %v4051
    %4053 = vmatmul.f32.gmra.mxu0 %v4009
    %v4054 = vpop.f32.mrf.mxu0
    %v4055 = vadd.f32 0.0, %v4054
    %4056 = vdwg.mxu0
    %v4057 = vmax.f32 %v3974, %v4029
    %v4058 = vmax.f32 %v3997, %v4052
    %v4059 = vmax.f32 %v3977, %v4032
    %v4060 = vmax.f32 %v4000, %v4055
    %s4061 = scalar_lea.vmem %s39, 320
    %v4062 = vld [vmem:[%s4061] sm:$0xff]
    %v4063 = vld [vmem:[%s4061 + $0x8] sm:$0xff]
    %v4064 = vld [vmem:[%s4061 + $0x10] sm:$0xff]
    %v4065 = vld [vmem:[%s4061 + $0x18] sm:$0xff]
    %v4066 = vld [vmem:[%s4061 + $0x20] sm:$0xff]
    %v4067 = vld [vmem:[%s4061 + $0x28] sm:$0xff]
    %v4068 = vld [vmem:[%s4061 + $0x30] sm:$0xff]
    %v4069 = vld [vmem:[%s4061 + $0x38] sm:$0xff]
    %v4070 = vld [vmem:[%s4061 + $0x40] sm:$0xff]
    %v4071 = vld [vmem:[%s4061 + $0x48] sm:$0xff]
    %v4072 = vld [vmem:[%s4061 + $0x50] sm:$0xff]
    %v4073 = vld [vmem:[%s4061 + $0x58] sm:$0xff]
    %v4074 = vld [vmem:[%s4061 + $0x60] sm:$0xff]
    %v4075 = vld [vmem:[%s4061 + $0x68] sm:$0xff]
    %v4076 = vld [vmem:[%s4061 + $0x70] sm:$0xff]
    %v4077 = vld [vmem:[%s4061 + $0x78] sm:$0xff]
    %v4078 = vld [vmem:[%s4061 + $0x80] sm:$0xff]
    %v4079 = vld [vmem:[%s4061 + $0x88] sm:$0xff]
    %v4080 = vld [vmem:[%s4061 + $0x90] sm:$0xff]
    %v4081 = vld [vmem:[%s4061 + $0x98] sm:$0xff]
    %v4082 = vld [vmem:[%s4061 + $0xa0] sm:$0xff]
    %v4083 = vld [vmem:[%s4061 + $0xa8] sm:$0xff]
    %v4084 = vld [vmem:[%s4061 + $0xb0] sm:$0xff]
    %v4085 = vld [vmem:[%s4061 + $0xb8] sm:$0xff]
    %v4086 = vld [vmem:[%s4061 + $0xc0] sm:$0xff]
    %v4087 = vld [vmem:[%s4061 + $0xc8] sm:$0xff]
    %v4088 = vld [vmem:[%s4061 + $0xd0] sm:$0xff]
    %v4089 = vld [vmem:[%s4061 + $0xd8] sm:$0xff]
    %v4090 = vld [vmem:[%s4061 + $0xe0] sm:$0xff]
    %v4091 = vld [vmem:[%s4061 + $0xe8] sm:$0xff]
    %v4092 = vld [vmem:[%s4061 + $0xf0] sm:$0xff]
    %v4093 = vld [vmem:[%s4061 + $0xf8] sm:$0xff]
    %v4094 = vld [vmem:[%s4061 + $0x100] sm:$0xff]
    %v4095 = vld [vmem:[%s4061 + $0x108] sm:$0xff]
    %v4096 = vld [vmem:[%s4061 + $0x110] sm:$0xff]
    %v4097 = vld [vmem:[%s4061 + $0x118] sm:$0xff]
    %v4098 = vld [vmem:[%s4061 + $0x120] sm:$0xff]
    %v4099 = vld [vmem:[%s4061 + $0x128] sm:$0xff]
    %v4100 = vld [vmem:[%s4061 + $0x130] sm:$0xff]
    %v4101 = vld [vmem:[%s4061 + $0x138] sm:$0xff]
    %v4102 = vld [vmem:[#allocation19] sm:$0xff]
    %v4103 = vld [vmem:[#allocation19 + $0x8] sm:$0xff]
    %v4105 = vsel %vm2759, %v4102, 0
    %v4108 = vsel %vm2759, %v4103, 0
    %4110 = vmatpush.msra.mxu0 0.0
    %4111 = vmatpush.msra.mxu0 0.0
    %4112 = vmatpush.msra.mxu0 0.0
    %4113 = vmatpush.msra.mxu0 0.0
    %4114 = vmatpush.msra.mxu0 0.0
    %4115 = vmatpush.msra.mxu0 0.0
    %4116 = vmatpush.msra.mxu0 0.0
    %4117 = vmatpush.msra.mxu0 0.0
    %4118 = vmatpush.msra.mxu0 0.0
    %4119 = vmatpush.msra.mxu0 0.0
    %4120 = vmatpush.msra.mxu0 0.0
    %4121 = vmatpush.msra.mxu0 0.0
    %4122 = vmatpush.msra.mxu0 0.0
    %4123 = vmatpush.msra.mxu0 0.0
    %4124 = vmatpush.msra.mxu0 %v4059
    %4125 = vmatpush.msra.mxu0 %v4057
    %4126 = vmatmul.f32.gmra.mxu0 %v4105
    %v4127 = vpop.f32.mrf.mxu0
    %v4128 = vadd.f32 0.0, %v4127
    %4129 = vmatmul.f32.gmra.mxu0 %v4108
    %v4130 = vpop.f32.mrf.mxu0
    %v4131 = vadd.f32 0.0, %v4130
    %4132 = vdwg.mxu0
    %4133 = vmatpush.msra.mxu0 0.0
    %4134 = vmatpush.msra.mxu0 0.0
    %4135 = vmatpush.msra.mxu0 0.0
    %4136 = vmatpush.msra.mxu0 0.0
    %4137 = vmatpush.msra.mxu0 0.0
    %4138 = vmatpush.msra.mxu0 0.0
    %4139 = vmatpush.msra.mxu0 0.0
    %4140 = vmatpush.msra.mxu0 0.0
    %4141 = vmatpush.msra.mxu0 0.0
    %4142 = vmatpush.msra.mxu0 0.0
    %4143 = vmatpush.msra.mxu0 0.0
    %4144 = vmatpush.msra.mxu0 0.0
    %4145 = vmatpush.msra.mxu0 0.0
    %4146 = vmatpush.msra.mxu0 0.0
    %4147 = vmatpush.msra.mxu0 %v4060
    %4148 = vmatpush.msra.mxu0 %v4058
    %4149 = vmatmul.f32.gmra.mxu0 %v4105
    %v4150 = vpop.f32.mrf.mxu0
    %v4151 = vadd.f32 0.0, %v4150
    %4152 = vmatmul.f32.gmra.mxu0 %v4108
    %v4153 = vpop.f32.mrf.mxu0
    %v4154 = vadd.f32 0.0, %v4153
    %4155 = vdwg.mxu0
    %v4156 = vld [vmem:[%s39] sm:$0xff]
    %v4157 = vld [vmem:[%s39 + $0x8] sm:$0xff]
    %v4158 = vld [vmem:[%s39 + $0x10] sm:$0xff]
    %v4159 = vld [vmem:[%s39 + $0x18] sm:$0xff]
    %v4160 = vld [vmem:[%s39 + $0x20] sm:$0xff]
    %v4161 = vld [vmem:[%s39 + $0x28] sm:$0xff]
    %v4162 = vld [vmem:[%s39 + $0x30] sm:$0xff]
    %v4163 = vld [vmem:[%s39 + $0x38] sm:$0xff]
    %v4164 = vld [vmem:[%s39 + $0x40] sm:$0xff]
    %v4165 = vld [vmem:[%s39 + $0x48] sm:$0xff]
    %v4166 = vld [vmem:[%s39 + $0x50] sm:$0xff]
    %v4167 = vld [vmem:[%s39 + $0x58] sm:$0xff]
    %v4168 = vld [vmem:[%s39 + $0x60] sm:$0xff]
    %v4169 = vld [vmem:[%s39 + $0x68] sm:$0xff]
    %v4170 = vld [vmem:[%s39 + $0x70] sm:$0xff]
    %v4171 = vld [vmem:[%s39 + $0x78] sm:$0xff]
    %v4172 = vld [vmem:[%s39 + $0x80] sm:$0xff]
    %v4173 = vld [vmem:[%s39 + $0x88] sm:$0xff]
    %v4174 = vld [vmem:[%s39 + $0x90] sm:$0xff]
    %v4175 = vld [vmem:[%s39 + $0x98] sm:$0xff]
    %v4176 = vld [vmem:[%s39 + $0xa0] sm:$0xff]
    %v4177 = vld [vmem:[%s39 + $0xa8] sm:$0xff]
    %v4178 = vld [vmem:[%s39 + $0xb0] sm:$0xff]
    %v4179 = vld [vmem:[%s39 + $0xb8] sm:$0xff]
    %v4180 = vld [vmem:[%s39 + $0xc0] sm:$0xff]
    %v4181 = vld [vmem:[%s39 + $0xc8] sm:$0xff]
    %v4182 = vld [vmem:[%s39 + $0xd0] sm:$0xff]
    %v4183 = vld [vmem:[%s39 + $0xd8] sm:$0xff]
    %v4184 = vld [vmem:[%s39 + $0xe0] sm:$0xff]
    %v4185 = vld [vmem:[%s39 + $0xe8] sm:$0xff]
    %v4186 = vld [vmem:[%s39 + $0xf0] sm:$0xff]
    %v4187 = vld [vmem:[%s39 + $0xf8] sm:$0xff]
    %v4188 = vld [vmem:[%s39 + $0x100] sm:$0xff]
    %v4189 = vld [vmem:[%s39 + $0x108] sm:$0xff]
    %v4190 = vld [vmem:[%s39 + $0x110] sm:$0xff]
    %v4191 = vld [vmem:[%s39 + $0x118] sm:$0xff]
    %v4192 = vld [vmem:[%s39 + $0x120] sm:$0xff]
    %v4193 = vld [vmem:[%s39 + $0x128] sm:$0xff]
    %v4194 = vld [vmem:[%s39 + $0x130] sm:$0xff]
    %v4195 = vld [vmem:[%s39 + $0x138] sm:$0xff]
    %v4197 = vsel %vm691, %v4151, 0
    %v4200 = vsel %vm691, %v4154, 0
    %4202 = vmatpush.msra.mxu0 %v4186
    %4203 = vmatpush.msra.mxu0 %v4184
    %4204 = vmatpush.msra.mxu0 %v4182
    %4205 = vmatpush.msra.mxu0 %v4180
    %4206 = vmatpush.msra.mxu0 %v4178
    %4207 = vmatpush.msra.mxu0 %v4176
    %4208 = vmatpush.msra.mxu0 %v4174
    %4209 = vmatpush.msra.mxu0 %v4172
    %4210 = vmatpush.msra.mxu0 %v4170
    %4211 = vmatpush.msra.mxu0 %v4168
    %4212 = vmatpush.msra.mxu0 %v4166
    %4213 = vmatpush.msra.mxu0 %v4164
    %4214 = vmatpush.msra.mxu0 %v4162
    %4215 = vmatpush.msra.mxu0 %v4160
    %4216 = vmatpush.msra.mxu0 %v4158
    %4217 = vmatpush.msra.mxu0 %v4156
    %4218 = vmatmul.f32.gmra.mxu0 %v4128
    %v4219 = vpop.f32.mrf.mxu0
    %v4220 = vadd.f32 0.0, %v4219
    %4221 = vmatmul.f32.gmra.mxu0 %v4131
    %v4222 = vpop.f32.mrf.mxu0
    %v4223 = vadd.f32 0.0, %v4222
    %4224 = vdwg.mxu0
    %4225 = vmatpush.msra.mxu0 0.0
    %4226 = vmatpush.msra.mxu0 0.0
    %4227 = vmatpush.msra.mxu0 0.0
    %4228 = vmatpush.msra.mxu0 0.0
    %4229 = vmatpush.msra.mxu0 0.0
    %4230 = vmatpush.msra.mxu0 0.0
    %4231 = vmatpush.msra.mxu0 0.0
    %4232 = vmatpush.msra.mxu0 0.0
    %4233 = vmatpush.msra.mxu0 0.0
    %4234 = vmatpush.msra.mxu0 0.0
    %4235 = vmatpush.msra.mxu0 0.0
    %4236 = vmatpush.msra.mxu0 0.0
    %4237 = vmatpush.msra.mxu0 %v4194
    %4238 = vmatpush.msra.mxu0 %v4192
    %4239 = vmatpush.msra.mxu0 %v4190
    %4240 = vmatpush.msra.mxu0 %v4188
    %4241 = vmatmul.f32.gmra.mxu0 %v4197
    %v4242 = vpop.f32.mrf.mxu0
    %v4243 = vadd.f32 %v4220, %v4242
    %4244 = vmatmul.f32.gmra.mxu0 %v4200
    %v4245 = vpop.f32.mrf.mxu0
    %v4246 = vadd.f32 %v4223, %v4245
    %4247 = vdwg.mxu0
    %4248 = vmatpush.msra.mxu0 %v4187
    %4249 = vmatpush.msra.mxu0 %v4185
    %4250 = vmatpush.msra.mxu0 %v4183
    %4251 = vmatpush.msra.mxu0 %v4181
    %4252 = vmatpush.msra.mxu0 %v4179
    %4253 = vmatpush.msra.mxu0 %v4177
    %4254 = vmatpush.msra.mxu0 %v4175
    %4255 = vmatpush.msra.mxu0 %v4173
    %4256 = vmatpush.msra.mxu0 %v4171
    %4257 = vmatpush.msra.mxu0 %v4169
    %4258 = vmatpush.msra.mxu0 %v4167
    %4259 = vmatpush.msra.mxu0 %v4165
    %4260 = vmatpush.msra.mxu0 %v4163
    %4261 = vmatpush.msra.mxu0 %v4161
    %4262 = vmatpush.msra.mxu0 %v4159
    %4263 = vmatpush.msra.mxu0 %v4157
    %4264 = vmatmul.f32.gmra.mxu0 %v4128
    %v4265 = vpop.f32.mrf.mxu0
    %v4266 = vadd.f32 0.0, %v4265
    %4267 = vmatmul.f32.gmra.mxu0 %v4131
    %v4268 = vpop.f32.mrf.mxu0
    %v4269 = vadd.f32 0.0, %v4268
    %4270 = vdwg.mxu0
    %4271 = vmatpush.msra.mxu0 0.0
    %4272 = vmatpush.msra.mxu0 0.0
    %4273 = vmatpush.msra.mxu0 0.0
    %4274 = vmatpush.msra.mxu0 0.0
    %4275 = vmatpush.msra.mxu0 0.0
    %4276 = vmatpush.msra.mxu0 0.0
    %4277 = vmatpush.msra.mxu0 0.0
    %4278 = vmatpush.msra.mxu0 0.0
    %4279 = vmatpush.msra.mxu0 0.0
    %4280 = vmatpush.msra.mxu0 0.0
    %4281 = vmatpush.msra.mxu0 0.0
    %4282 = vmatpush.msra.mxu0 0.0
    %4283 = vmatpush.msra.mxu0 %v4195
    %4284 = vmatpush.msra.mxu0 %v4193
    %4285 = vmatpush.msra.mxu0 %v4191
    %4286 = vmatpush.msra.mxu0 %v4189
    %4287 = vmatmul.f32.gmra.mxu0 %v4197
    %v4288 = vpop.f32.mrf.mxu0
    %v4289 = vadd.f32 %v4266, %v4288
    %4290 = vmatmul.f32.gmra.mxu0 %v4200
    %v4291 = vpop.f32.mrf.mxu0
    %v4292 = vadd.f32 %v4269, %v4291
    %4293 = vdwg.mxu0
    %v4295 = vsel %vm691, %v4058, 0
    %v4298 = vsel %vm691, %v4060, 0
    %4300 = vmatpush.msra.mxu0 %v4092
    %4301 = vmatpush.msra.mxu0 %v4090
    %4302 = vmatpush.msra.mxu0 %v4088
    %4303 = vmatpush.msra.mxu0 %v4086
    %4304 = vmatpush.msra.mxu0 %v4084
    %4305 = vmatpush.msra.mxu0 %v4082
    %4306 = vmatpush.msra.mxu0 %v4080
    %4307 = vmatpush.msra.mxu0 %v4078
    %4308 = vmatpush.msra.mxu0 %v4076
    %4309 = vmatpush.msra.mxu0 %v4074
    %4310 = vmatpush.msra.mxu0 %v4072
    %4311 = vmatpush.msra.mxu0 %v4070
    %4312 = vmatpush.msra.mxu0 %v4068
    %4313 = vmatpush.msra.mxu0 %v4066
    %4314 = vmatpush.msra.mxu0 %v4064
    %4315 = vmatpush.msra.mxu0 %v4062
    %4316 = vmatmul.f32.gmra.mxu0 %v4057
    %v4317 = vpop.f32.mrf.mxu0
    %v4318 = vadd.f32 %v4243, %v4317
    %4319 = vmatmul.f32.gmra.mxu0 %v4059
    %v4320 = vpop.f32.mrf.mxu0
    %v4321 = vadd.f32 %v4246, %v4320
    %4322 = vdwg.mxu0
    %4323 = vmatpush.msra.mxu0 0.0
    %4324 = vmatpush.msra.mxu0 0.0
    %4325 = vmatpush.msra.mxu0 0.0
    %4326 = vmatpush.msra.mxu0 0.0
    %4327 = vmatpush.msra.mxu0 0.0
    %4328 = vmatpush.msra.mxu0 0.0
    %4329 = vmatpush.msra.mxu0 0.0
    %4330 = vmatpush.msra.mxu0 0.0
    %4331 = vmatpush.msra.mxu0 0.0
    %4332 = vmatpush.msra.mxu0 0.0
    %4333 = vmatpush.msra.mxu0 0.0
    %4334 = vmatpush.msra.mxu0 0.0
    %4335 = vmatpush.msra.mxu0 %v4100
    %4336 = vmatpush.msra.mxu0 %v4098
    %4337 = vmatpush.msra.mxu0 %v4096
    %4338 = vmatpush.msra.mxu0 %v4094
    %4339 = vmatmul.f32.gmra.mxu0 %v4295
    %v4340 = vpop.f32.mrf.mxu0
    %v4341 = vadd.f32 %v4318, %v4340
    %4342 = vmatmul.f32.gmra.mxu0 %v4298
    %v4343 = vpop.f32.mrf.mxu0
    %v4344 = vadd.f32 %v4321, %v4343
    %4345 = vdwg.mxu0
    %4346 = vmatpush.msra.mxu0 %v4093
    %4347 = vmatpush.msra.mxu0 %v4091
    %4348 = vmatpush.msra.mxu0 %v4089
    %4349 = vmatpush.msra.mxu0 %v4087
    %4350 = vmatpush.msra.mxu0 %v4085
    %4351 = vmatpush.msra.mxu0 %v4083
    %4352 = vmatpush.msra.mxu0 %v4081
    %4353 = vmatpush.msra.mxu0 %v4079
    %4354 = vmatpush.msra.mxu0 %v4077
    %4355 = vmatpush.msra.mxu0 %v4075
    %4356 = vmatpush.msra.mxu0 %v4073
    %4357 = vmatpush.msra.mxu0 %v4071
    %4358 = vmatpush.msra.mxu0 %v4069
    %4359 = vmatpush.msra.mxu0 %v4067
    %4360 = vmatpush.msra.mxu0 %v4065
    %4361 = vmatpush.msra.mxu0 %v4063
    %4362 = vmatmul.f32.gmra.mxu0 %v4057
    %v4363 = vpop.f32.mrf.mxu0
    %v4364 = vadd.f32 %v4289, %v4363
    %4365 = vmatmul.f32.gmra.mxu0 %v4059
    %v4366 = vpop.f32.mrf.mxu0
    %v4367 = vadd.f32 %v4292, %v4366
    %4368 = vdwg.mxu0
    %4369 = vmatpush.msra.mxu0 0.0
    %4370 = vmatpush.msra.mxu0 0.0
    %4371 = vmatpush.msra.mxu0 0.0
    %4372 = vmatpush.msra.mxu0 0.0
    %4373 = vmatpush.msra.mxu0 0.0
    %4374 = vmatpush.msra.mxu0 0.0
    %4375 = vmatpush.msra.mxu0 0.0
    %4376 = vmatpush.msra.mxu0 0.0
    %4377 = vmatpush.msra.mxu0 0.0
    %4378 = vmatpush.msra.mxu0 0.0
    %4379 = vmatpush.msra.mxu0 0.0
    %4380 = vmatpush.msra.mxu0 0.0
    %4381 = vmatpush.msra.mxu0 %v4101
    %4382 = vmatpush.msra.mxu0 %v4099
    %4383 = vmatpush.msra.mxu0 %v4097
    %4384 = vmatpush.msra.mxu0 %v4095
    %4385 = vmatmul.f32.gmra.mxu0 %v4295
    %v4386 = vpop.f32.mrf.mxu0
    %v4387 = vadd.f32 %v4364, %v4386
    %4388 = vmatmul.f32.gmra.mxu0 %v4298
    %v4389 = vpop.f32.mrf.mxu0
    %v4390 = vadd.f32 %v4367, %v4389
    %4391 = vdwg.mxu0
    %s4392 = scalar_lea.vmem [#allocation19], 16
    %v4393 = vld [vmem:[%s4392] sm:$0xff]
    %v4394 = vld [vmem:[%s4392 + $0x8] sm:$0xff]
    %v4396 = vsel %vm2759, %v4393, 0
    %v4399 = vsel %vm2759, %v4394, 0
    %4401 = vmatpush.msra.mxu0 0.0
    %4402 = vmatpush.msra.mxu0 0.0
    %4403 = vmatpush.msra.mxu0 0.0
    %4404 = vmatpush.msra.mxu0 0.0
    %4405 = vmatpush.msra.mxu0 0.0
    %4406 = vmatpush.msra.mxu0 0.0
    %4407 = vmatpush.msra.mxu0 0.0
    %4408 = vmatpush.msra.mxu0 0.0
    %4409 = vmatpush.msra.mxu0 0.0
    %4410 = vmatpush.msra.mxu0 0.0
    %4411 = vmatpush.msra.mxu0 0.0
    %4412 = vmatpush.msra.mxu0 0.0
    %4413 = vmatpush.msra.mxu0 0.0
    %4414 = vmatpush.msra.mxu0 0.0
    %4415 = vmatpush.msra.mxu0 %v4059
    %4416 = vmatpush.msra.mxu0 %v4057
    %4417 = vmatmul.f32.gmra.mxu0 %v4396
    %v4418 = vpop.f32.mrf.mxu0
    %v4419 = vadd.f32 0.0, %v4418
    %4420 = vmatmul.f32.gmra.mxu0 %v4399
    %v4421 = vpop.f32.mrf.mxu0
    %v4422 = vadd.f32 0.0, %v4421
    %4423 = vdwg.mxu0
    %4424 = vmatpush.msra.mxu0 0.0
    %4425 = vmatpush.msra.mxu0 0.0
    %4426 = vmatpush.msra.mxu0 0.0
    %4427 = vmatpush.msra.mxu0 0.0
    %4428 = vmatpush.msra.mxu0 0.0
    %4429 = vmatpush.msra.mxu0 0.0
    %4430 = vmatpush.msra.mxu0 0.0
    %4431 = vmatpush.msra.mxu0 0.0
    %4432 = vmatpush.msra.mxu0 0.0
    %4433 = vmatpush.msra.mxu0 0.0
    %4434 = vmatpush.msra.mxu0 0.0
    %4435 = vmatpush.msra.mxu0 0.0
    %4436 = vmatpush.msra.mxu0 0.0
    %4437 = vmatpush.msra.mxu0 0.0
    %4438 = vmatpush.msra.mxu0 %v4060
    %4439 = vmatpush.msra.mxu0 %v4058
    %4440 = vmatmul.f32.gmra.mxu0 %v4396
    %v4441 = vpop.f32.mrf.mxu0
    %v4442 = vadd.f32 0.0, %v4441
    %4443 = vmatmul.f32.gmra.mxu0 %v4399
    %v4444 = vpop.f32.mrf.mxu0
    %v4445 = vadd.f32 0.0, %v4444
    %4446 = vdwg.mxu0
    %s4447 = scalar_lea.vmem %s39, 640
    %v4448 = vld [vmem:[%s4447] sm:$0xff]
    %v4449 = vld [vmem:[%s4447 + $0x8] sm:$0xff]
    %v4450 = vld [vmem:[%s4447 + $0x10] sm:$0xff]
    %v4451 = vld [vmem:[%s4447 + $0x18] sm:$0xff]
    %v4452 = vld [vmem:[%s4447 + $0x20] sm:$0xff]
    %v4453 = vld [vmem:[%s4447 + $0x28] sm:$0xff]
    %v4454 = vld [vmem:[%s4447 + $0x30] sm:$0xff]
    %v4455 = vld [vmem:[%s4447 + $0x38] sm:$0xff]
    %v4456 = vld [vmem:[%s4447 + $0x40] sm:$0xff]
    %v4457 = vld [vmem:[%s4447 + $0x48] sm:$0xff]
    %v4458 = vld [vmem:[%s4447 + $0x50] sm:$0xff]
    %v4459 = vld [vmem:[%s4447 + $0x58] sm:$0xff]
    %v4460 = vld [vmem:[%s4447 + $0x60] sm:$0xff]
    %v4461 = vld [vmem:[%s4447 + $0x68] sm:$0xff]
    %v4462 = vld [vmem:[%s4447 + $0x70] sm:$0xff]
    %v4463 = vld [vmem:[%s4447 + $0x78] sm:$0xff]
    %v4464 = vld [vmem:[%s4447 + $0x80] sm:$0xff]
    %v4465 = vld [vmem:[%s4447 + $0x88] sm:$0xff]
    %v4466 = vld [vmem:[%s4447 + $0x90] sm:$0xff]
    %v4467 = vld [vmem:[%s4447 + $0x98] sm:$0xff]
    %v4468 = vld [vmem:[%s4447 + $0xa0] sm:$0xff]
    %v4469 = vld [vmem:[%s4447 + $0xa8] sm:$0xff]
    %v4470 = vld [vmem:[%s4447 + $0xb0] sm:$0xff]
    %v4471 = vld [vmem:[%s4447 + $0xb8] sm:$0xff]
    %v4472 = vld [vmem:[%s4447 + $0xc0] sm:$0xff]
    %v4473 = vld [vmem:[%s4447 + $0xc8] sm:$0xff]
    %v4474 = vld [vmem:[%s4447 + $0xd0] sm:$0xff]
    %v4475 = vld [vmem:[%s4447 + $0xd8] sm:$0xff]
    %v4476 = vld [vmem:[%s4447 + $0xe0] sm:$0xff]
    %v4477 = vld [vmem:[%s4447 + $0xe8] sm:$0xff]
    %v4478 = vld [vmem:[%s4447 + $0xf0] sm:$0xff]
    %v4479 = vld [vmem:[%s4447 + $0xf8] sm:$0xff]
    %v4480 = vld [vmem:[%s4447 + $0x100] sm:$0xff]
    %v4481 = vld [vmem:[%s4447 + $0x108] sm:$0xff]
    %v4482 = vld [vmem:[%s4447 + $0x110] sm:$0xff]
    %v4483 = vld [vmem:[%s4447 + $0x118] sm:$0xff]
    %v4484 = vld [vmem:[%s4447 + $0x120] sm:$0xff]
    %v4485 = vld [vmem:[%s4447 + $0x128] sm:$0xff]
    %v4486 = vld [vmem:[%s4447 + $0x130] sm:$0xff]
    %v4487 = vld [vmem:[%s4447 + $0x138] sm:$0xff]
    %v4489 = vsel %vm691, %v4442, 0
    %v4492 = vsel %vm691, %v4445, 0
    %4494 = vmatpush.msra.mxu0 %v4478
    %4495 = vmatpush.msra.mxu0 %v4476
    %4496 = vmatpush.msra.mxu0 %v4474
    %4497 = vmatpush.msra.mxu0 %v4472
    %4498 = vmatpush.msra.mxu0 %v4470
    %4499 = vmatpush.msra.mxu0 %v4468
    %4500 = vmatpush.msra.mxu0 %v4466
    %4501 = vmatpush.msra.mxu0 %v4464
    %4502 = vmatpush.msra.mxu0 %v4462
    %4503 = vmatpush.msra.mxu0 %v4460
    %4504 = vmatpush.msra.mxu0 %v4458
    %4505 = vmatpush.msra.mxu0 %v4456
    %4506 = vmatpush.msra.mxu0 %v4454
    %4507 = vmatpush.msra.mxu0 %v4452
    %4508 = vmatpush.msra.mxu0 %v4450
    %4509 = vmatpush.msra.mxu0 %v4448
    %4510 = vmatmul.f32.gmra.mxu0 %v4419
    %v4511 = vpop.f32.mrf.mxu0
    %v4512 = vadd.f32 0.0, %v4511
    %4513 = vmatmul.f32.gmra.mxu0 %v4422
    %v4514 = vpop.f32.mrf.mxu0
    %v4515 = vadd.f32 0.0, %v4514
    %4516 = vdwg.mxu0
    %4517 = vmatpush.msra.mxu0 0.0
    %4518 = vmatpush.msra.mxu0 0.0
    %4519 = vmatpush.msra.mxu0 0.0
    %4520 = vmatpush.msra.mxu0 0.0
    %4521 = vmatpush.msra.mxu0 0.0
    %4522 = vmatpush.msra.mxu0 0.0
    %4523 = vmatpush.msra.mxu0 0.0
    %4524 = vmatpush.msra.mxu0 0.0
    %4525 = vmatpush.msra.mxu0 0.0
    %4526 = vmatpush.msra.mxu0 0.0
    %4527 = vmatpush.msra.mxu0 0.0
    %4528 = vmatpush.msra.mxu0 0.0
    %4529 = vmatpush.msra.mxu0 %v4486
    %4530 = vmatpush.msra.mxu0 %v4484
    %4531 = vmatpush.msra.mxu0 %v4482
    %4532 = vmatpush.msra.mxu0 %v4480
    %4533 = vmatmul.f32.gmra.mxu0 %v4489
    %v4534 = vpop.f32.mrf.mxu0
    %v4535 = vadd.f32 %v4512, %v4534
    %4536 = vmatmul.f32.gmra.mxu0 %v4492
    %v4537 = vpop.f32.mrf.mxu0
    %v4538 = vadd.f32 %v4515, %v4537
    %4539 = vdwg.mxu0
    %4540 = vmatpush.msra.mxu0 %v4479
    %4541 = vmatpush.msra.mxu0 %v4477
    %4542 = vmatpush.msra.mxu0 %v4475
    %4543 = vmatpush.msra.mxu0 %v4473
    %4544 = vmatpush.msra.mxu0 %v4471
    %4545 = vmatpush.msra.mxu0 %v4469
    %4546 = vmatpush.msra.mxu0 %v4467
    %4547 = vmatpush.msra.mxu0 %v4465
    %4548 = vmatpush.msra.mxu0 %v4463
    %4549 = vmatpush.msra.mxu0 %v4461
    %4550 = vmatpush.msra.mxu0 %v4459
    %4551 = vmatpush.msra.mxu0 %v4457
    %4552 = vmatpush.msra.mxu0 %v4455
    %4553 = vmatpush.msra.mxu0 %v4453
    %4554 = vmatpush.msra.mxu0 %v4451
    %4555 = vmatpush.msra.mxu0 %v4449
    %4556 = vmatmul.f32.gmra.mxu0 %v4419
    %v4557 = vpop.f32.mrf.mxu0
    %v4558 = vadd.f32 0.0, %v4557
    %4559 = vmatmul.f32.gmra.mxu0 %v4422
    %v4560 = vpop.f32.mrf.mxu0
    %v4561 = vadd.f32 0.0, %v4560
    %4562 = vdwg.mxu0
    %4563 = vmatpush.msra.mxu0 0.0
    %4564 = vmatpush.msra.mxu0 0.0
    %4565 = vmatpush.msra.mxu0 0.0
    %4566 = vmatpush.msra.mxu0 0.0
    %4567 = vmatpush.msra.mxu0 0.0
    %4568 = vmatpush.msra.mxu0 0.0
    %4569 = vmatpush.msra.mxu0 0.0
    %4570 = vmatpush.msra.mxu0 0.0
    %4571 = vmatpush.msra.mxu0 0.0
    %4572 = vmatpush.msra.mxu0 0.0
    %4573 = vmatpush.msra.mxu0 0.0
    %4574 = vmatpush.msra.mxu0 0.0
    %4575 = vmatpush.msra.mxu0 %v4487
    %4576 = vmatpush.msra.mxu0 %v4485
    %4577 = vmatpush.msra.mxu0 %v4483
    %4578 = vmatpush.msra.mxu0 %v4481
    %4579 = vmatmul.f32.gmra.mxu0 %v4489
    %v4580 = vpop.f32.mrf.mxu0
    %v4581 = vadd.f32 %v4558, %v4580
    %4582 = vmatmul.f32.gmra.mxu0 %v4492
    %v4583 = vpop.f32.mrf.mxu0
    %v4584 = vadd.f32 %v4561, %v4583
    %4585 = vdwg.mxu0
    %v4586 = vadd.f32 %v4341, %v4535
    %v4587 = vadd.f32 %v4387, %v4581
    %v4588 = vadd.f32 %v4344, %v4538
    %v4589 = vadd.f32 %v4390, %v4584
    %v4590 = vld [vmem:[%s47] sm:$0xff]
    %v4591 = vld [vmem:[%s47 + $0x8] sm:$0xff]
    %v4592 = vld [vmem:[%s47 + $0x10] sm:$0xff]
    %v4593 = vld [vmem:[%s47 + $0x18] sm:$0xff]
    %v4594 = vld [vmem:[%s47 + $0x20] sm:$0xff]
    %v4595 = vld [vmem:[%s47 + $0x28] sm:$0xff]
    %v4596 = vld [vmem:[%s47 + $0x30] sm:$0xff]
    %v4597 = vld [vmem:[%s47 + $0x38] sm:$0xff]
    %v4598 = vld [vmem:[%s47 + $0x40] sm:$0xff]
    %v4599 = vld [vmem:[%s47 + $0x48] sm:$0xff]
    %v4600 = vld [vmem:[%s47 + $0x50] sm:$0xff]
    %v4601 = vld [vmem:[%s47 + $0x58] sm:$0xff]
    %v4602 = vld [vmem:[%s47 + $0x60] sm:$0xff]
    %v4603 = vld [vmem:[%s47 + $0x68] sm:$0xff]
    %v4604 = vld [vmem:[%s47 + $0x70] sm:$0xff]
    %v4605 = vld [vmem:[%s47 + $0x78] sm:$0xff]
    %v4606 = vld [vmem:[%s47 + $0x80] sm:$0xff]
    %v4607 = vld [vmem:[%s47 + $0x88] sm:$0xff]
    %v4608 = vld [vmem:[%s47 + $0x90] sm:$0xff]
    %v4609 = vld [vmem:[%s47 + $0x98] sm:$0xff]
    %v4610 = vld [vmem:[%s47 + $0xa0] sm:$0xff]
    %v4611 = vld [vmem:[%s47 + $0xa8] sm:$0xff]
    %v4612 = vld [vmem:[%s47 + $0xb0] sm:$0xff]
    %v4613 = vld [vmem:[%s47 + $0xb8] sm:$0xff]
    %v4614 = vld [vmem:[%s47 + $0xc0] sm:$0xff]
    %v4615 = vld [vmem:[%s47 + $0xc8] sm:$0xff]
    %v4616 = vld [vmem:[%s47 + $0xd0] sm:$0xff]
    %v4617 = vld [vmem:[%s47 + $0xd8] sm:$0xff]
    %v4618 = vld [vmem:[%s47 + $0xe0] sm:$0xff]
    %v4619 = vld [vmem:[%s47 + $0xe8] sm:$0xff]
    %v4620 = vld [vmem:[%s47 + $0xf0] sm:$0xff]
    %v4621 = vld [vmem:[%s47 + $0xf8] sm:$0xff]
    %v4622 = vld [vmem:[#allocation22] sm:$0xff]
    %v4623 = vld [vmem:[#allocation22 + $0x8] sm:$0xff]
    %v4624 = vld [vmem:[#allocation22 + $0x10] sm:$0xff]
    %v4625 = vld [vmem:[#allocation22 + $0x18] sm:$0xff]
    %v4626 = vld [vmem:[#allocation22 + $0x20] sm:$0xff]
    %v4627 = vld [vmem:[#allocation22 + $0x28] sm:$0xff]
    %v4628 = vld [vmem:[#allocation22 + $0x30] sm:$0xff]
    %v4629 = vld [vmem:[#allocation22 + $0x38] sm:$0xff]
    %v4630 = vadd.f32 %v4586, %v4588
    %v4631 = vrot.slane %v4630, 4
    %v4632 = vadd.f32 %v4630, %v4631
    %v4633 = vrot.slane %v4632, 2
    %v4634 = vadd.f32 %v4632, %v4633
    %v4635 = vrot.slane %v4634, 1
    %v4636 = vadd.f32 %v4634, %v4635
    %v4637 = vadd.f32 %v4587, %v4589
    %v4638 = vrot.slane %v4637, 4
    %v4639 = vadd.f32 %v4637, %v4638
    %v4640 = vrot.slane %v4639, 2
    %v4641 = vadd.f32 %v4639, %v4640
    %v4642 = vrot.slane %v4641, 1
    %v4643 = vadd.f32 %v4641, %v4642
    %4644 = vmatpush.msra.mxu0 %v4605
    %4645 = vmatpush.msra.mxu0 %v4604
    %4646 = vmatpush.msra.mxu0 %v4603
    %4647 = vmatpush.msra.mxu0 %v4602
    %4648 = vmatpush.msra.mxu0 %v4601
    %4649 = vmatpush.msra.mxu0 %v4600
    %4650 = vmatpush.msra.mxu0 %v4599
    %4651 = vmatpush.msra.mxu0 %v4598
    %4652 = vmatpush.msra.mxu0 %v4597
    %4653 = vmatpush.msra.mxu0 %v4596
    %4654 = vmatpush.msra.mxu0 %v4595
    %4655 = vmatpush.msra.mxu0 %v4594
    %4656 = vmatpush.msra.mxu0 %v4593
    %4657 = vmatpush.msra.mxu0 %v4592
    %4658 = vmatpush.msra.mxu0 %v4591
    %4659 = vmatpush.msra.mxu0 %v4590
    %4660 = vmatmul.f32.gmra.mxu0 %v4636
    %v4661 = vpop.f32.mrf.mxu0
    %v4662 = vadd.f32 0.0, %v4661
    %4663 = vdwg.mxu0
    %4664 = vmatpush.msra.mxu0 %v4621
    %4665 = vmatpush.msra.mxu0 %v4620
    %4666 = vmatpush.msra.mxu0 %v4619
    %4667 = vmatpush.msra.mxu0 %v4618
    %4668 = vmatpush.msra.mxu0 %v4617
    %4669 = vmatpush.msra.mxu0 %v4616
    %4670 = vmatpush.msra.mxu0 %v4615
    %4671 = vmatpush.msra.mxu0 %v4614
    %4672 = vmatpush.msra.mxu0 %v4613
    %4673 = vmatpush.msra.mxu0 %v4612
    %4674 = vmatpush.msra.mxu0 %v4611
    %4675 = vmatpush.msra.mxu0 %v4610
    %4676 = vmatpush.msra.mxu0 %v4609
    %4677 = vmatpush.msra.mxu0 %v4608
    %4678 = vmatpush.msra.mxu0 %v4607
    %4679 = vmatpush.msra.mxu0 %v4606
    %4680 = vmatmul.f32.gmra.mxu0 %v4643
    %v4681 = vpop.f32.mrf.mxu0
    %v4682 = vadd.f32 %v4662, %v4681
    %4683 = vdwg.mxu0
    %v4684 = vmul.f32 %v4682, 0.0078125
    %v4686 = vsel %vm691, %v4684, 0
    %4688 = vmatpush.msra.mxu0 0.0
    %4689 = vmatpush.msra.mxu0 0.0
    %4690 = vmatpush.msra.mxu0 0.0
    %4691 = vmatpush.msra.mxu0 0.0
    %4692 = vmatpush.msra.mxu0 0.0
    %4693 = vmatpush.msra.mxu0 0.0
    %4694 = vmatpush.msra.mxu0 0.0
    %4695 = vmatpush.msra.mxu0 0.0
    %4696 = vmatpush.msra.mxu0 0.0
    %4697 = vmatpush.msra.mxu0 0.0
    %4698 = vmatpush.msra.mxu0 0.0
    %4699 = vmatpush.msra.mxu0 0.0
    %4700 = vmatpush.msra.mxu0 %v4628
    %4701 = vmatpush.msra.mxu0 %v4626
    %4702 = vmatpush.msra.mxu0 %v4624
    %4703 = vmatpush.msra.mxu0 %v4622
    %4704 = vmatmul.f32.gmra.mxu0 %v4686
    %v4705 = vpop.f32.mrf.mxu0
    %v4706 = vadd.f32 0.0, %v4705
    %4707 = vdwg.mxu0
    %4708 = vmatpush.msra.mxu0 0.0
    %4709 = vmatpush.msra.mxu0 0.0
    %4710 = vmatpush.msra.mxu0 0.0
    %4711 = vmatpush.msra.mxu0 0.0
    %4712 = vmatpush.msra.mxu0 0.0
    %4713 = vmatpush.msra.mxu0 0.0
    %4714 = vmatpush.msra.mxu0 0.0
    %4715 = vmatpush.msra.mxu0 0.0
    %4716 = vmatpush.msra.mxu0 0.0
    %4717 = vmatpush.msra.mxu0 0.0
    %4718 = vmatpush.msra.mxu0 0.0
    %4719 = vmatpush.msra.mxu0 0.0
    %4720 = vmatpush.msra.mxu0 %v4629
    %4721 = vmatpush.msra.mxu0 %v4627
    %4722 = vmatpush.msra.mxu0 %v4625
    %4723 = vmatpush.msra.mxu0 %v4623
    %4724 = vmatmul.f32.gmra.mxu0 %v4686
    %v4725 = vpop.f32.mrf.mxu0
    %v4726 = vadd.f32 0.0, %v4725
    %4727 = vdwg.mxu0
    %v4728 = vperm.slane %v4706, 0
    %v4729 = vperm.slane %v4726, 0
    %v4730 = vsub.f32 %v4586, %v4728
    %v4731 = vsub.f32 %v4587, %v4729
    %v4732 = vsub.f32 %v4588, %v4728
    %v4733 = vsub.f32 %v4589, %v4729
    %v4734 = vmul.f32 %v4730, %v4730
    %v4735 = vmul.f32 %v4731, %v4731
    %v4736 = vmul.f32 %v4732, %v4732
    %v4737 = vmul.f32 %v4733, %v4733
    %v4738 = vadd.f32 %v4734, %v4736
    %v4739 = vrot.slane %v4738, 4
    %v4740 = vadd.f32 %v4738, %v4739
    %v4741 = vrot.slane %v4740, 2
    %v4742 = vadd.f32 %v4740, %v4741
    %v4743 = vrot.slane %v4742, 1
    %v4744 = vadd.f32 %v4742, %v4743
    %v4745 = vadd.f32 %v4735, %v4737
    %v4746 = vrot.slane %v4745, 4
    %v4747 = vadd.f32 %v4745, %v4746
    %v4748 = vrot.slane %v4747, 2
    %v4749 = vadd.f32 %v4747, %v4748
    %v4750 = vrot.slane %v4749, 1
    %v4751 = vadd.f32 %v4749, %v4750
    %4752 = vmatpush.msra.mxu0 %v4605
    %4753 = vmatpush.msra.mxu0 %v4604
    %4754 = vmatpush.msra.mxu0 %v4603
    %4755 = vmatpush.msra.mxu0 %v4602
    %4756 = vmatpush.msra.mxu0 %v4601
    %4757 = vmatpush.msra.mxu0 %v4600
    %4758 = vmatpush.msra.mxu0 %v4599
    %4759 = vmatpush.msra.mxu0 %v4598
    %4760 = vmatpush.msra.mxu0 %v4597
    %4761 = vmatpush.msra.mxu0 %v4596
    %4762 = vmatpush.msra.mxu0 %v4595
    %4763 = vmatpush.msra.mxu0 %v4594
    %4764 = vmatpush.msra.mxu0 %v4593
    %4765 = vmatpush.msra.mxu0 %v4592
    %4766 = vmatpush.msra.mxu0 %v4591
    %4767 = vmatpush.msra.mxu0 %v4590
    %4768 = vmatmul.f32.gmra.mxu0 %v4744
    %v4769 = vpop.f32.mrf.mxu0
    %v4770 = vadd.f32 0.0, %v4769
    %4771 = vdwg.mxu0
    %4772 = vmatpush.msra.mxu0 %v4621
    %4773 = vmatpush.msra.mxu0 %v4620
    %4774 = vmatpush.msra.mxu0 %v4619
    %4775 = vmatpush.msra.mxu0 %v4618
    %4776 = vmatpush.msra.mxu0 %v4617
    %4777 = vmatpush.msra.mxu0 %v4616
    %4778 = vmatpush.msra.mxu0 %v4615
    %4779 = vmatpush.msra.mxu0 %v4614
    %4780 = vmatpush.msra.mxu0 %v4613
    %4781 = vmatpush.msra.mxu0 %v4612
    %4782 = vmatpush.msra.mxu0 %v4611
    %4783 = vmatpush.msra.mxu0 %v4610
    %4784 = vmatpush.msra.mxu0 %v4609
    %4785 = vmatpush.msra.mxu0 %v4608
    %4786 = vmatpush.msra.mxu0 %v4607
    %4787 = vmatpush.msra.mxu0 %v4606
    %4788 = vmatmul.f32.gmra.mxu0 %v4751
    %v4789 = vpop.f32.mrf.mxu0
    %v4790 = vadd.f32 %v4770, %v4789
    %4791 = vdwg.mxu0
    %v4792 = vmul.f32 %v4790, 0.0078125
    %v4793 = vadd.f32 %v4792, 1e-05
    %v4794 = vrsqrt.pop %v4793
    %v4795 = vmul.f32 %v4794, %v4793
    %v4796 = vmul.f32 %v4795, %v4794
    %v4797 = vmul.f32 0.5, %v4796
    %v4798 = vsub.f32 1.5, %v4797
    %v4799 = vmul.f32 %v4794, %v4798
    %vm4800 = vweird.f32 %v4793
    %vm4801 = vweird.f32 %v4794
    %vm4802 = vmor %vm4800, %vm4801
    %v4803 = vsel %vm4802, %v4794, %v4799
    %v4805 = vsel %vm691, %v4803, 0
    %4807 = vmatpush.msra.mxu0 0.0
    %4808 = vmatpush.msra.mxu0 0.0
    %4809 = vmatpush.msra.mxu0 0.0
    %4810 = vmatpush.msra.mxu0 0.0
    %4811 = vmatpush.msra.mxu0 0.0
    %4812 = vmatpush.msra.mxu0 0.0
    %4813 = vmatpush.msra.mxu0 0.0
    %4814 = vmatpush.msra.mxu0 0.0
    %4815 = vmatpush.msra.mxu0 0.0
    %4816 = vmatpush.msra.mxu0 0.0
    %4817 = vmatpush.msra.mxu0 0.0
    %4818 = vmatpush.msra.mxu0 0.0
    %4819 = vmatpush.msra.mxu0 %v4628
    %4820 = vmatpush.msra.mxu0 %v4626
    %4821 = vmatpush.msra.mxu0 %v4624
    %4822 = vmatpush.msra.mxu0 %v4622
    %4823 = vmatmul.f32.gmra.mxu0 %v4805
    %v4824 = vpop.f32.mrf.mxu0
    %v4825 = vadd.f32 0.0, %v4824
    %4826 = vdwg.mxu0
    %4827 = vmatpush.msra.mxu0 0.0
    %4828 = vmatpush.msra.mxu0 0.0
    %4829 = vmatpush.msra.mxu0 0.0
    %4830 = vmatpush.msra.mxu0 0.0
    %4831 = vmatpush.msra.mxu0 0.0
    %4832 = vmatpush.msra.mxu0 0.0
    %4833 = vmatpush.msra.mxu0 0.0
    %4834 = vmatpush.msra.mxu0 0.0
    %4835 = vmatpush.msra.mxu0 0.0
    %4836 = vmatpush.msra.mxu0 0.0
    %4837 = vmatpush.msra.mxu0 0.0
    %4838 = vmatpush.msra.mxu0 0.0
    %4839 = vmatpush.msra.mxu0 %v4629
    %4840 = vmatpush.msra.mxu0 %v4627
    %4841 = vmatpush.msra.mxu0 %v4625
    %4842 = vmatpush.msra.mxu0 %v4623
    %4843 = vmatmul.f32.gmra.mxu0 %v4805
    %v4844 = vpop.f32.mrf.mxu0
    %v4845 = vadd.f32 0.0, %v4844
    %4846 = vdwg.mxu0
    %v4847 = vperm.slane %v4825, 0
    %v4848 = vperm.slane %v4845, 0
    %v4849 = vmul.f32 %v4730, %v4847
    %v4850 = vmul.f32 %v4731, %v4848
    %v4851 = vmul.f32 %v4732, %v4847
    %v4852 = vmul.f32 %v4733, %v4848
    %v4853 = vld [vmem:[#allocation23] sm:$0x3]
    %v4855 = vperm.slane %v4853, 0
    %v4856 = vperm.slane %v4853, 1
    %v4859 = vmul.f32 %v4849, %v4855
    %v4860 = vmul.f32 %v4850, %v4856
    %v4861 = vmul.f32 %v4851, %v4855
    %v4862 = vmul.f32 %v4852, %v4856
    %v4863 = vld [vmem:[#allocation25] sm:$0x3]
    %v4865 = vperm.slane %v4863, 0
    %v4866 = vperm.slane %v4863, 1
    %v4869 = vadd.f32 %v4859, %v4865
    %v4870 = vadd.f32 %v4860, %v4866
    %v4871 = vadd.f32 %v4861, %v4865
    %v4872 = vadd.f32 %v4862, %v4866
    %v4873 = vmax.f32 %v4869, 0.0
    %v4874 = vmax.f32 %v4870, 0.0
    %v4875 = vmax.f32 %v4871, 0.0
    %v4876 = vmax.f32 %v4872, 0.0
    %v4877 = vld [vmem:[%s43] sm:$0xff]
    %v4878 = vld [vmem:[%s43 + $0x8] sm:$0xff]
    %v4879 = vld [vmem:[%s43 + $0x10] sm:$0xff]
    %v4880 = vld [vmem:[%s43 + $0x18] sm:$0xff]
    %v4881 = vld [vmem:[%s43 + $0x20] sm:$0xff]
    %v4882 = vld [vmem:[%s43 + $0x28] sm:$0xff]
    %v4883 = vld [vmem:[%s43 + $0x30] sm:$0xff]
    %v4884 = vld [vmem:[%s43 + $0x38] sm:$0xff]
    %v4885 = vld [vmem:[%s43 + $0x40] sm:$0xff]
    %v4886 = vld [vmem:[%s43 + $0x48] sm:$0xff]
    %v4887 = vld [vmem:[%s43 + $0x50] sm:$0xff]
    %v4888 = vld [vmem:[%s43 + $0x58] sm:$0xff]
    %v4889 = vld [vmem:[%s43 + $0x60] sm:$0xff]
    %v4890 = vld [vmem:[%s43 + $0x68] sm:$0xff]
    %v4891 = vld [vmem:[%s43 + $0x70] sm:$0xff]
    %v4892 = vld [vmem:[%s43 + $0x78] sm:$0xff]
    %v4893 = vld [vmem:[%s43 + $0x80] sm:$0xff]
    %v4894 = vld [vmem:[%s43 + $0x88] sm:$0xff]
    %v4895 = vld [vmem:[%s43 + $0x90] sm:$0xff]
    %v4896 = vld [vmem:[%s43 + $0x98] sm:$0xff]
    %v4897 = vld [vmem:[%s43 + $0xa0] sm:$0xff]
    %v4898 = vld [vmem:[%s43 + $0xa8] sm:$0xff]
    %v4899 = vld [vmem:[%s43 + $0xb0] sm:$0xff]
    %v4900 = vld [vmem:[%s43 + $0xb8] sm:$0xff]
    %v4901 = vld [vmem:[%s43 + $0xc0] sm:$0xff]
    %v4902 = vld [vmem:[%s43 + $0xc8] sm:$0xff]
    %v4903 = vld [vmem:[%s43 + $0xd0] sm:$0xff]
    %v4904 = vld [vmem:[%s43 + $0xd8] sm:$0xff]
    %v4905 = vld [vmem:[%s43 + $0xe0] sm:$0xff]
    %v4906 = vld [vmem:[%s43 + $0xe8] sm:$0xff]
    %v4907 = vld [vmem:[%s43 + $0xf0] sm:$0xff]
    %v4908 = vld [vmem:[%s43 + $0xf8] sm:$0xff]
    %4909 = vmatpush.msra.mxu0 %v4892
    %4910 = vmatpush.msra.mxu0 %v4891
    %4911 = vmatpush.msra.mxu0 %v4890
    %4912 = vmatpush.msra.mxu0 %v4889
    %4913 = vmatpush.msra.mxu0 %v4888
    %4914 = vmatpush.msra.mxu0 %v4887
    %4915 = vmatpush.msra.mxu0 %v4886
    %4916 = vmatpush.msra.mxu0 %v4885
    %4917 = vmatpush.msra.mxu0 %v4884
    %4918 = vmatpush.msra.mxu0 %v4883
    %4919 = vmatpush.msra.mxu0 %v4882
    %4920 = vmatpush.msra.mxu0 %v4881
    %4921 = vmatpush.msra.mxu0 %v4880
    %4922 = vmatpush.msra.mxu0 %v4879
    %4923 = vmatpush.msra.mxu0 %v4878
    %4924 = vmatpush.msra.mxu0 %v4877
    %4925 = vmatmul.f32.gmra.mxu0 %v4873
    %v4926 = vpop.f32.mrf.mxu0
    %v4927 = vadd.f32 0.0, %v4926
    %4928 = vmatmul.f32.gmra.mxu0 %v4875
    %v4929 = vpop.f32.mrf.mxu0
    %v4930 = vadd.f32 0.0, %v4929
    %4931 = vdwg.mxu0
    %4932 = vmatpush.msra.mxu0 %v4908
    %4933 = vmatpush.msra.mxu0 %v4907
    %4934 = vmatpush.msra.mxu0 %v4906
    %4935 = vmatpush.msra.mxu0 %v4905
    %4936 = vmatpush.msra.mxu0 %v4904
    %4937 = vmatpush.msra.mxu0 %v4903
    %4938 = vmatpush.msra.mxu0 %v4902
    %4939 = vmatpush.msra.mxu0 %v4901
    %4940 = vmatpush.msra.mxu0 %v4900
    %4941 = vmatpush.msra.mxu0 %v4899
    %4942 = vmatpush.msra.mxu0 %v4898
    %4943 = vmatpush.msra.mxu0 %v4897
    %4944 = vmatpush.msra.mxu0 %v4896
    %4945 = vmatpush.msra.mxu0 %v4895
    %4946 = vmatpush.msra.mxu0 %v4894
    %4947 = vmatpush.msra.mxu0 %v4893
    %4948 = vmatmul.f32.gmra.mxu0 %v4874
    %v4949 = vpop.f32.mrf.mxu0
    %v4950 = vadd.f32 %v4927, %v4949
    %4951 = vmatmul.f32.gmra.mxu0 %v4876
    %v4952 = vpop.f32.mrf.mxu0
    %v4953 = vadd.f32 %v4930, %v4952
    %4954 = vdwg.mxu0
    %s4955 = scalar_lea.vmem %s43, 256
    %v4956 = vld [vmem:[%s4955] sm:$0xff]
    %v4957 = vld [vmem:[%s4955 + $0x8] sm:$0xff]
    %v4958 = vld [vmem:[%s4955 + $0x10] sm:$0xff]
    %v4959 = vld [vmem:[%s4955 + $0x18] sm:$0xff]
    %v4960 = vld [vmem:[%s4955 + $0x20] sm:$0xff]
    %v4961 = vld [vmem:[%s4955 + $0x28] sm:$0xff]
    %v4962 = vld [vmem:[%s4955 + $0x30] sm:$0xff]
    %v4963 = vld [vmem:[%s4955 + $0x38] sm:$0xff]
    %v4964 = vld [vmem:[%s4955 + $0x40] sm:$0xff]
    %v4965 = vld [vmem:[%s4955 + $0x48] sm:$0xff]
    %v4966 = vld [vmem:[%s4955 + $0x50] sm:$0xff]
    %v4967 = vld [vmem:[%s4955 + $0x58] sm:$0xff]
    %v4968 = vld [vmem:[%s4955 + $0x60] sm:$0xff]
    %v4969 = vld [vmem:[%s4955 + $0x68] sm:$0xff]
    %v4970 = vld [vmem:[%s4955 + $0x70] sm:$0xff]
    %v4971 = vld [vmem:[%s4955 + $0x78] sm:$0xff]
    %v4972 = vld [vmem:[%s4955 + $0x80] sm:$0xff]
    %v4973 = vld [vmem:[%s4955 + $0x88] sm:$0xff]
    %v4974 = vld [vmem:[%s4955 + $0x90] sm:$0xff]
    %v4975 = vld [vmem:[%s4955 + $0x98] sm:$0xff]
    %v4976 = vld [vmem:[%s4955 + $0xa0] sm:$0xff]
    %v4977 = vld [vmem:[%s4955 + $0xa8] sm:$0xff]
    %v4978 = vld [vmem:[%s4955 + $0xb0] sm:$0xff]
    %v4979 = vld [vmem:[%s4955 + $0xb8] sm:$0xff]
    %v4980 = vld [vmem:[%s4955 + $0xc0] sm:$0xff]
    %v4981 = vld [vmem:[%s4955 + $0xc8] sm:$0xff]
    %v4982 = vld [vmem:[%s4955 + $0xd0] sm:$0xff]
    %v4983 = vld [vmem:[%s4955 + $0xd8] sm:$0xff]
    %v4984 = vld [vmem:[%s4955 + $0xe0] sm:$0xff]
    %v4985 = vld [vmem:[%s4955 + $0xe8] sm:$0xff]
    %v4986 = vld [vmem:[%s4955 + $0xf0] sm:$0xff]
    %v4987 = vld [vmem:[%s4955 + $0xf8] sm:$0xff]
    %4988 = vmatpush.msra.mxu0 %v4971
    %4989 = vmatpush.msra.mxu0 %v4970
    %4990 = vmatpush.msra.mxu0 %v4969
    %4991 = vmatpush.msra.mxu0 %v4968
    %4992 = vmatpush.msra.mxu0 %v4967
    %4993 = vmatpush.msra.mxu0 %v4966
    %4994 = vmatpush.msra.mxu0 %v4965
    %4995 = vmatpush.msra.mxu0 %v4964
    %4996 = vmatpush.msra.mxu0 %v4963
    %4997 = vmatpush.msra.mxu0 %v4962
    %4998 = vmatpush.msra.mxu0 %v4961
    %4999 = vmatpush.msra.mxu0 %v4960
    %5000 = vmatpush.msra.mxu0 %v4959
    %5001 = vmatpush.msra.mxu0 %v4958
    %5002 = vmatpush.msra.mxu0 %v4957
    %5003 = vmatpush.msra.mxu0 %v4956
    %5004 = vmatmul.f32.gmra.mxu0 %v4873
    %v5005 = vpop.f32.mrf.mxu0
    %v5006 = vadd.f32 0.0, %v5005
    %5007 = vmatmul.f32.gmra.mxu0 %v4875
    %v5008 = vpop.f32.mrf.mxu0
    %v5009 = vadd.f32 0.0, %v5008
    %5010 = vdwg.mxu0
    %5011 = vmatpush.msra.mxu0 %v4987
    %5012 = vmatpush.msra.mxu0 %v4986
    %5013 = vmatpush.msra.mxu0 %v4985
    %5014 = vmatpush.msra.mxu0 %v4984
    %5015 = vmatpush.msra.mxu0 %v4983
    %5016 = vmatpush.msra.mxu0 %v4982
    %5017 = vmatpush.msra.mxu0 %v4981
    %5018 = vmatpush.msra.mxu0 %v4980
    %5019 = vmatpush.msra.mxu0 %v4979
    %5020 = vmatpush.msra.mxu0 %v4978
    %5021 = vmatpush.msra.mxu0 %v4977
    %5022 = vmatpush.msra.mxu0 %v4976
    %5023 = vmatpush.msra.mxu0 %v4975
    %5024 = vmatpush.msra.mxu0 %v4974
    %5025 = vmatpush.msra.mxu0 %v4973
    %5026 = vmatpush.msra.mxu0 %v4972
    %5027 = vmatmul.f32.gmra.mxu0 %v4874
    %v5028 = vpop.f32.mrf.mxu0
    %v5029 = vadd.f32 %v5006, %v5028
    %5030 = vmatmul.f32.gmra.mxu0 %v4876
    %v5031 = vpop.f32.mrf.mxu0
    %v5032 = vadd.f32 %v5009, %v5031
    %5033 = vdwg.mxu0
    %v5034 = vmax.f32 %v4950, %v5029
    %v5035 = vmax.f32 %v4953, %v5032
    %v5036 = vld [vmem:[#allocation20] sm:$0xff]
    %v5038 = vsel %vm2759, %v5036, 0
    %5040 = vmatpush.msra.mxu0 0.0
    %5041 = vmatpush.msra.mxu0 0.0
    %5042 = vmatpush.msra.mxu0 0.0
    %5043 = vmatpush.msra.mxu0 0.0
    %5044 = vmatpush.msra.mxu0 0.0
    %5045 = vmatpush.msra.mxu0 0.0
    %5046 = vmatpush.msra.mxu0 0.0
    %5047 = vmatpush.msra.mxu0 0.0
    %5048 = vmatpush.msra.mxu0 0.0
    %5049 = vmatpush.msra.mxu0 0.0
    %5050 = vmatpush.msra.mxu0 0.0
    %5051 = vmatpush.msra.mxu0 0.0
    %5052 = vmatpush.msra.mxu0 0.0
    %5053 = vmatpush.msra.mxu0 0.0
    %5054 = vmatpush.msra.mxu0 %v5035
    %5055 = vmatpush.msra.mxu0 %v5034
    %5056 = vmatmul.f32.gmra.mxu0 %v5038
    %v5057 = vpop.f32.mrf.mxu0
    %v5058 = vadd.f32 0.0, %v5057
    %5059 = vdwg.mxu0
    %s5060 = scalar_lea.vmem [#allocation20], 8
    %v5061 = vld [vmem:[%s5060] sm:$0xff]
    %v5063 = vsel %vm2759, %v5061, 0
    %5065 = vmatpush.msra.mxu0 0.0
    %5066 = vmatpush.msra.mxu0 0.0
    %5067 = vmatpush.msra.mxu0 0.0
    %5068 = vmatpush.msra.mxu0 0.0
    %5069 = vmatpush.msra.mxu0 0.0
    %5070 = vmatpush.msra.mxu0 0.0
    %5071 = vmatpush.msra.mxu0 0.0
    %5072 = vmatpush.msra.mxu0 0.0
    %5073 = vmatpush.msra.mxu0 0.0
    %5074 = vmatpush.msra.mxu0 0.0
    %5075 = vmatpush.msra.mxu0 0.0
    %5076 = vmatpush.msra.mxu0 0.0
    %5077 = vmatpush.msra.mxu0 0.0
    %5078 = vmatpush.msra.mxu0 0.0
    %5079 = vmatpush.msra.mxu0 %v5035
    %5080 = vmatpush.msra.mxu0 %v5034
    %5081 = vmatmul.f32.gmra.mxu0 %v5063
    %v5082 = vpop.f32.mrf.mxu0
    %v5083 = vadd.f32 0.0, %v5082
    %5084 = vdwg.mxu0
    %v5085 = vmax.f32 %v5058, %v5083
    %v5086 = vld [vmem:[#allocation29] sm:$0x1]
    %v5087 = vld [vmem:[#allocation26] sm:$0x3]
    %v5089 = vsel %vm1705, %v5087, 0
    %5091 = vmatpush.msra.mxu0 0.0
    %5092 = vmatpush.msra.mxu0 0.0
    %5093 = vmatpush.msra.mxu0 0.0
    %5094 = vmatpush.msra.mxu0 0.0
    %5095 = vmatpush.msra.mxu0 0.0
    %5096 = vmatpush.msra.mxu0 0.0
    %5097 = vmatpush.msra.mxu0 0.0
    %5098 = vmatpush.msra.mxu0 0.0
    %5099 = vmatpush.msra.mxu0 0.0
    %5100 = vmatpush.msra.mxu0 0.0
    %5101 = vmatpush.msra.mxu0 0.0
    %5102 = vmatpush.msra.mxu0 0.0
    %5103 = vmatpush.msra.mxu0 0.0
    %5104 = vmatpush.msra.mxu0 0.0
    %5105 = vmatpush.msra.mxu0 0.0
    %5106 = vmatpush.msra.mxu0 %v5085
    %5107 = vmatmul.f32.gmra.mxu0 %v5089
    %v5108 = vpop.f32.mrf.mxu0
    %v5109 = vadd.f32 0.0, %v5108
    %5110 = vdwg.mxu0
    %v5111 = vld [vmem:[#allocation28] sm:$0xff]
    %v5112 = vld [vmem:[#allocation28 + $0x8] sm:$0xff]
    %v5113 = vld [vmem:[#allocation28 + $0x10] sm:$0xff]
    %v5114 = vld [vmem:[#allocation28 + $0x18] sm:$0xff]
    %v5115 = vld [vmem:[#allocation28 + $0x20] sm:$0xff]
    %v5116 = vld [vmem:[#allocation28 + $0x28] sm:$0xff]
    %v5117 = vld [vmem:[#allocation28 + $0x30] sm:$0xff]
    %v5118 = vld [vmem:[#allocation28 + $0x38] sm:$0xff]
    %v5119 = vld [vmem:[#allocation28 + $0x40] sm:$0xff]
    %v5120 = vld [vmem:[#allocation28 + $0x48] sm:$0xff]
    %v5121 = vld [vmem:[#allocation28 + $0x50] sm:$0xff]
    %v5122 = vld [vmem:[#allocation28 + $0x58] sm:$0xff]
    %v5123 = vld [vmem:[#allocation28 + $0x60] sm:$0xff]
    %v5124 = vld [vmem:[#allocation28 + $0x68] sm:$0xff]
    %v5125 = vld [vmem:[#allocation28 + $0x70] sm:$0xff]
    %v5126 = vld [vmem:[#allocation28 + $0x78] sm:$0xff]
    %5127 = vmatpush.msra.mxu0 %v5126
    %5128 = vmatpush.msra.mxu0 %v5125
    %5129 = vmatpush.msra.mxu0 %v5124
    %5130 = vmatpush.msra.mxu0 %v5123
    %5131 = vmatpush.msra.mxu0 %v5122
    %5132 = vmatpush.msra.mxu0 %v5121
    %5133 = vmatpush.msra.mxu0 %v5120
    %5134 = vmatpush.msra.mxu0 %v5119
    %5135 = vmatpush.msra.mxu0 %v5118
    %5136 = vmatpush.msra.mxu0 %v5117
    %5137 = vmatpush.msra.mxu0 %v5116
    %5138 = vmatpush.msra.mxu0 %v5115
    %5139 = vmatpush.msra.mxu0 %v5114
    %5140 = vmatpush.msra.mxu0 %v5113
    %5141 = vmatpush.msra.mxu0 %v5112
    %5142 = vmatpush.msra.mxu0 %v5111
    %5143 = vmatmul.f32.gmra.mxu0 %v5109
    %v5144 = vpop.f32.mrf.mxu0
    %v5145 = vadd.f32 0.0, %v5144
    %5146 = vdwg.mxu0
    %v5148 = vperm.slane %v5086, 0
    %v5150 = vadd.f32 %v5148, %v5145
    %s5151 = scalar_lea.vmem [#allocation26], 2
    %v5152 = vld [vmem:[%s5151] sm:$0x3]
    %v5154 = vsel %vm1705, %v5152, 0
    %5156 = vmatpush.msra.mxu0 0.0
    %5157 = vmatpush.msra.mxu0 0.0
    %5158 = vmatpush.msra.mxu0 0.0
    %5159 = vmatpush.msra.mxu0 0.0
    %5160 = vmatpush.msra.mxu0 0.0
    %5161 = vmatpush.msra.mxu0 0.0
    %5162 = vmatpush.msra.mxu0 0.0
    %5163 = vmatpush.msra.mxu0 0.0
    %5164 = vmatpush.msra.mxu0 0.0
    %5165 = vmatpush.msra.mxu0 0.0
    %5166 = vmatpush.msra.mxu0 0.0
    %5167 = vmatpush.msra.mxu0 0.0
    %5168 = vmatpush.msra.mxu0 0.0
    %5169 = vmatpush.msra.mxu0 0.0
    %5170 = vmatpush.msra.mxu0 0.0
    %5171 = vmatpush.msra.mxu0 %v5085
    %5172 = vmatmul.f32.gmra.mxu0 %v5154
    %v5173 = vpop.f32.mrf.mxu0
    %v5174 = vadd.f32 0.0, %v5173
    %5175 = vdwg.mxu0
    %s5176 = scalar_lea.vmem [#allocation28], 128
    %v5177 = vld [vmem:[%s5176] sm:$0xff]
    %v5178 = vld [vmem:[%s5176 + $0x8] sm:$0xff]
    %v5179 = vld [vmem:[%s5176 + $0x10] sm:$0xff]
    %v5180 = vld [vmem:[%s5176 + $0x18] sm:$0xff]
    %v5181 = vld [vmem:[%s5176 + $0x20] sm:$0xff]
    %v5182 = vld [vmem:[%s5176 + $0x28] sm:$0xff]
    %v5183 = vld [vmem:[%s5176 + $0x30] sm:$0xff]
    %v5184 = vld [vmem:[%s5176 + $0x38] sm:$0xff]
    %v5185 = vld [vmem:[%s5176 + $0x40] sm:$0xff]
    %v5186 = vld [vmem:[%s5176 + $0x48] sm:$0xff]
    %v5187 = vld [vmem:[%s5176 + $0x50] sm:$0xff]
    %v5188 = vld [vmem:[%s5176 + $0x58] sm:$0xff]
    %v5189 = vld [vmem:[%s5176 + $0x60] sm:$0xff]
    %v5190 = vld [vmem:[%s5176 + $0x68] sm:$0xff]
    %v5191 = vld [vmem:[%s5176 + $0x70] sm:$0xff]
    %v5192 = vld [vmem:[%s5176 + $0x78] sm:$0xff]
    %5193 = vmatpush.msra.mxu0 %v5192
    %5194 = vmatpush.msra.mxu0 %v5191
    %5195 = vmatpush.msra.mxu0 %v5190
    %5196 = vmatpush.msra.mxu0 %v5189
    %5197 = vmatpush.msra.mxu0 %v5188
    %5198 = vmatpush.msra.mxu0 %v5187
    %5199 = vmatpush.msra.mxu0 %v5186
    %5200 = vmatpush.msra.mxu0 %v5185
    %5201 = vmatpush.msra.mxu0 %v5184
    %5202 = vmatpush.msra.mxu0 %v5183
    %5203 = vmatpush.msra.mxu0 %v5182
    %5204 = vmatpush.msra.mxu0 %v5181
    %5205 = vmatpush.msra.mxu0 %v5180
    %5206 = vmatpush.msra.mxu0 %v5179
    %5207 = vmatpush.msra.mxu0 %v5178
    %5208 = vmatpush.msra.mxu0 %v5177
    %5209 = vmatmul.f32.gmra.mxu0 %v5174
    %v5210 = vpop.f32.mrf.mxu0
    %v5211 = vadd.f32 0.0, %v5210
    %5212 = vdwg.mxu0
    %v5213 = vadd.f32 %v5150, %v5211
    %s5214 = scalar_lea.vmem [#allocation26], 4
    %v5215 = vld [vmem:[%s5214] sm:$0x3]
    %v5217 = vsel %vm1705, %v5215, 0
    %5219 = vmatpush.msra.mxu0 0.0
    %5220 = vmatpush.msra.mxu0 0.0
    %5221 = vmatpush.msra.mxu0 0.0
    %5222 = vmatpush.msra.mxu0 0.0
    %5223 = vmatpush.msra.mxu0 0.0
    %5224 = vmatpush.msra.mxu0 0.0
    %5225 = vmatpush.msra.mxu0 0.0
    %5226 = vmatpush.msra.mxu0 0.0
    %5227 = vmatpush.msra.mxu0 0.0
    %5228 = vmatpush.msra.mxu0 0.0
    %5229 = vmatpush.msra.mxu0 0.0
    %5230 = vmatpush.msra.mxu0 0.0
    %5231 = vmatpush.msra.mxu0 0.0
    %5232 = vmatpush.msra.mxu0 0.0
    %5233 = vmatpush.msra.mxu0 0.0
    %5234 = vmatpush.msra.mxu0 %v5085
    %5235 = vmatmul.f32.gmra.mxu0 %v5217
    %v5236 = vpop.f32.mrf.mxu0
    %v5237 = vadd.f32 0.0, %v5236
    %5238 = vdwg.mxu0
    %s5239 = scalar_lea.vmem [#allocation28], 256
    %v5240 = vld [vmem:[%s5239] sm:$0xff]
    %v5241 = vld [vmem:[%s5239 + $0x8] sm:$0xff]
    %v5242 = vld [vmem:[%s5239 + $0x10] sm:$0xff]
    %v5243 = vld [vmem:[%s5239 + $0x18] sm:$0xff]
    %v5244 = vld [vmem:[%s5239 + $0x20] sm:$0xff]
    %v5245 = vld [vmem:[%s5239 + $0x28] sm:$0xff]
    %v5246 = vld [vmem:[%s5239 + $0x30] sm:$0xff]
    %v5247 = vld [vmem:[%s5239 + $0x38] sm:$0xff]
    %v5248 = vld [vmem:[%s5239 + $0x40] sm:$0xff]
    %v5249 = vld [vmem:[%s5239 + $0x48] sm:$0xff]
    %v5250 = vld [vmem:[%s5239 + $0x50] sm:$0xff]
    %v5251 = vld [vmem:[%s5239 + $0x58] sm:$0xff]
    %v5252 = vld [vmem:[%s5239 + $0x60] sm:$0xff]
    %v5253 = vld [vmem:[%s5239 + $0x68] sm:$0xff]
    %v5254 = vld [vmem:[%s5239 + $0x70] sm:$0xff]
    %v5255 = vld [vmem:[%s5239 + $0x78] sm:$0xff]
    %5256 = vmatpush.msra.mxu0 %v5255
    %5257 = vmatpush.msra.mxu0 %v5254
    %5258 = vmatpush.msra.mxu0 %v5253
    %5259 = vmatpush.msra.mxu0 %v5252
    %5260 = vmatpush.msra.mxu0 %v5251
    %5261 = vmatpush.msra.mxu0 %v5250
    %5262 = vmatpush.msra.mxu0 %v5249
    %5263 = vmatpush.msra.mxu0 %v5248
    %5264 = vmatpush.msra.mxu0 %v5247
    %5265 = vmatpush.msra.mxu0 %v5246
    %5266 = vmatpush.msra.mxu0 %v5245
    %5267 = vmatpush.msra.mxu0 %v5244
    %5268 = vmatpush.msra.mxu0 %v5243
    %5269 = vmatpush.msra.mxu0 %v5242
    %5270 = vmatpush.msra.mxu0 %v5241
    %5271 = vmatpush.msra.mxu0 %v5240
    %5272 = vmatmul.f32.gmra.mxu0 %v5237
    %v5273 = vpop.f32.mrf.mxu0
    %v5274 = vadd.f32 0.0, %v5273
    %5275 = vdwg.mxu0
    %v5276 = vadd.f32 %v5213, %v5274
    %s5277 = scalar_lea.vmem [#allocation26], 6
    %v5278 = vld [vmem:[%s5277] sm:$0x3]
    %v5280 = vsel %vm1705, %v5278, 0
    %5282 = vmatpush.msra.mxu0 0.0
    %5283 = vmatpush.msra.mxu0 0.0
    %5284 = vmatpush.msra.mxu0 0.0
    %5285 = vmatpush.msra.mxu0 0.0
    %5286 = vmatpush.msra.mxu0 0.0
    %5287 = vmatpush.msra.mxu0 0.0
    %5288 = vmatpush.msra.mxu0 0.0
    %5289 = vmatpush.msra.mxu0 0.0
    %5290 = vmatpush.msra.mxu0 0.0
    %5291 = vmatpush.msra.mxu0 0.0
    %5292 = vmatpush.msra.mxu0 0.0
    %5293 = vmatpush.msra.mxu0 0.0
    %5294 = vmatpush.msra.mxu0 0.0
    %5295 = vmatpush.msra.mxu0 0.0
    %5296 = vmatpush.msra.mxu0 0.0
    %5297 = vmatpush.msra.mxu0 %v5085
    %5298 = vmatmul.f32.gmra.mxu0 %v5280
    %v5299 = vpop.f32.mrf.mxu0
    %v5300 = vadd.f32 0.0, %v5299
    %5301 = vdwg.mxu0
    %s5302 = scalar_lea.vmem [#allocation28], 384
    %v5303 = vld [vmem:[%s5302] sm:$0xff]
    %v5304 = vld [vmem:[%s5302 + $0x8] sm:$0xff]
    %v5305 = vld [vmem:[%s5302 + $0x10] sm:$0xff]
    %v5306 = vld [vmem:[%s5302 + $0x18] sm:$0xff]
    %v5307 = vld [vmem:[%s5302 + $0x20] sm:$0xff]
    %v5308 = vld [vmem:[%s5302 + $0x28] sm:$0xff]
    %v5309 = vld [vmem:[%s5302 + $0x30] sm:$0xff]
    %v5310 = vld [vmem:[%s5302 + $0x38] sm:$0xff]
    %v5311 = vld [vmem:[%s5302 + $0x40] sm:$0xff]
    %v5312 = vld [vmem:[%s5302 + $0x48] sm:$0xff]
    %v5313 = vld [vmem:[%s5302 + $0x50] sm:$0xff]
    %v5314 = vld [vmem:[%s5302 + $0x58] sm:$0xff]
    %v5315 = vld [vmem:[%s5302 + $0x60] sm:$0xff]
    %v5316 = vld [vmem:[%s5302 + $0x68] sm:$0xff]
    %v5317 = vld [vmem:[%s5302 + $0x70] sm:$0xff]
    %v5318 = vld [vmem:[%s5302 + $0x78] sm:$0xff]
    %5319 = vmatpush.msra.mxu0 %v5318
    %5320 = vmatpush.msra.mxu0 %v5317
    %5321 = vmatpush.msra.mxu0 %v5316
    %5322 = vmatpush.msra.mxu0 %v5315
    %5323 = vmatpush.msra.mxu0 %v5314
    %5324 = vmatpush.msra.mxu0 %v5313
    %5325 = vmatpush.msra.mxu0 %v5312
    %5326 = vmatpush.msra.mxu0 %v5311
    %5327 = vmatpush.msra.mxu0 %v5310
    %5328 = vmatpush.msra.mxu0 %v5309
    %5329 = vmatpush.msra.mxu0 %v5308
    %5330 = vmatpush.msra.mxu0 %v5307
    %5331 = vmatpush.msra.mxu0 %v5306
    %5332 = vmatpush.msra.mxu0 %v5305
    %5333 = vmatpush.msra.mxu0 %v5304
    %5334 = vmatpush.msra.mxu0 %v5303
    %5335 = vmatmul.f32.gmra.mxu0 %v5300
    %v5336 = vpop.f32.mrf.mxu0
    %v5337 = vadd.f32 0.0, %v5336
    %5338 = vdwg.mxu0
    %v5339 = vadd.f32 %v5276, %v5337
    %v5340 = vmax.f32 %v5339, 0.0
    %v5341 = vld [vmem:[%s61] sm:$0xff]
    %v5342 = vld [vmem:[%s61 + $0x8] sm:$0xff]
    %v5343 = vld [vmem:[%s61 + $0x10] sm:$0xff]
    %v5344 = vld [vmem:[%s61 + $0x18] sm:$0xff]
    %v5345 = vld [vmem:[%s61 + $0x20] sm:$0xff]
    %v5346 = vld [vmem:[%s61 + $0x28] sm:$0xff]
    %v5347 = vld [vmem:[%s61 + $0x30] sm:$0xff]
    %v5348 = vld [vmem:[%s61 + $0x38] sm:$0xff]
    %v5349 = vld [vmem:[%s61 + $0x40] sm:$0xff]
    %v5350 = vld [vmem:[%s61 + $0x48] sm:$0xff]
    %v5351 = vld [vmem:[%s61 + $0x50] sm:$0xff]
    %v5352 = vld [vmem:[%s61 + $0x58] sm:$0xff]
    %v5353 = vld [vmem:[%s61 + $0x60] sm:$0xff]
    %v5354 = vld [vmem:[%s61 + $0x68] sm:$0xff]
    %v5355 = vld [vmem:[%s61 + $0x70] sm:$0xff]
    %v5356 = vld [vmem:[%s61 + $0x78] sm:$0xff]
    %v5357 = vld [vmem:[#allocation31] sm:$0x1]
    %v5359 = vperm.slane %v5357, 0
    %5361 = vmatpush.msra.mxu0 %v5356
    %5362 = vmatpush.msra.mxu0 %v5355
    %5363 = vmatpush.msra.mxu0 %v5354
    %5364 = vmatpush.msra.mxu0 %v5353
    %5365 = vmatpush.msra.mxu0 %v5352
    %5366 = vmatpush.msra.mxu0 %v5351
    %5367 = vmatpush.msra.mxu0 %v5350
    %5368 = vmatpush.msra.mxu0 %v5349
    %5369 = vmatpush.msra.mxu0 %v5348
    %5370 = vmatpush.msra.mxu0 %v5347
    %5371 = vmatpush.msra.mxu0 %v5346
    %5372 = vmatpush.msra.mxu0 %v5345
    %5373 = vmatpush.msra.mxu0 %v5344
    %5374 = vmatpush.msra.mxu0 %v5343
    %5375 = vmatpush.msra.mxu0 %v5342
    %5376 = vmatpush.msra.mxu0 %v5341
    %5377 = vmatmul.f32.gmra.mxu0 %v5340
    %v5378 = vpop.f32.mrf.mxu0
    %v5379 = vadd.f32 %v5359, %v5378
    %5380 = vdwg.mxu0
    %v5381 = vmax.f32 %v5379, 0.0
    %vm5382 = vcmask 74752
    %5383 = vst.msk [vmem:[#allocation32] sm:$0x3] %vm5382, %v5381
    // Predicated region
    $region206: #{tpu_custom_call.1} parent=1 // pred_check
      _
    $region207: #{tpu_custom_call.1} parent=1 // pred_check_branch
      %5385 = sbr.rel (0) target = $region209
    $region208: #{tpu_custom_call.1} parent=1 // pred_region
      %5387 = vsyncadd [#allocation4], 0
      %s5389 = sshll.u32 [#allocation32], 4
      %s5390 = int_to_ptr.vmem [resolvable:$true] %s5389
      %s5391 = sshll.u32 %s65, 4
      %s5392 = int_to_ptr.hbm [resolvable:$true] %s5391
      %5394 = dma.vmem_to_hbm [thread:$0]  %s5390, 32, %s5392, [#allocation4]
    $region209: #{tpu_custom_call.1} parent=1 // pred_fallthru
      _
    // Predicated region
    $region210: #{tpu_custom_call.1} parent=1 // pred_check
      _
    $region211: #{tpu_custom_call.1} parent=1 // pred_check_branch
      %5396 = sbr.rel (0) target = $region213
    $region212: #{tpu_custom_call.1} parent=1 // pred_region
      %5398 = dma.done [#allocation4], 32
    $region213: #{tpu_custom_call.1} parent=1 // pred_fallthru
      _
    %5399 = vsyncpa [#allocation3], 1
    %5400 = vsyncpa [#allocation6], 1
    %5401 = vsyncpa [#allocation9], 1
    %5402 = vsyncpa [#allocation12], 1
    %5403 = vsyncpa [#allocation15], 1
    %5404 = vsyncpa [#allocation18], 1
    %5405 = vsyncpa [#allocation21], 1
    %5406 = vsyncpa [#allocation24], 1
    %5407 = vsyncpa [#allocation27], 1
    %5408 = vsyncpa [#allocation30], 1
    %5409 = vsyncpa [#allocation4], 1

</llo_original>
